<compile_context>
chip_gen: v6e
topology: v6e:2x2x1
jax: 0.10.0
libtpu: 0.0.40
codegen_flags: <defaults>
</compile_context>

<pallas_src>
import functools

import jax
import jax.numpy as jnp
from jax.experimental import pallas as pl
from jax.experimental.pallas import tpu as pltpu


# ----------------------------- Pallas kernels ------------------------------

def _linear_kernel(x_ref, w_ref, b_ref, o_ref):
    x = x_ref[...].astype(jnp.bfloat16)
    w = w_ref[...].astype(jnp.bfloat16)
    o_ref[...] = (jnp.dot(x, w, preferred_element_type=jnp.float32)
                  + b_ref[...])


def linear(x, w, b):
    """y = x @ w + b. Whole operands in VMEM (small shapes)."""
    M = x.shape[0]
    N = w.shape[1]
    return pl.pallas_call(
        _linear_kernel,
        out_shape=jax.ShapeDtypeStruct((M, N), jnp.float32),
    )(x, w, b.reshape(1, N))


def _gru_scan_kernel(gx_ref, h0_ref, lens_ref, whh_ref, bhh_ref,
                     out_ref, hT_ref, h_scr):
    """One grid step == one timestep. Weights + h stay resident in VMEM."""
    t = pl.program_id(0)

    @pl.when(t == 0)
    def _():
        h_scr[...] = h0_ref[...]

    h = h_scr[...]                                   # (B, H) f32
    H = h.shape[-1]
    gx = gx_ref[0]                                   # (B, 3H) precomputed x@W_ih+b_ih
    gh = jnp.dot(h, whh_ref[...],
                 preferred_element_type=jnp.float32) + bhh_ref[...]
    # H is a multiple of 128 -> these gate slices are lane-tile aligned.
    r = jax.nn.sigmoid(gx[:, 0:H] + gh[:, 0:H])
    z = jax.nn.sigmoid(gx[:, H:2 * H] + gh[:, H:2 * H])
    n = jnp.tanh(gx[:, 2 * H:3 * H] + r * gh[:, 2 * H:3 * H])
    h_new = (1.0 - z) * n + z * h

    # pack_padded semantics: freeze h and emit zeros past each length.
    mask = (lens_ref[...] > t).astype(jnp.float32)   # (B, 1)
    h_next = mask * h_new + (1.0 - mask) * h
    h_scr[...] = h_next
    out_ref[0] = mask * h_new
    hT_ref[...] = h_next                             # resident; flushed at end


def gru_sequence(gx, h0, lengths, w_hh, b_hh):
    """Masked GRU recurrence. gx: (T, B, 3H) time-major precomputed inputs."""
    T, B, H3 = gx.shape
    H = h0.shape[-1]
    lens = lengths.reshape(B, 1).astype(jnp.int32)
    out, h_final = pl.pallas_call(
        _gru_scan_kernel,
        out_shape=(jax.ShapeDtypeStruct((T, B, H), jnp.float32),
                   jax.ShapeDtypeStruct((B, H), jnp.float32)),
        grid=(T,),
        in_specs=[
            pl.BlockSpec((1, B, H3), lambda t: (t, 0, 0)),   # gx (streamed)
            pl.BlockSpec((B, H), lambda t: (0, 0)),          # h0 (resident)
            pl.BlockSpec((B, 1), lambda t: (0, 0)),          # lengths (resident)
            pl.BlockSpec((H, H3), lambda t: (0, 0)),         # W_hh (resident)
            pl.BlockSpec((1, H3), lambda t: (0, 0)),         # b_hh (resident)
        ],
        out_specs=(pl.BlockSpec((1, B, H), lambda t: (t, 0, 0)),
                   pl.BlockSpec((B, H), lambda t: (0, 0))),
        scratch_shapes=[pltpu.VMEM((B, H), jnp.float32)],
        compiler_params=pltpu.CompilerParams(
            dimension_semantics=("arbitrary",)),             # sequential in T
    )(gx, h0, lens, w_hh, b_hh.reshape(1, H3))
    return out, h_final


def _enc_head_kernel(hid_ref, lnw_ref, fcw_ref, fcb_ref,
                     topic_ref, hid_out_ref):
    h = hid_ref[...].astype(jnp.bfloat16)
    topic_ref[...] = jnp.dot(h, lnw_ref[...].astype(jnp.bfloat16),
                             preferred_element_type=jnp.float32)
    hid_out_ref[...] = jnp.tanh(
        jnp.dot(h, fcw_ref[...].astype(jnp.bfloat16),
                preferred_element_type=jnp.float32) + fcb_ref[...])


def _decoder_head_kernel(outseq_ref, ctx_ref, tctx_ref, hid_ref, topics_ref,
                         ain_ref, aout_w_ref, aout_b_ref,
                         tin_ref, tout_w_ref, tout_b_ref,
                         ow_ref, ob_ref, tw_ref, tb_ref,
                         aw_ref, ab_ref, mem_ref, tmask_ref,
                         out_ref, attn_ref):
    """Fused decoder head for one batch row:
       word attention + topic attention + vocab projection + topic scatter
       + Filter gate + log_softmax + pad masking. Logits stay in VMEM."""
    o = outseq_ref[0]                                   # (T, Hd)
    o16 = o.astype(jnp.bfloat16)

    def attend(c_ref, in_w_ref, out_w_ref, out_b_ref):
        c = c_ref[0]                                    # (S, C)
        C = c.shape[-1]
        c16 = c.astype(jnp.bfloat16)
        c_in = jnp.dot(c16, in_w_ref[...].astype(jnp.bfloat16),
                       preferred_element_type=jnp.float32)          # (S, Hd)
        scores = jax.lax.dot_general(
            o16, c_in.astype(jnp.bfloat16), (((1,), (1,)), ((), ())),
            preferred_element_type=jnp.float32)                     # (T, S)
        # NOTE: the reference's masked_fill is a no-op -> no mask here.
        mx = jnp.max(scores, axis=-1, keepdims=True)
        e = jnp.exp(scores - mx)
        attn = e * pl.reciprocal(jnp.sum(e, axis=-1, keepdims=True),
                                 approx=True)
        ctx2 = jnp.dot(attn.astype(jnp.bfloat16), c16,
                       preferred_element_type=jnp.float32)          # (T, C)
        # tanh(linear_out(cat(ctx2, o))) as two matmuls (no concat in-kernel)
        res = jnp.tanh(
            jnp.dot(ctx2.astype(jnp.bfloat16),
                    out_w_ref[0:C, :].astype(jnp.bfloat16),
                    preferred_element_type=jnp.float32)
            + jnp.dot(o16, out_w_ref[C:, :].astype(jnp.bfloat16),
                      preferred_element_type=jnp.float32)
            + out_b_ref[...])                                       # (T, Hd)
        return res, attn

    attn_out, attn = attend(ctx_ref, ain_ref, aout_w_ref, aout_b_ref)
    tattn_out, _ = attend(tctx_ref, tin_ref, tout_w_ref, tout_b_ref)

    logits = (jnp.dot(attn_out.astype(jnp.bfloat16),
                      ow_ref[...].astype(jnp.bfloat16),
                      preferred_element_type=jnp.float32)
              + ob_ref[...])                                        # (T, V)
    tlogits = (jnp.dot(tattn_out.astype(jnp.bfloat16),
                       tw_ref[...].astype(jnp.bfloat16),
                       preferred_element_type=jnp.float32)
               + tb_ref[...])                                       # (T, K)

    # scatter_(2, topics, tlogits) as a one-hot matmul (in-VMEM, no HBM trip).
    # Assumes distinct topic ids per row (same as the reference's scatter_).
    K = tlogits.shape[-1]
    V = logits.shape[-1]
    vocab_iota = jax.lax.broadcasted_iota(jnp.int32, (K, V), 1)
    onehot = (vocab_iota == topics_ref[0]).astype(jnp.float32)      # (K, V)
    logits = logits + jnp.dot(tlogits, onehot,
                              preferred_element_type=jnp.float32)

    # Filter gate: arfa = sigmoid(hid @ W_arfa + b)
    hid16 = hid_ref[0].astype(jnp.bfloat16)                         # (1, Hd)
    arfa = jax.nn.sigmoid(
        jnp.dot(hid16, aw_ref[...].astype(jnp.bfloat16),
                preferred_element_type=jnp.float32) + ab_ref[...])  # (1, 1)
    m = mem_ref[...]                                                # (1, V)
    filt = arfa * (logits * m) + logits * (1.0 - m)

    # log_softmax over vocab, then zero steps past max(tgt_lengths)
    mx = jnp.max(filt, axis=-1, keepdims=True)
    sh = filt - mx
    lse = jnp.log(jnp.sum(jnp.exp(sh), axis=-1, keepdims=True))
    out_ref[0] = (sh - lse) * tmask_ref[0]
    attn_ref[0] = attn


# ----------------------------- JAX glue ------------------------------------

def run_gru(x_bte, lengths, h0, p):
    """One fused-GRU pass: hoisted input projection + in-kernel recurrence."""
    x_tbe = jnp.transpose(x_bte, (1, 0, 2))               # time-major
    T, B, E = x_tbe.shape
    gx = linear(x_tbe.reshape(T * B, E), p['w_ih'], p['b_ih']).reshape(T, B, -1)
    out_tbh, h_final = gru_sequence(gx, h0, lengths, p['w_hh'], p['b_hh'])
    return jnp.transpose(out_tbh, (1, 0, 2)), h_final


def reverse_padded(x, lengths):
    """Reverse each sequence inside its valid length (lengths assumed >= 1)."""
    T = x.shape[1]
    t = jnp.arange(T)[None, :]
    idx = jnp.clip(lengths[:, None] - 1 - t, 0, T - 1)
    return jnp.take_along_axis(x, idx[:, :, None], axis=1)


def encoder_forward(params, src, src_lengths, topics):
    B, S = src.shape
    He = params['enc_fwd']['w_hh'].shape[0]
    E = params['embed'].shape[1]
    Hd = params['fc_w'].shape[1]

    emb = params['embed'][src]                            # (B, S, E)
    h0 = jnp.zeros((B, He), jnp.float32)
    out_f, h_f = run_gru(emb, src_lengths, h0, params['enc_fwd'])
    emb_rev = reverse_padded(emb, src_lengths)
    out_b_rev, h_b = run_gru(emb_rev, src_lengths, h0, params['enc_bwd'])
    mask = (jnp.arange(S)[None, :] < src_lengths[:, None]).astype(jnp.float32)
    out_b = reverse_padded(out_b_rev, src_lengths) * mask[:, :, None]
    enc_out = jnp.concatenate([out_f, out_b], axis=-1)    # (B, S, 2He)
    hid_cat = jnp.concatenate([h_f, h_b], axis=-1)        # (B, 2He)

    topic_head, hid = pl.pallas_call(
        _enc_head_kernel,
        out_shape=(jax.ShapeDtypeStruct((B, E), jnp.float32),
                   jax.ShapeDtypeStruct((B, Hd), jnp.float32)),
    )(hid_cat, params['ln_w'], params['fc_w'], params['fc_b'].reshape(1, Hd))

    topic_embed = jnp.concatenate(
        [topic_head[:, None, :], params['embed'][topics]], axis=1)  # (B, K+1, E)
    return enc_out, hid, topic_embed


def decoder_forward(params, ctx, tgt, tgt_lengths, hid, topic_embed, topics,
                    grammar, topic_num):
    B, T = tgt.shape
    Hd = hid.shape[-1]
    V = params['out_w'].shape[1]
    S, C = ctx.shape[1], ctx.shape[2]
    K1, E = topic_embed.shape[1], topic_embed.shape[2]

    y_emb = params['embed'][tgt]                          # (B, T, E)
    out_seq, hid_new = run_gru(y_emb, tgt_lengths, hid, params['dec_gru'])

    # zero decoded steps past max(tgt_lengths) (reference pads with zeros)
    tmask = (jnp.arange(T) < jnp.max(tgt_lengths)).astype(jnp.float32)
    tmask = tmask.reshape(1, T, 1)
    memory = jnp.zeros((V,), jnp.float32).at[grammar].set(1.0).reshape(1, V)
    topics3 = topics.reshape(B, topic_num, 1).astype(jnp.int32)
    hid3 = hid_new.reshape(B, 1, Hd)

    const2 = lambda b: (0, 0)
    const3 = lambda b: (0, 0, 0)

    # TODO(synk): for production vocab sizes, tile the V axis of this fused
    # head kernel (two-pass log_softmax) and set vmem_limit_bytes; at these
    # small shapes a single V block per batch row fits comfortably in VMEM.
    out, attn = pl.pallas_call(
        _decoder_head_kernel,
        out_shape=(jax.ShapeDtypeStruct((B, T, V), jnp.float32),
                   jax.ShapeDtypeStruct((B, T, S), jnp.float32)),
        grid=(B,),
        in_specs=[
            pl.BlockSpec((1, T, Hd), lambda b: (b, 0, 0)),          # out_seq
            pl.BlockSpec((1, S, C), lambda b: (b, 0, 0)),           # ctx
            pl.BlockSpec((1, K1, E), lambda b: (b, 0, 0)),          # topic_embed
            pl.BlockSpec((1, 1, Hd), lambda b: (b, 0, 0)),          # hid_new
            pl.BlockSpec((1, topic_num, 1), lambda b: (b, 0, 0)),   # topics
            pl.BlockSpec((C, Hd), const2),                          # attn_in_w
            pl.BlockSpec((C + Hd, Hd), const2),                     # attn_out_w
            pl.BlockSpec((1, Hd), const2),                          # attn_out_b
            pl.BlockSpec((E, Hd), const2),                          # tattn_in_w
            pl.BlockSpec((E + Hd, Hd), const2),                     # tattn_out_w
            pl.BlockSpec((1, Hd), const2),                          # tattn_out_b
            pl.BlockSpec((Hd, V), const2),                          # out_w
            pl.BlockSpec((1, V), const2),                           # out_b
            pl.BlockSpec((Hd, topic_num), const2),                  # topic_out_w
            pl.BlockSpec((1, topic_num), const2),                   # topic_out_b
            pl.BlockSpec((Hd, 1), const2),                          # arfa_w
            pl.BlockSpec((1, 1), const2),                           # arfa_b
            pl.BlockSpec((1, V), const2),                           # memory
            pl.BlockSpec((1, T, 1), const3),                        # tmask
        ],
        out_specs=(pl.BlockSpec((1, T, V), lambda b: (b, 0, 0)),
                   pl.BlockSpec((1, T, S), lambda b: (b, 0, 0))),
        compiler_params=pltpu.CompilerParams(
            dimension_semantics=("parallel",)),
    )(out_seq, ctx, topic_embed, hid3, topics3,
      params['attn_in_w'], params['attn_out_w'],
      params['attn_out_b'].reshape(1, Hd),
      params['tattn_in_w'], params['tattn_out_w'],
      params['tattn_out_b'].reshape(1, Hd),
      params['out_w'], params['out_b'].reshape(1, V),
      params['topic_out_w'], params['topic_out_b'].reshape(1, topic_num),
      params['arfa_w'], params['arfa_b'].reshape(1, 1),
      memory, tmask)

    return out, hid_new, attn


def _forward(params, src, src_lengths, topics, tgt_raw, tgt_lengths,
             grammar, pad_size, topic_num):
    B = src.shape[0]
    tgt = jnp.concatenate(
        [jnp.ones((B, 1), dtype=jnp.int32), tgt_raw.astype(jnp.int32)],
        axis=-1)[:, :pad_size]
    enc_out, hid, topic_embed = encoder_forward(params, src, src_lengths,
                                                topics)
    output, hid, attn = decoder_forward(params, enc_out, tgt, tgt_lengths,
                                        hid, topic_embed, topics, grammar,
                                        topic_num)
    T = output.shape[1]
    if T < pad_size:
        add = jnp.zeros((B, pad_size - T, output.shape[2]), jnp.float32)
        output = jnp.concatenate([output, add], axis=1)
    return output, attn


_forward_jit = jax.jit(_forward, static_argnames=('pad_size', 'topic_num'))


def seq2seq_forward(params, Queries, Responses, grammar, pad_size, topic_num):
    src, src_lengths, _, topics = Queries
    tgt_raw, tgt_lengths = Responses
    return _forward_jit(params, src, src_lengths, topics, tgt_raw, tgt_lengths,
                        grammar, pad_size=pad_size, topic_num=topic_num)


# ----------------------------- parameters ----------------------------------

def make_params(key, V, E, He, Hd, topic_num):
    keys = jax.random.split(key, 32)
    idx = iter(range(32))

    def w(shape, scale=0.1):
        return scale * jax.random.normal(keys[next(idx)], shape, jnp.float32)

    def gru(in_dim, hid_dim):
        return {'w_ih': w((in_dim, 3 * hid_dim)),
                'w_hh': w((hid_dim, 3 * hid_dim)),
                'b_ih': w((3 * hid_dim,)),
                'b_hh': w((3 * hid_dim,))}

    return {
        'embed': w((V, E)),
        'enc_fwd': gru(E, He),
        'enc_bwd': gru(E, He),
        'fc_w': w((2 * He, Hd)), 'fc_b': w((Hd,)),
        'ln_w': w((2 * He, E)),                      # linear_normal (no bias)
        'dec_gru': gru(E, Hd),
        'attn_in_w': w((2 * He, Hd)),
        'attn_out_w': w((2 * He + Hd, Hd)), 'attn_out_b': w((Hd,)),
        'tattn_in_w': w((E, Hd)),
        'tattn_out_w': w((E + Hd, Hd)), 'tattn_out_b': w((Hd,)),
        'out_w': w((Hd, V)), 'out_b': w((V,)),
        'topic_out_w': w((Hd, topic_num)), 'topic_out_b': w((topic_num,)),
        'arfa_w': w((Hd, 1)), 'arfa_b': w((1,)),
    }


# TODO(synk): `response` (beam search) and `greedy_response` decoding loops are
# host-side control flow and are not translated; only `forward` is implemented.

if __name__ == "__main__":
    # Lane-friendly small sizes (hidden dims multiples of 128).
    V, E, He, Hd = 256, 64, 128, 128
    topic_num, pad_size = 4, 12
    B, S_src, T_tgt = 4, 16, 10

    key = jax.random.PRNGKey(0)
    kp, k1, k2, k3 = jax.random.split(key, 4)
    params = make_params(kp, V, E, He, Hd, topic_num)

    src = jax.random.randint(k1, (B, S_src), 0, V, dtype=jnp.int32)
    tgt = jax.random.randint(k2, (B, T_tgt), 0, V, dtype=jnp.int32)
    topics = jax.random.randint(k3, (B, topic_num), 3, V, dtype=jnp.int32)
    src_lengths = jnp.array([16, 11, 7, 16], dtype=jnp.int32)
    tgt_lengths = jnp.array([9, 4, 11, 6], dtype=jnp.int32)
    grammar = jnp.array([2, 5, 9, 30, 77, 130], dtype=jnp.int32)

    Queries = (src, src_lengths, None, topics)
    Responses = (tgt, tgt_lengths)

    out, attn = seq2seq_forward(params, Queries, Responses, grammar,
                                pad_size, topic_num)
    jax.block_until_ready((out, attn))
    assert out.shape == (B, pad_size, V)
    assert attn.shape == (B, min(T_tgt + 1, pad_size), S_src)
    print("KERNEL_OK")
</pallas_src>

<mosaic_0001>
module attributes {stable_mosaic.version = 11 : i64} {
  func.func @_linear_kernel(%arg0: memref<64x64xf32, #tpu.memory_space<vmem>>, %arg1: memref<64x384xf32, #tpu.memory_space<vmem>>, %arg2: memref<1x384xf32, #tpu.memory_space<vmem>>, %arg3: memref<64x384xf32, #tpu.memory_space<vmem>>) attributes {dimension_semantics = [], scalar_prefetch = 0 : i64, scratch_operands = 0 : i64, tpu.core_type = #tpu.core_type<tc>} {
    %c0 = arith.constant 0 : index
    %c0_0 = arith.constant 0 : index
    %0 = vector.load %arg0[%c0, %c0_0] : memref<64x64xf32, #tpu.memory_space<vmem>>, vector<64x64xf32>
    %1 = arith.truncf %0 : vector<64x64xf32> to vector<64x64xbf16>
    %c0_1 = arith.constant 0 : index
    %c0_2 = arith.constant 0 : index
    %2 = vector.load %arg1[%c0_1, %c0_2] : memref<64x384xf32, #tpu.memory_space<vmem>>, vector<64x384xf32>
    %3 = arith.truncf %2 : vector<64x384xf32> to vector<64x384xbf16>
    %cst = arith.constant dense<0.000000e+00> : vector<64x384xf32>
    %4 = tpu.matmul %1, %3, %cst {dimension_numbers = #tpu.dot_dimension_numbers<[1], [0], [0], [1], [0, 0, 1, 1], [], []>} : vector<64x64xbf16>, vector<64x384xbf16>, vector<64x384xf32> -> vector<64x384xf32>
    %c0_3 = arith.constant 0 : index
    %c0_4 = arith.constant 0 : index
    %5 = vector.load %arg2[%c0_3, %c0_4] : memref<1x384xf32, #tpu.memory_space<vmem>>, vector<1x384xf32>
    %6 = vector.broadcast %5 : vector<1x384xf32> to vector<64x384xf32>
    %7 = arith.addf %4, %6 : vector<64x384xf32>
    %c0_5 = arith.constant 0 : index
    %c0_6 = arith.constant 0 : index
    %8 = vector.load %arg3[%c0_5, %c0_6] : memref<64x384xf32, #tpu.memory_space<vmem>>, vector<64x384xf32>
    tpu.vector_store %arg3[%c0_5, %c0_6], %7 {strides = array<i32>} : memref<64x384xf32, #tpu.memory_space<vmem>>, vector<64x384xf32>,
    return
  }
}

module attributes {stable_mosaic.version = 11 : i64} {
  func.func @_gru_scan_kernel(%arg0: i32, %arg1: memref<1x4x384xf32, #tpu.memory_space<vmem>>, %arg2: memref<4x128xf32, #tpu.memory_space<vmem>>, %arg3: memref<4x1xi32, #tpu.memory_space<vmem>>, %arg4: memref<128x384xf32, #tpu.memory_space<vmem>>, %arg5: memref<1x384xf32, #tpu.memory_space<vmem>>, %arg6: memref<1x4x128xf32, #tpu.memory_space<vmem>>, %arg7: memref<4x128xf32, #tpu.memory_space<vmem>>, %arg8: memref<4x128xf32, #tpu.memory_space<vmem>>) attributes {dimension_semantics = [#tpu.dimension_semantics<arbitrary>], iteration_bounds = array<i64: 16>, scalar_prefetch = 0 : i64, scratch_operands = 1 : i64, tpu.core_type = #tpu.core_type<tc>, window_params = [{transform_indices = @transform_0, window_bounds = array<i64: 1, 4, 384>}, {pipeline_mode = #tpu.pipeline_mode<synchronous>, transform_indices = @transform_1, window_bounds = array<i64: 4, 128>}, {pipeline_mode = #tpu.pipeline_mode<synchronous>, transform_indices = @transform_2, window_bounds = array<i64: 4, 1>}, {pipeline_mode = #tpu.pipeline_mode<synchronous>, transform_indices = @transform_3, window_bounds = array<i64: 128, 384>}, {pipeline_mode = #tpu.pipeline_mode<synchronous>, transform_indices = @transform_4, window_bounds = array<i64: 1, 384>}, {transform_indices = @transform_5, window_bounds = array<i64: 1, 4, 128>}, {pipeline_mode = #tpu.pipeline_mode<synchronous>, transform_indices = @transform_6, window_bounds = array<i64: 4, 128>}]} {
    %c0_i32 = arith.constant 0 : i32
    %0 = arith.cmpi eq, %arg0, %c0_i32 : i32
    %1 = arith.extui %0 : i1 to i32
    %c0_i32_0 = arith.constant 0 : i32
    %2 = arith.cmpi ne, %1, %c0_i32_0 : i32
    scf.if %2 {
      %c0_22 = arith.constant 0 : index
      %c0_23 = arith.constant 0 : index
      %56 = vector.load %arg2[%c0_22, %c0_23] : memref<4x128xf32, #tpu.memory_space<vmem>>, vector<4x128xf32>
      %c0_24 = arith.constant 0 : index
      %c0_25 = arith.constant 0 : index
      %57 = vector.load %arg8[%c0_24, %c0_25] : memref<4x128xf32, #tpu.memory_space<vmem>>, vector<4x128xf32>
      tpu.vector_store %arg8[%c0_24, %c0_25], %56 {strides = array<i32>} : memref<4x128xf32, #tpu.memory_space<vmem>>, vector<4x128xf32>,
    } else {
    }
    %c0 = arith.constant 0 : index
    %c0_1 = arith.constant 0 : index
    %3 = vector.load %arg8[%c0, %c0_1] : memref<4x128xf32, #tpu.memory_space<vmem>>, vector<4x128xf32>
    %c0_2 = arith.constant 0 : index
    %c0_3 = arith.constant 0 : index
    %c0_4 = arith.constant 0 : index
    %4 = vector.load %arg1[%c0_2, %c0_3, %c0_4] : memref<1x4x384xf32, #tpu.memory_space<vmem>>, vector<1x4x384xf32>
    %5 = vector.shape_cast %4 : vector<1x4x384xf32> to vector<4x384xf32>
    %c0_5 = arith.constant 0 : index
    %c0_6 = arith.constant 0 : index
    %6 = vector.load %arg4[%c0_5, %c0_6] : memref<128x384xf32, #tpu.memory_space<vmem>>, vector<128x384xf32>
    %cst = arith.constant dense<0.000000e+00> : vector<4x384xf32>
    %7 = tpu.matmul %3, %6, %cst {dimension_numbers = #tpu.dot_dimension_numbers<[1], [0], [0], [1], [0, 0, 1, 1], [], []>} : vector<4x128xf32>, vector<128x384xf32>, vector<4x384xf32> -> vector<4x384xf32>
    %c0_7 = arith.constant 0 : index
    %c0_8 = arith.constant 0 : index
    %8 = vector.load %arg5[%c0_7, %c0_8] : memref<1x384xf32, #tpu.memory_space<vmem>>, vector<1x384xf32>
    %9 = vector.broadcast %8 : vector<1x384xf32> to vector<4x384xf32>
    %10 = arith.addf %7, %9 : vector<4x384xf32>
    %11 = vector.extract_strided_slice %5 {offsets = [0, 0], sizes = [4, 128], strides = [1, 1]} : vector<4x384xf32> to vector<4x128xf32>
    %12 = vector.extract_strided_slice %10 {offsets = [0, 0], sizes = [4, 128], strides = [1, 1]} : vector<4x384xf32> to vector<4x128xf32>
    %13 = arith.addf %11, %12 : vector<4x128xf32>
    %14 = arith.negf %13 : vector<4x128xf32>
    %15 = math.exp %14 : vector<4x128xf32>
    %cst_9 = arith.constant 1.000000e+00 : f32
    %16 = vector.broadcast %cst_9 : f32 to vector<4x128xf32>
    %17 = arith.addf %16, %15 : vector<4x128xf32>
    %18 = arith.divf %16, %17 : vector<4x128xf32>
    %19 = vector.extract_strided_slice %5 {offsets = [0, 128], sizes = [4, 128], strides = [1, 1]} : vector<4x384xf32> to vector<4x128xf32>
    %20 = vector.extract_strided_slice %10 {offsets = [0, 128], sizes = [4, 128], strides = [1, 1]} : vector<4x384xf32> to vector<4x128xf32>
    %21 = arith.addf %19, %20 : vector<4x128xf32>
    %22 = arith.negf %21 : vector<4x128xf32>
    %23 = math.exp %22 : vector<4x128xf32>
    %cst_10 = arith.constant 1.000000e+00 : f32
    %24 = vector.broadcast %cst_10 : f32 to vector<4x128xf32>
    %25 = arith.addf %24, %23 : vector<4x128xf32>
    %26 = arith.divf %24, %25 : vector<4x128xf32>
    %27 = vector.extract_strided_slice %5 {offsets = [0, 256], sizes = [4, 128], strides = [1, 1]} : vector<4x384xf32> to vector<4x128xf32>
    %28 = vector.extract_strided_slice %10 {offsets = [0, 256], sizes = [4, 128], strides = [1, 1]} : vector<4x384xf32> to vector<4x128xf32>
    %29 = arith.mulf %18, %28 : vector<4x128xf32>
    %30 = arith.addf %27, %29 : vector<4x128xf32>
    %31 = math.tanh %30 : vector<4x128xf32>
    %cst_11 = arith.constant 1.000000e+00 : f32
    %32 = vector.broadcast %cst_11 : f32 to vector<4x128xf32>
    %33 = arith.subf %32, %26 : vector<4x128xf32>
    %34 = arith.mulf %33, %31 : vector<4x128xf32>
    %35 = arith.mulf %26, %3 : vector<4x128xf32>
    %36 = arith.addf %34, %35 : vector<4x128xf32>
    %c0_12 = arith.constant 0 : index
    %c0_13 = arith.constant 0 : index
    %37 = vector.load %arg3[%c0_12, %c0_13] : memref<4x1xi32, #tpu.memory_space<vmem>>, vector<4x1xi32>
    %38 = vector.broadcast %arg0 : i32 to vector<4x1xi32>
    %39 = arith.cmpi sgt, %37, %38 : vector<4x1xi32>
    %40 = arith.extui %39 : vector<4x1xi1> to vector<4x1xi32>
    %41 = arith.sitofp %40 : vector<4x1xi32> to vector<4x1xf32>
    %42 = vector.broadcast %41 : vector<4x1xf32> to vector<4x128xf32>
    %43 = arith.mulf %42, %36 : vector<4x128xf32>
    %cst_14 = arith.constant 1.000000e+00 : f32
    %44 = vector.broadcast %cst_14 : f32 to vector<4x1xf32>
    %45 = arith.subf %44, %41 : vector<4x1xf32>
    %46 = vector.broadcast %45 : vector<4x1xf32> to vector<4x128xf32>
    %47 = arith.mulf %46, %3 : vector<4x128xf32>
    %48 = arith.addf %43, %47 : vector<4x128xf32>
    %c0_15 = arith.constant 0 : index
    %c0_16 = arith.constant 0 : index
    %49 = vector.load %arg8[%c0_15, %c0_16] : memref<4x128xf32, #tpu.memory_space<vmem>>, vector<4x128xf32>
    tpu.vector_store %arg8[%c0_15, %c0_16], %48 {strides = array<i32>} : memref<4x128xf32, #tpu.memory_space<vmem>>, vector<4x128xf32>,
    %50 = vector.broadcast %41 : vector<4x1xf32> to vector<4x128xf32>
    %51 = arith.mulf %50, %36 : vector<4x128xf32>
    %c0_17 = arith.constant 0 : index
    %c0_18 = arith.constant 0 : index
    %c0_19 = arith.constant 0 : index
    %52 = vector.load %arg6[%c0_17, %c0_18, %c0_19] : memref<1x4x128xf32, #tpu.memory_space<vmem>>, vector<1x4x128xf32>
    %53 = vector.shape_cast %52 : vector<1x4x128xf32> to vector<4x128xf32>
    %54 = vector.shape_cast %51 : vector<4x128xf32> to vector<1x4x128xf32>
    tpu.vector_store %arg6[%c0_17, %c0_18, %c0_19], %54 {strides = array<i32>} : memref<1x4x128xf32, #tpu.memory_space<vmem>>, vector<1x4x128xf32>,
    %c0_20 = arith.constant 0 : index
    %c0_21 = arith.constant 0 : index
    %55 = vector.load %arg7[%c0_20, %c0_21] : memref<4x128xf32, #tpu.memory_space<vmem>>, vector<4x128xf32>
    tpu.vector_store %arg7[%c0_20, %c0_21], %48 {strides = array<i32>} : memref<4x128xf32, #tpu.memory_space<vmem>>, vector<4x128xf32>,
    return
  }
  func.func @transform_0(%arg0: i32) -> (i32, i32, i32) {
    %c0_i32 = arith.constant 0 : i32
    %c0_i32_0 = arith.constant 0 : i32
    %c0_i32_1 = arith.constant 0 : i32
    return %arg0, %c0_i32, %c0_i32_0 : i32, i32, i32
  }
  func.func @transform_1(%arg0: i32) -> (i32, i32) {
    %c0_i32 = arith.constant 0 : i32
    %c0_i32_0 = arith.constant 0 : i32
    %c0_i32_1 = arith.constant 0 : i32
    return %c0_i32, %c0_i32_0 : i32, i32
  }
  func.func @transform_2(%arg0: i32) -> (i32, i32) {
    %c0_i32 = arith.constant 0 : i32
    %c0_i32_0 = arith.constant 0 : i32
    %c0_i32_1 = arith.constant 0 : i32
    return %c0_i32, %c0_i32_0 : i32, i32
  }
  func.func @transform_3(%arg0: i32) -> (i32, i32) {
    %c0_i32 = arith.constant 0 : i32
    %c0_i32_0 = arith.constant 0 : i32
    %c0_i32_1 = arith.constant 0 : i32
    return %c0_i32, %c0_i32_0 : i32, i32
  }
  func.func @transform_4(%arg0: i32) -> (i32, i32) {
    %c0_i32 = arith.constant 0 : i32
    %c0_i32_0 = arith.constant 0 : i32
    %c0_i32_1 = arith.constant 0 : i32
    return %c0_i32, %c0_i32_0 : i32, i32
  }
  func.func @transform_5(%arg0: i32) -> (i32, i32, i32) {
    %c0_i32 = arith.constant 0 : i32
    %c0_i32_0 = arith.constant 0 : i32
    %c0_i32_1 = arith.constant 0 : i32
    return %arg0, %c0_i32, %c0_i32_0 : i32, i32, i32
  }
  func.func @transform_6(%arg0: i32) -> (i32, i32) {
    %c0_i32 = arith.constant 0 : i32
    %c0_i32_0 = arith.constant 0 : i32
    %c0_i32_1 = arith.constant 0 : i32
    return %c0_i32, %c0_i32_0 : i32, i32
  }
}

module attributes {stable_mosaic.version = 11 : i64} {
  func.func @_enc_head_kernel(%arg0: memref<4x256xf32, #tpu.memory_space<vmem>>, %arg1: memref<256x64xf32, #tpu.memory_space<vmem>>, %arg2: memref<256x128xf32, #tpu.memory_space<vmem>>, %arg3: memref<1x128xf32, #tpu.memory_space<vmem>>, %arg4: memref<4x64xf32, #tpu.memory_space<vmem>>, %arg5: memref<4x128xf32, #tpu.memory_space<vmem>>) attributes {dimension_semantics = [], scalar_prefetch = 0 : i64, scratch_operands = 0 : i64, tpu.core_type = #tpu.core_type<tc>} {
    %c0 = arith.constant 0 : index
    %c0_0 = arith.constant 0 : index
    %0 = vector.load %arg0[%c0, %c0_0] : memref<4x256xf32, #tpu.memory_space<vmem>>, vector<4x256xf32>
    %1 = arith.truncf %0 : vector<4x256xf32> to vector<4x256xbf16>
    %c0_1 = arith.constant 0 : index
    %c0_2 = arith.constant 0 : index
    %2 = vector.load %arg1[%c0_1, %c0_2] : memref<256x64xf32, #tpu.memory_space<vmem>>, vector<256x64xf32>
    %3 = arith.truncf %2 : vector<256x64xf32> to vector<256x64xbf16>
    %cst = arith.constant dense<0.000000e+00> : vector<4x64xf32>
    %4 = tpu.matmul %1, %3, %cst {dimension_numbers = #tpu.dot_dimension_numbers<[1], [0], [0], [1], [0, 0, 1, 1], [], []>} : vector<4x256xbf16>, vector<256x64xbf16>, vector<4x64xf32> -> vector<4x64xf32>
    %c0_3 = arith.constant 0 : index
    %c0_4 = arith.constant 0 : index
    %5 = vector.load %arg4[%c0_3, %c0_4] : memref<4x64xf32, #tpu.memory_space<vmem>>, vector<4x64xf32>
    tpu.vector_store %arg4[%c0_3, %c0_4], %4 {strides = array<i32>} : memref<4x64xf32, #tpu.memory_space<vmem>>, vector<4x64xf32>,
    %c0_5 = arith.constant 0 : index
    %c0_6 = arith.constant 0 : index
    %6 = vector.load %arg2[%c0_5, %c0_6] : memref<256x128xf32, #tpu.memory_space<vmem>>, vector<256x128xf32>
    %7 = arith.truncf %6 : vector<256x128xf32> to vector<256x128xbf16>
    %cst_7 = arith.constant dense<0.000000e+00> : vector<4x128xf32>
    %8 = tpu.matmul %1, %7, %cst_7 {dimension_numbers = #tpu.dot_dimension_numbers<[1], [0], [0], [1], [0, 0, 1, 1], [], []>} : vector<4x256xbf16>, vector<256x128xbf16>, vector<4x128xf32> -> vector<4x128xf32>
    %c0_8 = arith.constant 0 : index
    %c0_9 = arith.constant 0 : index
    %9 = vector.load %arg3[%c0_8, %c0_9] : memref<1x128xf32, #tpu.memory_space<vmem>>, vector<1x128xf32>
    %10 = vector.broadcast %9 : vector<1x128xf32> to vector<4x128xf32>
    %11 = arith.addf %8, %10 : vector<4x128xf32>
    %12 = math.tanh %11 : vector<4x128xf32>
    %c0_10 = arith.constant 0 : index
    %c0_11 = arith.constant 0 : index
    %13 = vector.load %arg5[%c0_10, %c0_11] : memref<4x128xf32, #tpu.memory_space<vmem>>, vector<4x128xf32>
    tpu.vector_store %arg5[%c0_10, %c0_11], %12 {strides = array<i32>} : memref<4x128xf32, #tpu.memory_space<vmem>>, vector<4x128xf32>,
    return
  }
}

module attributes {stable_mosaic.version = 11 : i64} {
  func.func @_gru_scan_kernel(%arg0: i32, %arg1: memref<1x4x384xf32, #tpu.memory_space<vmem>>, %arg2: memref<4x128xf32, #tpu.memory_space<vmem>>, %arg3: memref<4x1xi32, #tpu.memory_space<vmem>>, %arg4: memref<128x384xf32, #tpu.memory_space<vmem>>, %arg5: memref<1x384xf32, #tpu.memory_space<vmem>>, %arg6: memref<1x4x128xf32, #tpu.memory_space<vmem>>, %arg7: memref<4x128xf32, #tpu.memory_space<vmem>>, %arg8: memref<4x128xf32, #tpu.memory_space<vmem>>) attributes {dimension_semantics = [#tpu.dimension_semantics<arbitrary>], iteration_bounds = array<i64: 11>, scalar_prefetch = 0 : i64, scratch_operands = 1 : i64, tpu.core_type = #tpu.core_type<tc>, window_params = [{transform_indices = @transform_0, window_bounds = array<i64: 1, 4, 384>}, {pipeline_mode = #tpu.pipeline_mode<synchronous>, transform_indices = @transform_1, window_bounds = array<i64: 4, 128>}, {pipeline_mode = #tpu.pipeline_mode<synchronous>, transform_indices = @transform_2, window_bounds = array<i64: 4, 1>}, {pipeline_mode = #tpu.pipeline_mode<synchronous>, transform_indices = @transform_3, window_bounds = array<i64: 128, 384>}, {pipeline_mode = #tpu.pipeline_mode<synchronous>, transform_indices = @transform_4, window_bounds = array<i64: 1, 384>}, {transform_indices = @transform_5, window_bounds = array<i64: 1, 4, 128>}, {pipeline_mode = #tpu.pipeline_mode<synchronous>, transform_indices = @transform_6, window_bounds = array<i64: 4, 128>}]} {
    %c0_i32 = arith.constant 0 : i32
    %0 = arith.cmpi eq, %arg0, %c0_i32 : i32
    %1 = arith.extui %0 : i1 to i32
    %c0_i32_0 = arith.constant 0 : i32
    %2 = arith.cmpi ne, %1, %c0_i32_0 : i32
    scf.if %2 {
      %c0_22 = arith.constant 0 : index
      %c0_23 = arith.constant 0 : index
      %56 = vector.load %arg2[%c0_22, %c0_23] : memref<4x128xf32, #tpu.memory_space<vmem>>, vector<4x128xf32>
      %c0_24 = arith.constant 0 : index
      %c0_25 = arith.constant 0 : index
      %57 = vector.load %arg8[%c0_24, %c0_25] : memref<4x128xf32, #tpu.memory_space<vmem>>, vector<4x128xf32>
      tpu.vector_store %arg8[%c0_24, %c0_25], %56 {strides = array<i32>} : memref<4x128xf32, #tpu.memory_space<vmem>>, vector<4x128xf32>,
    } else {
    }
    %c0 = arith.constant 0 : index
    %c0_1 = arith.constant 0 : index
    %3 = vector.load %arg8[%c0, %c0_1] : memref<4x128xf32, #tpu.memory_space<vmem>>, vector<4x128xf32>
    %c0_2 = arith.constant 0 : index
    %c0_3 = arith.constant 0 : index
    %c0_4 = arith.constant 0 : index
    %4 = vector.load %arg1[%c0_2, %c0_3, %c0_4] : memref<1x4x384xf32, #tpu.memory_space<vmem>>, vector<1x4x384xf32>
    %5 = vector.shape_cast %4 : vector<1x4x384xf32> to vector<4x384xf32>
    %c0_5 = arith.constant 0 : index
    %c0_6 = arith.constant 0 : index
    %6 = vector.load %arg4[%c0_5, %c0_6] : memref<128x384xf32, #tpu.memory_space<vmem>>, vector<128x384xf32>
    %cst = arith.constant dense<0.000000e+00> : vector<4x384xf32>
    %7 = tpu.matmul %3, %6, %cst {dimension_numbers = #tpu.dot_dimension_numbers<[1], [0], [0], [1], [0, 0, 1, 1], [], []>} : vector<4x128xf32>, vector<128x384xf32>, vector<4x384xf32> -> vector<4x384xf32>
    %c0_7 = arith.constant 0 : index
    %c0_8 = arith.constant 0 : index
    %8 = vector.load %arg5[%c0_7, %c0_8] : memref<1x384xf32, #tpu.memory_space<vmem>>, vector<1x384xf32>
    %9 = vector.broadcast %8 : vector<1x384xf32> to vector<4x384xf32>
    %10 = arith.addf %7, %9 : vector<4x384xf32>
    %11 = vector.extract_strided_slice %5 {offsets = [0, 0], sizes = [4, 128], strides = [1, 1]} : vector<4x384xf32> to vector<4x128xf32>
    %12 = vector.extract_strided_slice %10 {offsets = [0, 0], sizes = [4, 128], strides = [1, 1]} : vector<4x384xf32> to vector<4x128xf32>
    %13 = arith.addf %11, %12 : vector<4x128xf32>
    %14 = arith.negf %13 : vector<4x128xf32>
    %15 = math.exp %14 : vector<4x128xf32>
    %cst_9 = arith.constant 1.000000e+00 : f32
    %16 = vector.broadcast %cst_9 : f32 to vector<4x128xf32>
    %17 = arith.addf %16, %15 : vector<4x128xf32>
    %18 = arith.divf %16, %17 : vector<4x128xf32>
    %19 = vector.extract_strided_slice %5 {offsets = [0, 128], sizes = [4, 128], strides = [1, 1]} : vector<4x384xf32> to vector<4x128xf32>
    %20 = vector.extract_strided_slice %10 {offsets = [0, 128], sizes = [4, 128], strides = [1, 1]} : vector<4x384xf32> to vector<4x128xf32>
    %21 = arith.addf %19, %20 : vector<4x128xf32>
    %22 = arith.negf %21 : vector<4x128xf32>
    %23 = math.exp %22 : vector<4x128xf32>
    %cst_10 = arith.constant 1.000000e+00 : f32
    %24 = vector.broadcast %cst_10 : f32 to vector<4x128xf32>
    %25 = arith.addf %24, %23 : vector<4x128xf32>
    %26 = arith.divf %24, %25 : vector<4x128xf32>
    %27 = vector.extract_strided_slice %5 {offsets = [0, 256], sizes = [4, 128], strides = [1, 1]} : vector<4x384xf32> to vector<4x128xf32>
    %28 = vector.extract_strided_slice %10 {offsets = [0, 256], sizes = [4, 128], strides = [1, 1]} : vector<4x384xf32> to vector<4x128xf32>
    %29 = arith.mulf %18, %28 : vector<4x128xf32>
    %30 = arith.addf %27, %29 : vector<4x128xf32>
    %31 = math.tanh %30 : vector<4x128xf32>
    %cst_11 = arith.constant 1.000000e+00 : f32
    %32 = vector.broadcast %cst_11 : f32 to vector<4x128xf32>
    %33 = arith.subf %32, %26 : vector<4x128xf32>
    %34 = arith.mulf %33, %31 : vector<4x128xf32>
    %35 = arith.mulf %26, %3 : vector<4x128xf32>
    %36 = arith.addf %34, %35 : vector<4x128xf32>
    %c0_12 = arith.constant 0 : index
    %c0_13 = arith.constant 0 : index
    %37 = vector.load %arg3[%c0_12, %c0_13] : memref<4x1xi32, #tpu.memory_space<vmem>>, vector<4x1xi32>
    %38 = vector.broadcast %arg0 : i32 to vector<4x1xi32>
    %39 = arith.cmpi sgt, %37, %38 : vector<4x1xi32>
    %40 = arith.extui %39 : vector<4x1xi1> to vector<4x1xi32>
    %41 = arith.sitofp %40 : vector<4x1xi32> to vector<4x1xf32>
    %42 = vector.broadcast %41 : vector<4x1xf32> to vector<4x128xf32>
    %43 = arith.mulf %42, %36 : vector<4x128xf32>
    %cst_14 = arith.constant 1.000000e+00 : f32
    %44 = vector.broadcast %cst_14 : f32 to vector<4x1xf32>
    %45 = arith.subf %44, %41 : vector<4x1xf32>
    %46 = vector.broadcast %45 : vector<4x1xf32> to vector<4x128xf32>
    %47 = arith.mulf %46, %3 : vector<4x128xf32>
    %48 = arith.addf %43, %47 : vector<4x128xf32>
    %c0_15 = arith.constant 0 : index
    %c0_16 = arith.constant 0 : index
    %49 = vector.load %arg8[%c0_15, %c0_16] : memref<4x128xf32, #tpu.memory_space<vmem>>, vector<4x128xf32>
    tpu.vector_store %arg8[%c0_15, %c0_16], %48 {strides = array<i32>} : memref<4x128xf32, #tpu.memory_space<vmem>>, vector<4x128xf32>,
    %50 = vector.broadcast %41 : vector<4x1xf32> to vector<4x128xf32>
    %51 = arith.mulf %50, %36 : vector<4x128xf32>
    %c0_17 = arith.constant 0 : index
    %c0_18 = arith.constant 0 : index
    %c0_19 = arith.constant 0 : index
    %52 = vector.load %arg6[%c0_17, %c0_18, %c0_19] : memref<1x4x128xf32, #tpu.memory_space<vmem>>, vector<1x4x128xf32>
    %53 = vector.shape_cast %52 : vector<1x4x128xf32> to vector<4x128xf32>
    %54 = vector.shape_cast %51 : vector<4x128xf32> to vector<1x4x128xf32>
    tpu.vector_store %arg6[%c0_17, %c0_18, %c0_19], %54 {strides = array<i32>} : memref<1x4x128xf32, #tpu.memory_space<vmem>>, vector<1x4x128xf32>,
    %c0_20 = arith.constant 0 : index
    %c0_21 = arith.constant 0 : index
    %55 = vector.load %arg7[%c0_20, %c0_21] : memref<4x128xf32, #tpu.memory_space<vmem>>, vector<4x128xf32>
    tpu.vector_store %arg7[%c0_20, %c0_21], %48 {strides = array<i32>} : memref<4x128xf32, #tpu.memory_space<vmem>>, vector<4x128xf32>,
    return
  }
  func.func @transform_0(%arg0: i32) -> (i32, i32, i32) {
    %c0_i32 = arith.constant 0 : i32
    %c0_i32_0 = arith.constant 0 : i32
    %c0_i32_1 = arith.constant 0 : i32
    return %arg0, %c0_i32, %c0_i32_0 : i32, i32, i32
  }
  func.func @transform_1(%arg0: i32) -> (i32, i32) {
    %c0_i32 = arith.constant 0 : i32
    %c0_i32_0 = arith.constant 0 : i32
    %c0_i32_1 = arith.constant 0 : i32
    return %c0_i32, %c0_i32_0 : i32, i32
  }
  func.func @transform_2(%arg0: i32) -> (i32, i32) {
    %c0_i32 = arith.constant 0 : i32
    %c0_i32_0 = arith.constant 0 : i32
    %c0_i32_1 = arith.constant 0 : i32
    return %c0_i32, %c0_i32_0 : i32, i32
  }
  func.func @transform_3(%arg0: i32) -> (i32, i32) {
    %c0_i32 = arith.constant 0 : i32
    %c0_i32_0 = arith.constant 0 : i32
    %c0_i32_1 = arith.constant 0 : i32
    return %c0_i32, %c0_i32_0 : i32, i32
  }
  func.func @transform_4(%arg0: i32) -> (i32, i32) {
    %c0_i32 = arith.constant 0 : i32
    %c0_i32_0 = arith.constant 0 : i32
    %c0_i32_1 = arith.constant 0 : i32
    return %c0_i32, %c0_i32_0 : i32, i32
  }
  func.func @transform_5(%arg0: i32) -> (i32, i32, i32) {
    %c0_i32 = arith.constant 0 : i32
    %c0_i32_0 = arith.constant 0 : i32
    %c0_i32_1 = arith.constant 0 : i32
    return %arg0, %c0_i32, %c0_i32_0 : i32, i32, i32
  }
  func.func @transform_6(%arg0: i32) -> (i32, i32) {
    %c0_i32 = arith.constant 0 : i32
    %c0_i32_0 = arith.constant 0 : i32
    %c0_i32_1 = arith.constant 0 : i32
    return %c0_i32, %c0_i32_0 : i32, i32
  }
}

module attributes {stable_mosaic.version = 11 : i64} {
  func.func @_linear_kernel(%arg0: memref<44x64xf32, #tpu.memory_space<vmem>>, %arg1: memref<64x384xf32, #tpu.memory_space<vmem>>, %arg2: memref<1x384xf32, #tpu.memory_space<vmem>>, %arg3: memref<44x384xf32, #tpu.memory_space<vmem>>) attributes {dimension_semantics = [], scalar_prefetch = 0 : i64, scratch_operands = 0 : i64, tpu.core_type = #tpu.core_type<tc>} {
    %c0 = arith.constant 0 : index
    %c0_0 = arith.constant 0 : index
    %0 = vector.load %arg0[%c0, %c0_0] : memref<44x64xf32, #tpu.memory_space<vmem>>, vector<44x64xf32>
    %1 = arith.truncf %0 : vector<44x64xf32> to vector<44x64xbf16>
    %c0_1 = arith.constant 0 : index
    %c0_2 = arith.constant 0 : index
    %2 = vector.load %arg1[%c0_1, %c0_2] : memref<64x384xf32, #tpu.memory_space<vmem>>, vector<64x384xf32>
    %3 = arith.truncf %2 : vector<64x384xf32> to vector<64x384xbf16>
    %cst = arith.constant dense<0.000000e+00> : vector<44x384xf32>
    %4 = tpu.matmul %1, %3, %cst {dimension_numbers = #tpu.dot_dimension_numbers<[1], [0], [0], [1], [0, 0, 1, 1], [], []>} : vector<44x64xbf16>, vector<64x384xbf16>, vector<44x384xf32> -> vector<44x384xf32>
    %c0_3 = arith.constant 0 : index
    %c0_4 = arith.constant 0 : index
    %5 = vector.load %arg2[%c0_3, %c0_4] : memref<1x384xf32, #tpu.memory_space<vmem>>, vector<1x384xf32>
    %6 = vector.broadcast %5 : vector<1x384xf32> to vector<44x384xf32>
    %7 = arith.addf %4, %6 : vector<44x384xf32>
    %c0_5 = arith.constant 0 : index
    %c0_6 = arith.constant 0 : index
    %8 = vector.load %arg3[%c0_5, %c0_6] : memref<44x384xf32, #tpu.memory_space<vmem>>, vector<44x384xf32>
    tpu.vector_store %arg3[%c0_5, %c0_6], %7 {strides = array<i32>} : memref<44x384xf32, #tpu.memory_space<vmem>>, vector<44x384xf32>,
    return
  }
}

module attributes {stable_mosaic.version = 11 : i64} {
  func.func @_decoder_head_kernel(%arg0: i32, %arg1: memref<1x11x128xf32, #tpu.memory_space<vmem>>, %arg2: memref<1x16x256xf32, #tpu.memory_space<vmem>>, %arg3: memref<1x5x64xf32, #tpu.memory_space<vmem>>, %arg4: memref<1x1x128xf32, #tpu.memory_space<vmem>>, %arg5: memref<1x4x1xi32, #tpu.memory_space<vmem>>, %arg6: memref<256x128xf32, #tpu.memory_space<vmem>>, %arg7: memref<384x128xf32, #tpu.memory_space<vmem>>, %arg8: memref<1x128xf32, #tpu.memory_space<vmem>>, %arg9: memref<64x128xf32, #tpu.memory_space<vmem>>, %arg10: memref<192x128xf32, #tpu.memory_space<vmem>>, %arg11: memref<1x128xf32, #tpu.memory_space<vmem>>, %arg12: memref<128x256xf32, #tpu.memory_space<vmem>>, %arg13: memref<1x256xf32, #tpu.memory_space<vmem>>, %arg14: memref<128x4xf32, #tpu.memory_space<vmem>>, %arg15: memref<1x4xf32, #tpu.memory_space<vmem>>, %arg16: memref<128x1xf32, #tpu.memory_space<vmem>>, %arg17: memref<1x1xf32, #tpu.memory_space<vmem>>, %arg18: memref<1x256xf32, #tpu.memory_space<vmem>>, %arg19: memref<1x11x1xf32, #tpu.memory_space<vmem>>, %arg20: memref<1x11x256xf32, #tpu.memory_space<vmem>>, %arg21: memref<1x11x16xf32, #tpu.memory_space<vmem>>) attributes {dimension_semantics = [#tpu.dimension_semantics<parallel>], iteration_bounds = array<i64: 4>, scalar_prefetch = 0 : i64, scratch_operands = 0 : i64, tpu.core_type = #tpu.core_type<tc>, window_params = [{transform_indices = @transform_0, window_bounds = array<i64: 1, 11, 128>}, {transform_indices = @transform_1, window_bounds = array<i64: 1, 16, 256>}, {transform_indices = @transform_2, window_bounds = array<i64: 1, 5, 64>}, {transform_indices = @transform_3, window_bounds = array<i64: 1, 1, 128>}, {transform_indices = @transform_4, window_bounds = array<i64: 1, 4, 1>}, {pipeline_mode = #tpu.pipeline_mode<synchronous>, transform_indices = @transform_5, window_bounds = array<i64: 256, 128>}, {pipeline_mode = #tpu.pipeline_mode<synchronous>, transform_indices = @transform_6, window_bounds = array<i64: 384, 128>}, {pipeline_mode = #tpu.pipeline_mode<synchronous>, transform_indices = @transform_7, window_bounds = array<i64: 1, 128>}, {pipeline_mode = #tpu.pipeline_mode<synchronous>, transform_indices = @transform_8, window_bounds = array<i64: 64, 128>}, {pipeline_mode = #tpu.pipeline_mode<synchronous>, transform_indices = @transform_9, window_bounds = array<i64: 192, 128>}, {pipeline_mode = #tpu.pipeline_mode<synchronous>, transform_indices = @transform_10, window_bounds = array<i64: 1, 128>}, {pipeline_mode = #tpu.pipeline_mode<synchronous>, transform_indices = @transform_11, window_bounds = array<i64: 128, 256>}, {pipeline_mode = #tpu.pipeline_mode<synchronous>, transform_indices = @transform_12, window_bounds = array<i64: 1, 256>}, {pipeline_mode = #tpu.pipeline_mode<synchronous>, transform_indices = @transform_13, window_bounds = array<i64: 128, 4>}, {pipeline_mode = #tpu.pipeline_mode<synchronous>, transform_indices = @transform_14, window_bounds = array<i64: 1, 4>}, {pipeline_mode = #tpu.pipeline_mode<synchronous>, transform_indices = @transform_15, window_bounds = array<i64: 128, 1>}, {pipeline_mode = #tpu.pipeline_mode<synchronous>, transform_indices = @transform_16, window_bounds = array<i64: 1, 1>}, {pipeline_mode = #tpu.pipeline_mode<synchronous>, transform_indices = @transform_17, window_bounds = array<i64: 1, 256>}, {pipeline_mode = #tpu.pipeline_mode<synchronous>, transform_indices = @transform_18, window_bounds = array<i64: 1, 11, 1>}, {transform_indices = @transform_19, window_bounds = array<i64: 1, 11, 256>}, {transform_indices = @transform_20, window_bounds = array<i64: 1, 11, 16>}]} {
    %c0 = arith.constant 0 : index
    %c0_0 = arith.constant 0 : index
    %c0_1 = arith.constant 0 : index
    %0 = vector.load %arg1[%c0, %c0_0, %c0_1] : memref<1x11x128xf32, #tpu.memory_space<vmem>>, vector<1x11x128xf32>
    %1 = vector.shape_cast %0 : vector<1x11x128xf32> to vector<11x128xf32>
    %2 = arith.truncf %1 : vector<11x128xf32> to vector<11x128xbf16>
    %c0_2 = arith.constant 0 : index
    %c0_3 = arith.constant 0 : index
    %c0_4 = arith.constant 0 : index
    %3 = vector.load %arg2[%c0_2, %c0_3, %c0_4] : memref<1x16x256xf32, #tpu.memory_space<vmem>>, vector<1x16x256xf32>
    %4 = vector.shape_cast %3 : vector<1x16x256xf32> to vector<16x256xf32>
    %5 = arith.truncf %4 : vector<16x256xf32> to vector<16x256xbf16>
    %c0_5 = arith.constant 0 : index
    %c0_6 = arith.constant 0 : index
    %6 = vector.load %arg6[%c0_5, %c0_6] : memref<256x128xf32, #tpu.memory_space<vmem>>, vector<256x128xf32>
    %7 = arith.truncf %6 : vector<256x128xf32> to vector<256x128xbf16>
    %cst = arith.constant dense<0.000000e+00> : vector<16x128xf32>
    %8 = tpu.matmul %5, %7, %cst {dimension_numbers = #tpu.dot_dimension_numbers<[1], [0], [0], [1], [0, 0, 1, 1], [], []>} : vector<16x256xbf16>, vector<256x128xbf16>, vector<16x128xf32> -> vector<16x128xf32>
    %9 = arith.truncf %8 : vector<16x128xf32> to vector<16x128xbf16>
    %cst_7 = arith.constant dense<0.000000e+00> : vector<11x16xf32>
    %10 = tpu.matmul %2, %9, %cst_7 {dimension_numbers = #tpu.dot_dimension_numbers<[1], [1], [0], [0], [0, 0, 1, 0], [], []>} : vector<11x128xbf16>, vector<16x128xbf16>, vector<11x16xf32> -> vector<11x16xf32>
    %cst_8 = arith.constant dense<0xFF800000> : vector<11xf32>
    %11 = vector.multi_reduction <maximumf>, %10, %cst_8 [1] : vector<11x16xf32> to vector<11xf32>
    %12 = vector.shape_cast %11 : vector<11xf32> to vector<11x1xf32>
    %13 = vector.broadcast %12 : vector<11x1xf32> to vector<11x16xf32>
    %14 = arith.subf %10, %13 : vector<11x16xf32>
    %15 = math.exp %14 : vector<11x16xf32>
    %cst_9 = arith.constant dense<0.000000e+00> : vector<11xf32>
    %16 = vector.multi_reduction <add>, %15, %cst_9 [1] : vector<11x16xf32> to vector<11xf32>
    %17 = vector.shape_cast %16 : vector<11xf32> to vector<11x1xf32>
    %18 = tpu.reciprocal %17 {approx = true} : vector<11x1xf32> -> vector<11x1xf32>
    %19 = vector.broadcast %18 : vector<11x1xf32> to vector<11x16xf32>
    %20 = arith.mulf %15, %19 : vector<11x16xf32>
    %21 = arith.truncf %20 : vector<11x16xf32> to vector<11x16xbf16>
    %cst_10 = arith.constant dense<0.000000e+00> : vector<11x256xf32>
    %22 = tpu.matmul %21, %5, %cst_10 {dimension_numbers = #tpu.dot_dimension_numbers<[1], [0], [0], [1], [0, 0, 1, 1], [], []>} : vector<11x16xbf16>, vector<16x256xbf16>, vector<11x256xf32> -> vector<11x256xf32>
    %23 = arith.truncf %22 : vector<11x256xf32> to vector<11x256xbf16>
    %c0_11 = arith.constant 0 : index
    %c0_12 = arith.constant 0 : index
    %24 = vector.load %arg7[%c0_11, %c0_12] : memref<384x128xf32, #tpu.memory_space<vmem>>, vector<256x128xf32>
    %25 = arith.truncf %24 : vector<256x128xf32> to vector<256x128xbf16>
    %cst_13 = arith.constant dense<0.000000e+00> : vector<11x128xf32>
    %26 = tpu.matmul %23, %25, %cst_13 {dimension_numbers = #tpu.dot_dimension_numbers<[1], [0], [0], [1], [0, 0, 1, 1], [], []>} : vector<11x256xbf16>, vector<256x128xbf16>, vector<11x128xf32> -> vector<11x128xf32>
    %c256 = arith.constant 256 : index
    %c0_14 = arith.constant 0 : index
    %27 = vector.load %arg7[%c256, %c0_14] : memref<384x128xf32, #tpu.memory_space<vmem>>, vector<128x128xf32>
    %28 = arith.truncf %27 : vector<128x128xf32> to vector<128x128xbf16>
    %cst_15 = arith.constant dense<0.000000e+00> : vector<11x128xf32>
    %29 = tpu.matmul %2, %28, %cst_15 {dimension_numbers = #tpu.dot_dimension_numbers<[1], [0], [0], [1], [0, 0, 1, 1], [], []>} : vector<11x128xbf16>, vector<128x128xbf16>, vector<11x128xf32> -> vector<11x128xf32>
    %30 = arith.addf %26, %29 : vector<11x128xf32>
    %c0_16 = arith.constant 0 : index
    %c0_17 = arith.constant 0 : index
    %31 = vector.load %arg8[%c0_16, %c0_17] : memref<1x128xf32, #tpu.memory_space<vmem>>, vector<1x128xf32>
    %32 = vector.broadcast %31 : vector<1x128xf32> to vector<11x128xf32>
    %33 = arith.addf %30, %32 : vector<11x128xf32>
    %34 = math.tanh %33 : vector<11x128xf32>
    %c0_18 = arith.constant 0 : index
    %c0_19 = arith.constant 0 : index
    %c0_20 = arith.constant 0 : index
    %35 = vector.load %arg3[%c0_18, %c0_19, %c0_20] : memref<1x5x64xf32, #tpu.memory_space<vmem>>, vector<1x5x64xf32>
    %36 = vector.shape_cast %35 : vector<1x5x64xf32> to vector<5x64xf32>
    %37 = arith.truncf %36 : vector<5x64xf32> to vector<5x64xbf16>
    %c0_21 = arith.constant 0 : index
    %c0_22 = arith.constant 0 : index
    %38 = vector.load %arg9[%c0_21, %c0_22] : memref<64x128xf32, #tpu.memory_space<vmem>>, vector<64x128xf32>
    %39 = arith.truncf %38 : vector<64x128xf32> to vector<64x128xbf16>
    %cst_23 = arith.constant dense<0.000000e+00> : vector<5x128xf32>
    %40 = tpu.matmul %37, %39, %cst_23 {dimension_numbers = #tpu.dot_dimension_numbers<[1], [0], [0], [1], [0, 0, 1, 1], [], []>} : vector<5x64xbf16>, vector<64x128xbf16>, vector<5x128xf32> -> vector<5x128xf32>
    %41 = arith.truncf %40 : vector<5x128xf32> to vector<5x128xbf16>
    %cst_24 = arith.constant dense<0.000000e+00> : vector<11x5xf32>
    %42 = tpu.matmul %2, %41, %cst_24 {dimension_numbers = #tpu.dot_dimension_numbers<[1], [1], [0], [0], [0, 0, 1, 0], [], []>} : vector<11x128xbf16>, vector<5x128xbf16>, vector<11x5xf32> -> vector<11x5xf32>
    %cst_25 = arith.constant dense<0xFF800000> : vector<11xf32>
    %43 = vector.multi_reduction <maximumf>, %42, %cst_25 [1] : vector<11x5xf32> to vector<11xf32>
    %44 = vector.shape_cast %43 : vector<11xf32> to vector<11x1xf32>
    %45 = vector.broadcast %44 : vector<11x1xf32> to vector<11x5xf32>
    %46 = arith.subf %42, %45 : vector<11x5xf32>
    %47 = math.exp %46 : vector<11x5xf32>
    %cst_26 = arith.constant dense<0.000000e+00> : vector<11xf32>
    %48 = vector.multi_reduction <add>, %47, %cst_26 [1] : vector<11x5xf32> to vector<11xf32>
    %49 = vector.shape_cast %48 : vector<11xf32> to vector<11x1xf32>
    %50 = tpu.reciprocal %49 {approx = true} : vector<11x1xf32> -> vector<11x1xf32>
    %51 = vector.broadcast %50 : vector<11x1xf32> to vector<11x5xf32>
    %52 = arith.mulf %47, %51 : vector<11x5xf32>
    %53 = arith.truncf %52 : vector<11x5xf32> to vector<11x5xbf16>
    %cst_27 = arith.constant dense<0.000000e+00> : vector<11x64xf32>
    %54 = tpu.matmul %53, %37, %cst_27 {dimension_numbers = #tpu.dot_dimension_numbers<[1], [0], [0], [1], [0, 0, 1, 1], [], []>} : vector<11x5xbf16>, vector<5x64xbf16>, vector<11x64xf32> -> vector<11x64xf32>
    %55 = arith.truncf %54 : vector<11x64xf32> to vector<11x64xbf16>
    %c0_28 = arith.constant 0 : index
    %c0_29 = arith.constant 0 : index
    %56 = vector.load %arg10[%c0_28, %c0_29] : memref<192x128xf32, #tpu.memory_space<vmem>>, vector<64x128xf32>
    %57 = arith.truncf %56 : vector<64x128xf32> to vector<64x128xbf16>
    %cst_30 = arith.constant dense<0.000000e+00> : vector<11x128xf32>
    %58 = tpu.matmul %55, %57, %cst_30 {dimension_numbers = #tpu.dot_dimension_numbers<[1], [0], [0], [1], [0, 0, 1, 1], [], []>} : vector<11x64xbf16>, vector<64x128xbf16>, vector<11x128xf32> -> vector<11x128xf32>
    %c64 = arith.constant 64 : index
    %c0_31 = arith.constant 0 : index
    %59 = vector.load %arg10[%c64, %c0_31] : memref<192x128xf32, #tpu.memory_space<vmem>>, vector<128x128xf32>
    %60 = arith.truncf %59 : vector<128x128xf32> to vector<128x128xbf16>
    %cst_32 = arith.constant dense<0.000000e+00> : vector<11x128xf32>
    %61 = tpu.matmul %2, %60, %cst_32 {dimension_numbers = #tpu.dot_dimension_numbers<[1], [0], [0], [1], [0, 0, 1, 1], [], []>} : vector<11x128xbf16>, vector<128x128xbf16>, vector<11x128xf32> -> vector<11x128xf32>
    %62 = arith.addf %58, %61 : vector<11x128xf32>
    %c0_33 = arith.constant 0 : index
    %c0_34 = arith.constant 0 : index
    %63 = vector.load %arg11[%c0_33, %c0_34] : memref<1x128xf32, #tpu.memory_space<vmem>>, vector<1x128xf32>
    %64 = vector.broadcast %63 : vector<1x128xf32> to vector<11x128xf32>
    %65 = arith.addf %62, %64 : vector<11x128xf32>
    %66 = math.tanh %65 : vector<11x128xf32>
    %67 = arith.truncf %34 : vector<11x128xf32> to vector<11x128xbf16>
    %c0_35 = arith.constant 0 : index
    %c0_36 = arith.constant 0 : index
    %68 = vector.load %arg12[%c0_35, %c0_36] : memref<128x256xf32, #tpu.memory_space<vmem>>, vector<128x256xf32>
    %69 = arith.truncf %68 : vector<128x256xf32> to vector<128x256xbf16>
    %cst_37 = arith.constant dense<0.000000e+00> : vector<11x256xf32>
    %70 = tpu.matmul %67, %69, %cst_37 {dimension_numbers = #tpu.dot_dimension_numbers<[1], [0], [0], [1], [0, 0, 1, 1], [], []>} : vector<11x128xbf16>, vector<128x256xbf16>, vector<11x256xf32> -> vector<11x256xf32>
    %c0_38 = arith.constant 0 : index
    %c0_39 = arith.constant 0 : index
    %71 = vector.load %arg13[%c0_38, %c0_39] : memref<1x256xf32, #tpu.memory_space<vmem>>, vector<1x256xf32>
    %72 = vector.broadcast %71 : vector<1x256xf32> to vector<11x256xf32>
    %73 = arith.addf %70, %72 : vector<11x256xf32>
    %74 = arith.truncf %66 : vector<11x128xf32> to vector<11x128xbf16>
    %c0_40 = arith.constant 0 : index
    %c0_41 = arith.constant 0 : index
    %75 = vector.load %arg14[%c0_40, %c0_41] : memref<128x4xf32, #tpu.memory_space<vmem>>, vector<128x4xf32>
    %76 = arith.truncf %75 : vector<128x4xf32> to vector<128x4xbf16>
    %cst_42 = arith.constant dense<0.000000e+00> : vector<11x4xf32>
    %77 = tpu.matmul %74, %76, %cst_42 {dimension_numbers = #tpu.dot_dimension_numbers<[1], [0], [0], [1], [0, 0, 1, 1], [], []>} : vector<11x128xbf16>, vector<128x4xbf16>, vector<11x4xf32> -> vector<11x4xf32>
    %c0_43 = arith.constant 0 : index
    %c0_44 = arith.constant 0 : index
    %78 = vector.load %arg15[%c0_43, %c0_44] : memref<1x4xf32, #tpu.memory_space<vmem>>, vector<1x4xf32>
    %79 = vector.broadcast %78 : vector<1x4xf32> to vector<11x4xf32>
    %80 = arith.addf %77, %79 : vector<11x4xf32>
    %81 = tpu.iota {dimensions = array<i32: 1>} : vector<4x256xi32>
    %c0_45 = arith.constant 0 : index
    %c0_46 = arith.constant 0 : index
    %c0_47 = arith.constant 0 : index
    %82 = vector.load %arg5[%c0_45, %c0_46, %c0_47] : memref<1x4x1xi32, #tpu.memory_space<vmem>>, vector<1x4x1xi32>
    %83 = vector.shape_cast %82 : vector<1x4x1xi32> to vector<4x1xi32>
    %84 = vector.broadcast %83 : vector<4x1xi32> to vector<4x256xi32>
    %85 = arith.cmpi eq, %81, %84 : vector<4x256xi32>
    %86 = arith.extui %85 : vector<4x256xi1> to vector<4x256xi32>
    %87 = arith.sitofp %86 : vector<4x256xi32> to vector<4x256xf32>
    %cst_48 = arith.constant dense<0.000000e+00> : vector<11x256xf32>
    %88 = tpu.matmul %80, %87, %cst_48 {dimension_numbers = #tpu.dot_dimension_numbers<[1], [0], [0], [1], [0, 0, 1, 1], [], []>} : vector<11x4xf32>, vector<4x256xf32>, vector<11x256xf32> -> vector<11x256xf32>
    %89 = arith.addf %73, %88 : vector<11x256xf32>
    %c0_49 = arith.constant 0 : index
    %c0_50 = arith.constant 0 : index
    %c0_51 = arith.constant 0 : index
    %90 = vector.load %arg4[%c0_49, %c0_50, %c0_51] : memref<1x1x128xf32, #tpu.memory_space<vmem>>, vector<1x1x128xf32>
    %91 = vector.shape_cast %90 : vector<1x1x128xf32> to vector<1x128xf32>
    %92 = arith.truncf %91 : vector<1x128xf32> to vector<1x128xbf16>
    %c0_52 = arith.constant 0 : index
    %c0_53 = arith.constant 0 : index
    %93 = vector.load %arg16[%c0_52, %c0_53] : memref<128x1xf32, #tpu.memory_space<vmem>>, vector<128x1xf32>
    %94 = arith.truncf %93 : vector<128x1xf32> to vector<128x1xbf16>
    %cst_54 = arith.constant dense<0.000000e+00> : vector<1x1xf32>
    %95 = tpu.matmul %92, %94, %cst_54 {dimension_numbers = #tpu.dot_dimension_numbers<[1], [0], [0], [1], [0, 0, 1, 1], [], []>} : vector<1x128xbf16>, vector<128x1xbf16>, vector<1x1xf32> -> vector<1x1xf32>
    %c0_55 = arith.constant 0 : index
    %c0_56 = arith.constant 0 : index
    %96 = vector.load %arg17[%c0_55, %c0_56] : memref<1x1xf32, #tpu.memory_space<vmem>>, vector<1x1xf32>
    %97 = arith.addf %95, %96 : vector<1x1xf32>
    %98 = arith.negf %97 : vector<1x1xf32>
    %99 = math.exp %98 : vector<1x1xf32>
    %cst_57 = arith.constant 1.000000e+00 : f32
    %100 = vector.broadcast %cst_57 : f32 to vector<1x1xf32>
    %101 = arith.addf %100, %99 : vector<1x1xf32>
    %102 = arith.divf %100, %101 : vector<1x1xf32>
    %c0_58 = arith.constant 0 : index
    %c0_59 = arith.constant 0 : index
    %103 = vector.load %arg18[%c0_58, %c0_59] : memref<1x256xf32, #tpu.memory_space<vmem>>, vector<1x256xf32>
    %104 = vector.broadcast %103 : vector<1x256xf32> to vector<11x256xf32>
    %105 = arith.mulf %89, %104 : vector<11x256xf32>
    %106 = vector.broadcast %102 : vector<1x1xf32> to vector<11x256xf32>
    %107 = arith.mulf %106, %105 : vector<11x256xf32>
    %cst_60 = arith.constant 1.000000e+00 : f32
    %108 = vector.broadcast %cst_60 : f32 to vector<1x256xf32>
    %109 = arith.subf %108, %103 : vector<1x256xf32>
    %110 = vector.broadcast %109 : vector<1x256xf32> to vector<11x256xf32>
    %111 = arith.mulf %89, %110 : vector<11x256xf32>
    %112 = arith.addf %107, %111 : vector<11x256xf32>
    %cst_61 = arith.constant dense<0xFF800000> : vector<11xf32>
    %113 = vector.multi_reduction <maximumf>, %112, %cst_61 [1] : vector<11x256xf32> to vector<11xf32>
    %114 = vector.shape_cast %113 : vector<11xf32> to vector<11x1xf32>
    %115 = vector.broadcast %114 : vector<11x1xf32> to vector<11x256xf32>
    %116 = arith.subf %112, %115 : vector<11x256xf32>
    %117 = math.exp %116 : vector<11x256xf32>
    %cst_62 = arith.constant dense<0.000000e+00> : vector<11xf32>
    %118 = vector.multi_reduction <add>, %117, %cst_62 [1] : vector<11x256xf32> to vector<11xf32>
    %119 = vector.shape_cast %118 : vector<11xf32> to vector<11x1xf32>
    %120 = math.log %119 : vector<11x1xf32>
    %121 = vector.broadcast %120 : vector<11x1xf32> to vector<11x256xf32>
    %122 = arith.subf %116, %121 : vector<11x256xf32>
    %c0_63 = arith.constant 0 : index
    %c0_64 = arith.constant 0 : index
    %c0_65 = arith.constant 0 : index
    %123 = vector.load %arg19[%c0_63, %c0_64, %c0_65] : memref<1x11x1xf32, #tpu.memory_space<vmem>>, vector<1x11x1xf32>
    %124 = vector.shape_cast %123 : vector<1x11x1xf32> to vector<11x1xf32>
    %125 = vector.broadcast %124 : vector<11x1xf32> to vector<11x256xf32>
    %126 = arith.mulf %122, %125 : vector<11x256xf32>
    %c0_66 = arith.constant 0 : index
    %c0_67 = arith.constant 0 : index
    %c0_68 = arith.constant 0 : index
    %127 = vector.load %arg20[%c0_66, %c0_67, %c0_68] : memref<1x11x256xf32, #tpu.memory_space<vmem>>, vector<1x11x256xf32>
    %128 = vector.shape_cast %127 : vector<1x11x256xf32> to vector<11x256xf32>
    %129 = vector.shape_cast %126 : vector<11x256xf32> to vector<1x11x256xf32>
    tpu.vector_store %arg20[%c0_66, %c0_67, %c0_68], %129 {strides = array<i32>} : memref<1x11x256xf32, #tpu.memory_space<vmem>>, vector<1x11x256xf32>,
    %c0_69 = arith.constant 0 : index
    %c0_70 = arith.constant 0 : index
    %c0_71 = arith.constant 0 : index
    %130 = vector.load %arg21[%c0_69, %c0_70, %c0_71] : memref<1x11x16xf32, #tpu.memory_space<vmem>>, vector<1x11x16xf32>
    %131 = vector.shape_cast %130 : vector<1x11x16xf32> to vector<11x16xf32>
    %132 = vector.shape_cast %20 : vector<11x16xf32> to vector<1x11x16xf32>
    tpu.vector_store %arg21[%c0_69, %c0_70, %c0_71], %132 {strides = array<i32>} : memref<1x11x16xf32, #tpu.memory_space<vmem>>, vector<1x11x16xf32>,
    return
  }
  func.func @transform_0(%arg0: i32) -> (i32, i32, i32) {
    %c0_i32 = arith.constant 0 : i32
    %c0_i32_0 = arith.constant 0 : i32
    %c0_i32_1 = arith.constant 0 : i32
    return %arg0, %c0_i32, %c0_i32_0 : i32, i32, i32
  }
  func.func @transform_1(%arg0: i32) -> (i32, i32, i32) {
    %c0_i32 = arith.constant 0 : i32
    %c0_i32_0 = arith.constant 0 : i32
    %c0_i32_1 = arith.constant 0 : i32
    return %arg0, %c0_i32, %c0_i32_0 : i32, i32, i32
  }
  func.func @transform_2(%arg0: i32) -> (i32, i32, i32) {
    %c0_i32 = arith.constant 0 : i32
    %c0_i32_0 = arith.constant 0 : i32
    %c0_i32_1 = arith.constant 0 : i32
    return %arg0, %c0_i32, %c0_i32_0 : i32, i32, i32
  }
  func.func @transform_3(%arg0: i32) -> (i32, i32, i32) {
    %c0_i32 = arith.constant 0 : i32
    %c0_i32_0 = arith.constant 0 : i32
    %c0_i32_1 = arith.constant 0 : i32
    return %arg0, %c0_i32, %c0_i32_0 : i32, i32, i32
  }
  func.func @transform_4(%arg0: i32) -> (i32, i32, i32) {
    %c0_i32 = arith.constant 0 : i32
    %c0_i32_0 = arith.constant 0 : i32
    %c0_i32_1 = arith.constant 0 : i32
    return %arg0, %c0_i32, %c0_i32_0 : i32, i32, i32
  }
  func.func @transform_5(%arg0: i32) -> (i32, i32) {
    %c0_i32 = arith.constant 0 : i32
    %c0_i32_0 = arith.constant 0 : i32
    %c0_i32_1 = arith.constant 0 : i32
    return %c0_i32, %c0_i32_0 : i32, i32
  }
  func.func @transform_6(%arg0: i32) -> (i32, i32) {
    %c0_i32 = arith.constant 0 : i32
    %c0_i32_0 = arith.constant 0 : i32
    %c0_i32_1 = arith.constant 0 : i32
    return %c0_i32, %c0_i32_0 : i32, i32
  }
  func.func @transform_7(%arg0: i32) -> (i32, i32) {
    %c0_i32 = arith.constant 0 : i32
    %c0_i32_0 = arith.constant 0 : i32
    %c0_i32_1 = arith.constant 0 : i32
    return %c0_i32, %c0_i32_0 : i32, i32
  }
  func.func @transform_8(%arg0: i32) -> (i32, i32) {
    %c0_i32 = arith.constant 0 : i32
    %c0_i32_0 = arith.constant 0 : i32
    %c0_i32_1 = arith.constant 0 : i32
    return %c0_i32, %c0_i32_0 : i32, i32
  }
  func.func @transform_9(%arg0: i32) -> (i32, i32) {
    %c0_i32 = arith.constant 0 : i32
    %c0_i32_0 = arith.constant 0 : i32
    %c0_i32_1 = arith.constant 0 : i32
    return %c0_i32, %c0_i32_0 : i32, i32
  }
  func.func @transform_10(%arg0: i32) -> (i32, i32) {
    %c0_i32 = arith.constant 0 : i32
    %c0_i32_0 = arith.constant 0 : i32
    %c0_i32_1 = arith.constant 0 : i32
    return %c0_i32, %c0_i32_0 : i32, i32
  }
  func.func @transform_11(%arg0: i32) -> (i32, i32) {
    %c0_i32 = arith.constant 0 : i32
    %c0_i32_0 = arith.constant 0 : i32
    %c0_i32_1 = arith.constant 0 : i32
    return %c0_i32, %c0_i32_0 : i32, i32
  }
  func.func @transform_12(%arg0: i32) -> (i32, i32) {
    %c0_i32 = arith.constant 0 : i32
    %c0_i32_0 = arith.constant 0 : i32
    %c0_i32_1 = arith.constant 0 : i32
    return %c0_i32, %c0_i32_0 : i32, i32
  }
  func.func @transform_13(%arg0: i32) -> (i32, i32) {
    %c0_i32 = arith.constant 0 : i32
    %c0_i32_0 = arith.constant 0 : i32
    %c0_i32_1 = arith.constant 0 : i32
    return %c0_i32, %c0_i32_0 : i32, i32
  }
  func.func @transform_14(%arg0: i32) -> (i32, i32) {
    %c0_i32 = arith.constant 0 : i32
    %c0_i32_0 = arith.constant 0 : i32
    %c0_i32_1 = arith.constant 0 : i32
    return %c0_i32, %c0_i32_0 : i32, i32
  }
  func.func @transform_15(%arg0: i32) -> (i32, i32) {
    %c0_i32 = arith.constant 0 : i32
    %c0_i32_0 = arith.constant 0 : i32
    %c0_i32_1 = arith.constant 0 : i32
    return %c0_i32, %c0_i32_0 : i32, i32
  }
  func.func @transform_16(%arg0: i32) -> (i32, i32) {
    %c0_i32 = arith.constant 0 : i32
    %c0_i32_0 = arith.constant 0 : i32
    %c0_i32_1 = arith.constant 0 : i32
    return %c0_i32, %c0_i32_0 : i32, i32
  }
  func.func @transform_17(%arg0: i32) -> (i32, i32) {
    %c0_i32 = arith.constant 0 : i32
    %c0_i32_0 = arith.constant 0 : i32
    %c0_i32_1 = arith.constant 0 : i32
    return %c0_i32, %c0_i32_0 : i32, i32
  }
  func.func @transform_18(%arg0: i32) -> (i32, i32, i32) {
    %c0_i32 = arith.constant 0 : i32
    %c0_i32_0 = arith.constant 0 : i32
    %c0_i32_1 = arith.constant 0 : i32
    %c0_i32_2 = arith.constant 0 : i32
    return %c0_i32, %c0_i32_0, %c0_i32_1 : i32, i32, i32
  }
  func.func @transform_19(%arg0: i32) -> (i32, i32, i32) {
    %c0_i32 = arith.constant 0 : i32
    %c0_i32_0 = arith.constant 0 : i32
    %c0_i32_1 = arith.constant 0 : i32
    return %arg0, %c0_i32, %c0_i32_0 : i32, i32, i32
  }
  func.func @transform_20(%arg0: i32) -> (i32, i32, i32) {
    %c0_i32 = arith.constant 0 : i32
    %c0_i32_0 = arith.constant 0 : i32
    %c0_i32_1 = arith.constant 0 : i32
    return %arg0, %c0_i32, %c0_i32_0 : i32, i32, i32
  }
}

</mosaic_0001>

<llo_original>
// kernel: _forward.10
$region0: #{_forward.10}
  #allocation0 [shape = 'u32[]', space=smem, size = 0x4, offset = 0x4, fixed_abs, tag = 'smem constant byte address 0x4 - core index']
  #allocation1 [shape = 'u32[144,128]{1,0:T(1,128)}', space=vmem, size = 0x12000, scoped, tag = 'internal scratch']
  %s0 = inlined_call_operand.vmem [shape: f32[64,64], index: 0, kind: input, shape index: {}]
  %s1 = inlined_call_operand.vmem [shape: f32[64,384], index: 1, kind: input, shape index: {}]
  %s2 = inlined_call_operand.vmem [shape: f32[1,384], index: 2, kind: input, shape index: {}]
  %s3 = inlined_call_operand.vmem [shape: f32[64,384], index: 3, kind: output, shape index: {}]
  %s4 = sld [smem:[#allocation0]]
  $region22: #{_forward.10} parent=0
    _
  %s6 = ssub.s32 1, %s4
  %s7 = scalar_select 0, %s6, %s4
  // Predicated region
  $region2: #{_forward.10} parent=0 // pred_check
    _
  $region3: #{_forward.10} parent=0 // pred_check_branch
    %9 = sbr.rel (0) target = $region5
  $region4: #{_forward.10} parent=0 // pred_region
    _
  $region5: #{_forward.10} parent=0 // pred_fallthru
    _
  // Predicated region
  $region6: #{_forward.10} parent=0 // pred_check
    _
  $region7: #{_forward.10} parent=0 // pred_check_branch
    %11 = sbr.rel (0) target = $region9
  $region8: #{_forward.10} parent=0 // pred_region
    _
  $region9: #{_forward.10} parent=0 // pred_fallthru
    _
  // Predicated region
  $region10: #{_forward.10} parent=0 // pred_check
    _
  $region11: #{_forward.10} parent=0 // pred_check_branch
    %13 = sbr.rel (0) target = $region13
  $region12: #{_forward.10} parent=0 // pred_region
    _
  $region13: #{_forward.10} parent=0 // pred_fallthru
    _
  %v15 = vld [vmem:[%s0] sm:$0xff]
  %v16 = vld [vmem:[%s0 + $0x8] sm:$0xff]
  %v17 = vld [vmem:[%s0 + $0x10] sm:$0xff]
  %v18 = vld [vmem:[%s0 + $0x18] sm:$0xff]
  %v19 = vld [vmem:[%s0 + $0x20] sm:$0xff]
  %v20 = vld [vmem:[%s0 + $0x28] sm:$0xff]
  %v21 = vld [vmem:[%s0 + $0x30] sm:$0xff]
  %v22 = vld [vmem:[%s0 + $0x38] sm:$0xff]
  %v23 = vpack.c.bf16 %v16, %v15
  %v24 = vpack.c.bf16 %v18, %v17
  %v25 = vpack.c.bf16 %v20, %v19
  %v26 = vpack.c.bf16 %v22, %v21
  %v27 = vld [vmem:[%s1] sm:$0xff]
  %v28 = vld [vmem:[%s1 + $0x8] sm:$0xff]
  %v29 = vld [vmem:[%s1 + $0x10] sm:$0xff]
  %v30 = vld [vmem:[%s1 + $0x18] sm:$0xff]
  %v31 = vld [vmem:[%s1 + $0x20] sm:$0xff]
  %v32 = vld [vmem:[%s1 + $0x28] sm:$0xff]
  %v33 = vld [vmem:[%s1 + $0x30] sm:$0xff]
  %v34 = vld [vmem:[%s1 + $0x38] sm:$0xff]
  %v35 = vld [vmem:[%s1 + $0x40] sm:$0xff]
  %v36 = vld [vmem:[%s1 + $0x48] sm:$0xff]
  %v37 = vld [vmem:[%s1 + $0x50] sm:$0xff]
  %v38 = vld [vmem:[%s1 + $0x58] sm:$0xff]
  %v39 = vld [vmem:[%s1 + $0x60] sm:$0xff]
  %v40 = vld [vmem:[%s1 + $0x68] sm:$0xff]
  %v41 = vld [vmem:[%s1 + $0x70] sm:$0xff]
  %v42 = vld [vmem:[%s1 + $0x78] sm:$0xff]
  %v43 = vld [vmem:[%s1 + $0x80] sm:$0xff]
  %v44 = vld [vmem:[%s1 + $0x88] sm:$0xff]
  %v45 = vld [vmem:[%s1 + $0x90] sm:$0xff]
  %v46 = vld [vmem:[%s1 + $0x98] sm:$0xff]
  %v47 = vld [vmem:[%s1 + $0xa0] sm:$0xff]
  %v48 = vld [vmem:[%s1 + $0xa8] sm:$0xff]
  %v49 = vld [vmem:[%s1 + $0xb0] sm:$0xff]
  %v50 = vld [vmem:[%s1 + $0xb8] sm:$0xff]
  %v51 = vpack.c.bf16 %v30, %v27
  %v52 = vpack.c.bf16 %v31, %v28
  %v53 = vpack.c.bf16 %v32, %v29
  %v54 = vpack.c.bf16 %v36, %v33
  %v55 = vpack.c.bf16 %v37, %v34
  %v56 = vpack.c.bf16 %v38, %v35
  %v57 = vpack.c.bf16 %v42, %v39
  %v58 = vpack.c.bf16 %v43, %v40
  %v59 = vpack.c.bf16 %v44, %v41
  %v60 = vpack.c.bf16 %v48, %v45
  %v61 = vpack.c.bf16 %v49, %v46
  %v62 = vpack.c.bf16 %v50, %v47
  %v63 = vld [vmem:[%s2] sm:$0x7]
  %v65 = vlaneseq
  %v66 = vshrl.u32 %v65, 7
  %v67 = vsub.s32 0, %v66
  %v68 = vrot.slane %v63, %v67
  %v69 = vlaneseq
  %v70 = vshrl.u32 %v69, 7
  %v71 = vsub.s32 1, %v70
  %v72 = vrot.slane %v63, %v71
  %v73 = vlaneseq
  %v74 = vshrl.u32 %v73, 7
  %v75 = vsub.s32 2, %v74
  %v76 = vrot.slane %v63, %v75
  %vm80 = vcmask 523264
  %v82 = vsel %vm80, %v23, 0
  %v85 = vsel %vm80, %v24, 0
  %v88 = vsel %vm80, %v25, 0
  %v91 = vsel %vm80, %v26, 0
  %93 = vmatprep.subr.bf16.mxu0 0
  %94 = vmatpush1.bf16.msra.mxu0 0
  %95 = vmatprep.subr.bf16.mxu0 0
  %96 = vmatpush1.bf16.msra.mxu0 0
  %97 = vmatprep.subr.bf16.mxu0 0
  %98 = vmatpush1.bf16.msra.mxu0 0
  %99 = vmatprep.subr.bf16.mxu0 0
  %100 = vmatpush1.bf16.msra.mxu0 0
  %101 = vmatprep.subr.bf16.mxu0 %v61
  %102 = vmatpush1.bf16.msra.mxu0 %v60
  %103 = vmatprep.subr.bf16.mxu0 %v58
  %104 = vmatpush1.bf16.msra.mxu0 %v57
  %105 = vmatprep.subr.bf16.mxu0 %v55
  %106 = vmatpush1.bf16.msra.mxu0 %v54
  %107 = vmatprep.subr.bf16.mxu0 %v52
  %108 = vmatpush1.bf16.msra.mxu0 %v51
  %109 = vmatprep.subr.bf16.mxu0 0
  %110 = vmatpush2.bf16.msra.mxu0 0
  %111 = vmatprep.subr.bf16.mxu0 0
  %112 = vmatpush2.bf16.msra.mxu0 0
  %113 = vmatprep.subr.bf16.mxu0 0
  %114 = vmatpush2.bf16.msra.mxu0 0
  %115 = vmatprep.subr.bf16.mxu0 0
  %116 = vmatpush2.bf16.msra.mxu0 0
  %117 = vmatprep.subr.bf16.mxu0 0
  %118 = vmatpush2.bf16.msra.mxu0 0
  %119 = vmatprep.subr.bf16.mxu0 0
  %120 = vmatpush2.bf16.msra.mxu0 0
  %121 = vmatprep.subr.bf16.mxu0 0
  %122 = vmatpush2.bf16.msra.mxu0 0
  %123 = vmatprep.subr.bf16.mxu0 0
  %124 = vmatpush2.bf16.msra.mxu0 0
  %125 = vmatprep.mubr.bf16.mxu0 0
  %126 = vmatmul.mubr.bf16.gmra.mxu0 %v82
  %v127 = vpop.f32.mrf.mxu0
  %v128 = vadd.f32 %v68, %v127
  %v129 = vpop.f32.mrf.mxu0
  %v130 = vadd.f32 %v72, %v129
  %v131 = vpop.f32.mrf.mxu0
  %v132 = vadd.f32 %v68, %v131
  %v133 = vpop.f32.mrf.mxu0
  %v134 = vadd.f32 %v72, %v133
  %135 = vmatprep.mubr.bf16.mxu0 0
  %136 = vmatmul.mubr.bf16.gmra.mxu0 %v85
  %v137 = vpop.f32.mrf.mxu0
  %v138 = vadd.f32 %v68, %v137
  %v139 = vpop.f32.mrf.mxu0
  %v140 = vadd.f32 %v72, %v139
  %v141 = vpop.f32.mrf.mxu0
  %v142 = vadd.f32 %v68, %v141
  %v143 = vpop.f32.mrf.mxu0
  %v144 = vadd.f32 %v72, %v143
  %145 = vmatprep.mubr.bf16.mxu0 0
  %146 = vmatmul.mubr.bf16.gmra.mxu0 %v88
  %v147 = vpop.f32.mrf.mxu0
  %v148 = vadd.f32 %v68, %v147
  %v149 = vpop.f32.mrf.mxu0
  %v150 = vadd.f32 %v72, %v149
  %v151 = vpop.f32.mrf.mxu0
  %v152 = vadd.f32 %v68, %v151
  %v153 = vpop.f32.mrf.mxu0
  %v154 = vadd.f32 %v72, %v153
  %155 = vmatprep.mubr.bf16.mxu0 0
  %156 = vmatmul.mubr.bf16.gmra.mxu0 %v91
  %v157 = vpop.f32.mrf.mxu0
  %v158 = vadd.f32 %v68, %v157
  %v159 = vpop.f32.mrf.mxu0
  %v160 = vadd.f32 %v72, %v159
  %v161 = vpop.f32.mrf.mxu0
  %v162 = vadd.f32 %v68, %v161
  %v163 = vpop.f32.mrf.mxu0
  %v164 = vadd.f32 %v72, %v163
  %165 = vdwg.mxu0
  %166 = vmatprep.subr.bf16.mxu0 0
  %167 = vmatpush1.bf16.msra.mxu0 0
  %168 = vmatprep.subr.bf16.mxu0 0
  %169 = vmatpush1.bf16.msra.mxu0 0
  %170 = vmatprep.subr.bf16.mxu0 0
  %171 = vmatpush1.bf16.msra.mxu0 0
  %172 = vmatprep.subr.bf16.mxu0 0
  %173 = vmatpush1.bf16.msra.mxu0 0
  %174 = vmatprep.subr.bf16.mxu0 0
  %175 = vmatpush1.bf16.msra.mxu0 %v62
  %176 = vmatprep.subr.bf16.mxu0 0
  %177 = vmatpush1.bf16.msra.mxu0 %v59
  %178 = vmatprep.subr.bf16.mxu0 0
  %179 = vmatpush1.bf16.msra.mxu0 %v56
  %180 = vmatprep.subr.bf16.mxu0 0
  %181 = vmatpush1.bf16.msra.mxu0 %v53
  %182 = vmatprep.subr.bf16.mxu0 0
  %183 = vmatpush2.bf16.msra.mxu0 0
  %184 = vmatprep.subr.bf16.mxu0 0
  %185 = vmatpush2.bf16.msra.mxu0 0
  %186 = vmatprep.subr.bf16.mxu0 0
  %187 = vmatpush2.bf16.msra.mxu0 0
  %188 = vmatprep.subr.bf16.mxu0 0
  %189 = vmatpush2.bf16.msra.mxu0 0
  %190 = vmatprep.subr.bf16.mxu0 0
  %191 = vmatpush2.bf16.msra.mxu0 0
  %192 = vmatprep.subr.bf16.mxu0 0
  %193 = vmatpush2.bf16.msra.mxu0 0
  %194 = vmatprep.subr.bf16.mxu0 0
  %195 = vmatpush2.bf16.msra.mxu0 0
  %196 = vmatprep.subr.bf16.mxu0 0
  %197 = vmatpush2.bf16.msra.mxu0 0
  %198 = vmatprep.mubr.bf16.mxu0 0
  %199 = vmatmul.mubr.bf16.gmra.mxu0 %v82
  %v200 = vpop.f32.mrf.mxu0
  %v201 = vadd.f32 %v76, %v200
  %v202 = vpop.f32.mrf.mxu0
  %v203 = vpop.f32.mrf.mxu0
  %v204 = vadd.f32 %v76, %v203
  %v205 = vpop.f32.mrf.mxu0
  %206 = vmatprep.mubr.bf16.mxu0 0
  %207 = vmatmul.mubr.bf16.gmra.mxu0 %v85
  %v208 = vpop.f32.mrf.mxu0
  %v209 = vadd.f32 %v76, %v208
  %v210 = vpop.f32.mrf.mxu0
  %v211 = vpop.f32.mrf.mxu0
  %v212 = vadd.f32 %v76, %v211
  %v213 = vpop.f32.mrf.mxu0
  %214 = vmatprep.mubr.bf16.mxu0 0
  %215 = vmatmul.mubr.bf16.gmra.mxu0 %v88
  %v216 = vpop.f32.mrf.mxu0
  %v217 = vadd.f32 %v76, %v216
  %v218 = vpop.f32.mrf.mxu0
  %v219 = vpop.f32.mrf.mxu0
  %v220 = vadd.f32 %v76, %v219
  %v221 = vpop.f32.mrf.mxu0
  %222 = vmatprep.mubr.bf16.mxu0 0
  %223 = vmatmul.mubr.bf16.gmra.mxu0 %v91
  %v224 = vpop.f32.mrf.mxu0
  %v225 = vadd.f32 %v76, %v224
  %v226 = vpop.f32.mrf.mxu0
  %v227 = vpop.f32.mrf.mxu0
  %v228 = vadd.f32 %v76, %v227
  %v229 = vpop.f32.mrf.mxu0
  %230 = vdwg.mxu0
  %231 = vst [vmem:[%s3] sm:$0xff] %v128
  %232 = vst [vmem:[%s3 + $0x8] sm:$0xff] %v130
  %233 = vst [vmem:[%s3 + $0x10] sm:$0xff] %v201
  %234 = vst [vmem:[%s3 + $0x18] sm:$0xff] %v132
  %235 = vst [vmem:[%s3 + $0x20] sm:$0xff] %v134
  %236 = vst [vmem:[%s3 + $0x28] sm:$0xff] %v204
  %237 = vst [vmem:[%s3 + $0x30] sm:$0xff] %v138
  %238 = vst [vmem:[%s3 + $0x38] sm:$0xff] %v140
  %239 = vst [vmem:[%s3 + $0x40] sm:$0xff] %v209
  %240 = vst [vmem:[%s3 + $0x48] sm:$0xff] %v142
  %241 = vst [vmem:[%s3 + $0x50] sm:$0xff] %v144
  %242 = vst [vmem:[%s3 + $0x58] sm:$0xff] %v212
  %243 = vst [vmem:[%s3 + $0x60] sm:$0xff] %v148
  %244 = vst [vmem:[%s3 + $0x68] sm:$0xff] %v150
  %245 = vst [vmem:[%s3 + $0x70] sm:$0xff] %v217
  %246 = vst [vmem:[%s3 + $0x78] sm:$0xff] %v152
  %247 = vst [vmem:[%s3 + $0x80] sm:$0xff] %v154
  %248 = vst [vmem:[%s3 + $0x88] sm:$0xff] %v220
  %249 = vst [vmem:[%s3 + $0x90] sm:$0xff] %v158
  %250 = vst [vmem:[%s3 + $0x98] sm:$0xff] %v160
  %251 = vst [vmem:[%s3 + $0xa0] sm:$0xff] %v225
  %252 = vst [vmem:[%s3 + $0xa8] sm:$0xff] %v162
  %253 = vst [vmem:[%s3 + $0xb0] sm:$0xff] %v164
  %254 = vst [vmem:[%s3 + $0xb8] sm:$0xff] %v228
  // Predicated region
  $region14: #{_forward.10} parent=0 // pred_check
    _
  $region15: #{_forward.10} parent=0 // pred_check_branch
    %256 = sbr.rel (0) target = $region17
  $region16: #{_forward.10} parent=0 // pred_region
    _
  $region17: #{_forward.10} parent=0 // pred_fallthru
    _
  // Predicated region
  $region18: #{_forward.10} parent=0 // pred_check
    _
  $region19: #{_forward.10} parent=0 // pred_check_branch
    %258 = sbr.rel (0) target = $region21
  $region20: #{_forward.10} parent=0 // pred_region
    _
  $region21: #{_forward.10} parent=0 // pred_fallthru
    _

// kernel: _forward.11
$region0: #{_forward.11}
  #allocation0 [shape = 'u32[]', space=smem, size = 0x4, offset = 0x4, fixed_abs, tag = 'smem constant byte address 0x4 - core index']
  #allocation1 [shape = 'u32[144,128]{1,0:T(1,128)}', space=vmem, size = 0x12000, scoped, tag = 'internal scratch']
  #allocation2 [shape = 'f32[4,128]{1,0:T(4,128)}', space=vmem, size = 0x800, scoped, tag = 'scratch operand']
  %s0 = inlined_call_operand.vmem [shape: f32[16,4,384], index: 0, kind: input, shape index: {}]
  %s1 = inlined_call_operand.vmem [shape: f32[4,128], index: 1, kind: input, shape index: {}]
  %s2 = inlined_call_operand.vmem [shape: s32[4,1], index: 2, kind: input, shape index: {}]
  %s3 = inlined_call_operand.vmem [shape: f32[128,384], index: 3, kind: input, shape index: {}]
  %s4 = inlined_call_operand.vmem [shape: f32[1,384], index: 4, kind: input, shape index: {}]
  %s5 = inlined_call_operand.vmem [shape: f32[16,4,128], index: 5, kind: output, shape index: {0}]
  %s6 = inlined_call_operand.vmem [shape: f32[4,128], index: 6, kind: output, shape index: {1}]
  %7 = xla_tuple %s5, %s6
  %s8 = sld [smem:[#allocation0]]
  $region65: #{_forward.11} parent=0
    _
  %s10 = ssub.s32 1, %s8
  %s11 = scalar_select 0, %s10, %s8
  loop: start=0, step=1, limit=18
  $region2: #{_forward.11} parent=0 // loop_pre_header
    _
  $region3: #{_forward.11} parent=0 // loop_header
    %s13 = sphi 0, %s17
    %p14 = scmp.ge.s32.totalorder %s13, 18
    %s23 = sphi 0, %s25
    %s26 = sphi 0, %s23
    %s27 = sphi 0, %s26
    %s43 = sphi 0, %s27
    %s47 = sphi 0, %s47
    %s49 = sphi 0, %s47
    %s50 = sphi 0, %s49
    %s64 = sphi 0, %s50
    %s68 = sphi 0, %s68
    %s70 = sphi 0, %s68
    %s71 = sphi 0, %s70
    %s85 = sphi 0, %s71
    %s89 = sphi 0, %s89
    %s91 = sphi 0, %s89
    %s92 = sphi 0, %s91
    %s106 = sphi 0, %s92
    %s110 = sphi 0, %s110
    %s112 = sphi 0, %s110
    %s113 = sphi 0, %s112
    %s127 = sphi 0, %s113
    %s133 = sphi 0, %s135
    %s136 = sphi 0, %s133
    %s137 = sphi 0, %s136
    %s153 = sphi 0, %s137
    %s157 = sphi 0, %s157
    %s159 = sphi 0, %s157
    %s160 = sphi 0, %s159
    %s174 = sphi 0, %s160
  $region4: #{_forward.11} parent=0 // loop_header_branch
    %16 = sbr.rel (%p14) target = $region8
  $region5: #{_forward.11} parent=0 // loop_body
    %s18 = ssub.s32 %s13, 1
    %s19 = ssub.s32 %s13, 2
    %s20 = sadd.s32 %s13, 1
    %s21 = ssub.s32 %s13, %s20
    %p22 = scmp.eq.s32.totalorder %s21, 0
    %s24 = sadd.s32 %s23, 1
    %s25 = scalar_select %p22, %s23, %s24
    %p28 = pneg %p22
    %p29 = scmp.eq.s32.totalorder %s13, 15
    %p30 = por %p28, %p29
    %p31 = scmp.ne.s32.totalorder %s23, %s26
    %p32 = scmp.eq.s32.totalorder %s13, 0
    %p33 = por %p31, %p32
    %p34 = scmp.ne.s32.totalorder %s23, %s26
    %p35 = scmp.eq.s32.totalorder %s18, 15
    %p36 = por %p34, %p35
    %p37 = scmp.ne.s32.totalorder %s26, %s27
    %p38 = scmp.eq.s32.totalorder %s18, 0
    %p39 = por %p37, %p38
    %p40 = scmp.ne.s32.totalorder %s26, %s27
    %p41 = scmp.eq.s32.totalorder %s19, 15
    %p42 = por %p40, %p41
    %p44 = scmp.ne.s32.totalorder %s27, %s43
    %p45 = scmp.eq.s32.totalorder %s19, 0
    %p46 = por %p44, %p45
    %s48 = sadd.s32 %s47, 1
    %p51 = scmp.eq.s32.totalorder %s13, 15
    %p52 = scmp.ne.s32.totalorder %s47, %s49
    %p53 = scmp.eq.s32.totalorder %s13, 0
    %p54 = por %p52, %p53
    %p55 = scmp.ne.s32.totalorder %s47, %s49
    %p56 = scmp.eq.s32.totalorder %s18, 15
    %p57 = por %p55, %p56
    %p58 = scmp.ne.s32.totalorder %s49, %s50
    %p59 = scmp.eq.s32.totalorder %s18, 0
    %p60 = por %p58, %p59
    %p61 = scmp.ne.s32.totalorder %s49, %s50
    %p62 = scmp.eq.s32.totalorder %s19, 15
    %p63 = por %p61, %p62
    %p65 = scmp.ne.s32.totalorder %s50, %s64
    %p66 = scmp.eq.s32.totalorder %s19, 0
    %p67 = por %p65, %p66
    %s69 = sadd.s32 %s68, 1
    %p72 = scmp.eq.s32.totalorder %s13, 15
    %p73 = scmp.ne.s32.totalorder %s68, %s70
    %p74 = scmp.eq.s32.totalorder %s13, 0
    %p75 = por %p73, %p74
    %p76 = scmp.ne.s32.totalorder %s68, %s70
    %p77 = scmp.eq.s32.totalorder %s18, 15
    %p78 = por %p76, %p77
    %p79 = scmp.ne.s32.totalorder %s70, %s71
    %p80 = scmp.eq.s32.totalorder %s18, 0
    %p81 = por %p79, %p80
    %p82 = scmp.ne.s32.totalorder %s70, %s71
    %p83 = scmp.eq.s32.totalorder %s19, 15
    %p84 = por %p82, %p83
    %p86 = scmp.ne.s32.totalorder %s71, %s85
    %p87 = scmp.eq.s32.totalorder %s19, 0
    %p88 = por %p86, %p87
    %s90 = sadd.s32 %s89, 1
    %p93 = scmp.eq.s32.totalorder %s13, 15
    %p94 = scmp.ne.s32.totalorder %s89, %s91
    %p95 = scmp.eq.s32.totalorder %s13, 0
    %p96 = por %p94, %p95
    %p97 = scmp.ne.s32.totalorder %s89, %s91
    %p98 = scmp.eq.s32.totalorder %s18, 15
    %p99 = por %p97, %p98
    %p100 = scmp.ne.s32.totalorder %s91, %s92
    %p101 = scmp.eq.s32.totalorder %s18, 0
    %p102 = por %p100, %p101
    %p103 = scmp.ne.s32.totalorder %s91, %s92
    %p104 = scmp.eq.s32.totalorder %s19, 15
    %p105 = por %p103, %p104
    %p107 = scmp.ne.s32.totalorder %s92, %s106
    %p108 = scmp.eq.s32.totalorder %s19, 0
    %p109 = por %p107, %p108
    %s111 = sadd.s32 %s110, 1
    %p114 = scmp.eq.s32.totalorder %s13, 15
    %p115 = scmp.ne.s32.totalorder %s110, %s112
    %p116 = scmp.eq.s32.totalorder %s13, 0
    %p117 = por %p115, %p116
    %p118 = scmp.ne.s32.totalorder %s110, %s112
    %p119 = scmp.eq.s32.totalorder %s18, 15
    %p120 = por %p118, %p119
    %p121 = scmp.ne.s32.totalorder %s112, %s113
    %p122 = scmp.eq.s32.totalorder %s18, 0
    %p123 = por %p121, %p122
    %p124 = scmp.ne.s32.totalorder %s112, %s113
    %p125 = scmp.eq.s32.totalorder %s19, 15
    %p126 = por %p124, %p125
    %p128 = scmp.ne.s32.totalorder %s113, %s127
    %p129 = scmp.eq.s32.totalorder %s19, 0
    %p130 = por %p128, %p129
    %s131 = ssub.s32 %s13, %s20
    %p132 = scmp.eq.s32.totalorder %s131, 0
    %s134 = sadd.s32 %s133, 1
    %s135 = scalar_select %p132, %s133, %s134
    %p138 = pneg %p132
    %p139 = scmp.eq.s32.totalorder %s13, 15
    %p140 = por %p138, %p139
    %p141 = scmp.ne.s32.totalorder %s133, %s136
    %p142 = scmp.eq.s32.totalorder %s13, 0
    %p143 = por %p141, %p142
    %p144 = scmp.ne.s32.totalorder %s133, %s136
    %p145 = scmp.eq.s32.totalorder %s18, 15
    %p146 = por %p144, %p145
    %p147 = scmp.ne.s32.totalorder %s136, %s137
    %p148 = scmp.eq.s32.totalorder %s18, 0
    %p149 = por %p147, %p148
    %p150 = scmp.ne.s32.totalorder %s136, %s137
    %p151 = scmp.eq.s32.totalorder %s19, 15
    %p152 = por %p150, %p151
    %p154 = scmp.ne.s32.totalorder %s137, %s153
    %p155 = scmp.eq.s32.totalorder %s19, 0
    %p156 = por %p154, %p155
    %s158 = sadd.s32 %s157, 1
    %p161 = scmp.eq.s32.totalorder %s13, 15
    %p162 = scmp.ne.s32.totalorder %s157, %s159
    %p163 = scmp.eq.s32.totalorder %s13, 0
    %p164 = por %p162, %p163
    %p165 = scmp.ne.s32.totalorder %s157, %s159
    %p166 = scmp.eq.s32.totalorder %s18, 15
    %p167 = por %p165, %p166
    %p168 = scmp.ne.s32.totalorder %s159, %s160
    %p169 = scmp.eq.s32.totalorder %s18, 0
    %p170 = por %p168, %p169
    %p171 = scmp.ne.s32.totalorder %s159, %s160
    %p172 = scmp.eq.s32.totalorder %s19, 15
    %p173 = por %p171, %p172
    %p175 = scmp.ne.s32.totalorder %s160, %s174
    %p176 = scmp.eq.s32.totalorder %s19, 0
    %p177 = por %p175, %p176
    %p178 = scmp.le.s32.totalorder 1, %s13
    %p179 = scmp.lt.s32.totalorder %s13, 17
    %p180 = pnand %p178, %p179
    %p181 = pneg %p180
    // Predicated region
    $region9: #{_forward.11} parent=5 // pred_check
      _
    $region10: #{_forward.11} parent=5 // pred_check_branch
      %183 = sbr.rel (%p180) target = $region12
    $region11: #{_forward.11} parent=5 // pred_region
      %s184 = ssub.s32 %s13, 1
      // Predicated region
      $region13: #{_forward.11} parent=11 // pred_check
        %p185 = pneg %p60
      $region14: #{_forward.11} parent=11 // pred_check_branch
        %187 = sbr.rel (%p185) target = $region16
      $region15: #{_forward.11} parent=11 // pred_region
        _
      $region16: #{_forward.11} parent=11 // pred_fallthru
        _
      // Predicated region
      $region17: #{_forward.11} parent=11 // pred_check
        %p188 = pneg %p81
      $region18: #{_forward.11} parent=11 // pred_check_branch
        %190 = sbr.rel (%p188) target = $region20
      $region19: #{_forward.11} parent=11 // pred_region
        _
      $region20: #{_forward.11} parent=11 // pred_fallthru
        _
      // Predicated region
      $region21: #{_forward.11} parent=11 // pred_check
        %p191 = pneg %p102
      $region22: #{_forward.11} parent=11 // pred_check_branch
        %193 = sbr.rel (%p191) target = $region24
      $region23: #{_forward.11} parent=11 // pred_region
        _
      $region24: #{_forward.11} parent=11 // pred_fallthru
        _
      // Predicated region
      $region25: #{_forward.11} parent=11 // pred_check
        %p194 = pneg %p123
      $region26: #{_forward.11} parent=11 // pred_check_branch
        %196 = sbr.rel (%p194) target = $region28
      $region27: #{_forward.11} parent=11 // pred_region
        _
      $region28: #{_forward.11} parent=11 // pred_fallthru
        _
    $region12: #{_forward.11} parent=5 // pred_fallthru
      _
    %p197 = scmp.lt.s32.totalorder %s13, 16
    // Predicated region
    $region29: #{_forward.11} parent=5 // pred_check
      %p198 = pneg %p197
    $region30: #{_forward.11} parent=5 // pred_check_branch
      %200 = sbr.rel (%p198) target = $region32
    $region31: #{_forward.11} parent=5 // pred_region
      // Predicated region
      $region33: #{_forward.11} parent=31 // pred_check
        %p201 = pneg %p33
      $region34: #{_forward.11} parent=31 // pred_check_branch
        %203 = sbr.rel (%p201) target = $region36
      $region35: #{_forward.11} parent=31 // pred_region
        %p204 = scmp.lt.s32.totalorder %s13, 15
        %s205 = scalar_select %p204, %s13, 15
        %s206 = smul.addr %s205, 3
        %s207 = smul.addr %s206, 4
        %s208 = scalar_lea.vmem %s0, %s207
      $region36: #{_forward.11} parent=31 // pred_fallthru
        _
    $region32: #{_forward.11} parent=5 // pred_fallthru
      _
    %p209 = scmp.le.s32.totalorder 1, %s13
    %p210 = scmp.lt.s32.totalorder %s13, 17
    %p211 = pnand %p209, %p210
    %p212 = pneg %p211
    // Predicated region
    $region37: #{_forward.11} parent=5 // pred_check
      _
    $region38: #{_forward.11} parent=5 // pred_check_branch
      %214 = sbr.rel (%p211) target = $region40
    $region39: #{_forward.11} parent=5 // pred_region
      %s215 = ssub.s32 %s13, 1
      %p216 = scmp.lt.s32.totalorder %s18, 15
      %s217 = scalar_select %p216, %s18, 15
      %s218 = smul.addr %s217, 3
      %s219 = smul.addr %s218, 4
      %s220 = scalar_lea.vmem %s0, %s219
      %p221 = pneg %p39
      %p222 = pneg %p36
      %p223 = pneg %p60
      %p224 = pneg %p57
      %p225 = pneg %p81
      %p226 = pneg %p78
      %p227 = pneg %p102
      %p228 = pneg %p99
      %p229 = pneg %p123
      %p230 = pneg %p120
      %p231 = pneg %p149
      %p232 = pneg %p146
      %p233 = scmp.lt.s32.totalorder %s18, 15
      %s234 = scalar_select %p233, %s18, 15
      %s235 = smul.addr %s234, 4
      %s236 = scalar_lea.vmem %s5, %s235
      %p237 = pneg %p170
      %p238 = pneg %p167
      %p239 = scmp.lt.s32.totalorder %s18, 15
      %s240 = scalar_select %p239, %s18, 15
      %s241 = smul.addr %s240, 3
      %s242 = smul.addr %s241, 4
      %s243 = scalar_lea.vmem %s0, %s242
      %p244 = scmp.lt.s32.totalorder %s18, 15
      %s245 = scalar_select %p244, %s18, 15
      %s246 = smul.addr %s245, 4
      %s247 = scalar_lea.vmem %s5, %s246
      %p248 = scmp.eq.s32.totalorder %s18, 0
      // Predicated region
      $region41: #{_forward.11} parent=39 // pred_check
        %p249 = pneg %p248
      $region42: #{_forward.11} parent=39 // pred_check_branch
        %251 = sbr.rel (%p249) target = $region44
      $region43: #{_forward.11} parent=39 // pred_region
        %v252 = vld [vmem:[%s1] sm:$0xf]
        %253 = vst [vmem:[#allocation2] sm:$0xf] %v252
      $region44: #{_forward.11} parent=39 // pred_fallthru
        _
      %v254 = vld [vmem:[#allocation2] sm:$0xf]
      %v255 = vld [vmem:[%s243] sm:$0xff]
      %v256 = vld [vmem:[%s243 + $0x8] sm:$0xf]
      %v257 = vld [vmem:[%s3] sm:$0xff]
      %v258 = vld [vmem:[%s3 + $0x8] sm:$0xff]
      %v259 = vld [vmem:[%s3 + $0x10] sm:$0xff]
      %v260 = vld [vmem:[%s3 + $0x18] sm:$0xff]
      %v261 = vld [vmem:[%s3 + $0x20] sm:$0xff]
      %v262 = vld [vmem:[%s3 + $0x28] sm:$0xff]
      %v263 = vld [vmem:[%s3 + $0x30] sm:$0xff]
      %v264 = vld [vmem:[%s3 + $0x38] sm:$0xff]
      %v265 = vld [vmem:[%s3 + $0x40] sm:$0xff]
      %v266 = vld [vmem:[%s3 + $0x48] sm:$0xff]
      %v267 = vld [vmem:[%s3 + $0x50] sm:$0xff]
      %v268 = vld [vmem:[%s3 + $0x58] sm:$0xff]
      %v269 = vld [vmem:[%s3 + $0x60] sm:$0xff]
      %v270 = vld [vmem:[%s3 + $0x68] sm:$0xff]
      %v271 = vld [vmem:[%s3 + $0x70] sm:$0xff]
      %v272 = vld [vmem:[%s3 + $0x78] sm:$0xff]
      %v273 = vld [vmem:[%s3 + $0x80] sm:$0xff]
      %v274 = vld [vmem:[%s3 + $0x88] sm:$0xff]
      %v275 = vld [vmem:[%s3 + $0x90] sm:$0xff]
      %v276 = vld [vmem:[%s3 + $0x98] sm:$0xff]
      %v277 = vld [vmem:[%s3 + $0xa0] sm:$0xff]
      %v278 = vld [vmem:[%s3 + $0xa8] sm:$0xff]
      %v279 = vld [vmem:[%s3 + $0xb0] sm:$0xff]
      %v280 = vld [vmem:[%s3 + $0xb8] sm:$0xff]
      %v281 = vld [vmem:[%s3 + $0xc0] sm:$0xff]
      %v282 = vld [vmem:[%s3 + $0xc8] sm:$0xff]
      %v283 = vld [vmem:[%s3 + $0xd0] sm:$0xff]
      %v284 = vld [vmem:[%s3 + $0xd8] sm:$0xff]
      %v285 = vld [vmem:[%s3 + $0xe0] sm:$0xff]
      %v286 = vld [vmem:[%s3 + $0xe8] sm:$0xff]
      %v287 = vld [vmem:[%s3 + $0xf0] sm:$0xff]
      %v288 = vld [vmem:[%s3 + $0xf8] sm:$0xff]
      %v289 = vld [vmem:[%s3 + $0x100] sm:$0xff]
      %v290 = vld [vmem:[%s3 + $0x108] sm:$0xff]
      %v291 = vld [vmem:[%s3 + $0x110] sm:$0xff]
      %v292 = vld [vmem:[%s3 + $0x118] sm:$0xff]
      %v293 = vld [vmem:[%s3 + $0x120] sm:$0xff]
      %v294 = vld [vmem:[%s3 + $0x128] sm:$0xff]
      %v295 = vld [vmem:[%s3 + $0x130] sm:$0xff]
      %v296 = vld [vmem:[%s3 + $0x138] sm:$0xff]
      %v297 = vld [vmem:[%s3 + $0x140] sm:$0xff]
      %v298 = vld [vmem:[%s3 + $0x148] sm:$0xff]
      %v299 = vld [vmem:[%s3 + $0x150] sm:$0xff]
      %v300 = vld [vmem:[%s3 + $0x158] sm:$0xff]
      %v301 = vld [vmem:[%s3 + $0x160] sm:$0xff]
      %v302 = vld [vmem:[%s3 + $0x168] sm:$0xff]
      %v303 = vld [vmem:[%s3 + $0x170] sm:$0xff]
      %v304 = vld [vmem:[%s3 + $0x178] sm:$0xff]
      %v305 = vld [vmem:[%s4] sm:$0x7]
      %v307 = vlaneseq
      %v308 = vshrl.u32 %v307, 7
      %v309 = vsub.s32 0, %v308
      %v310 = vrot.slane %v305, %v309
      %v311 = vlaneseq
      %v312 = vshrl.u32 %v311, 7
      %v313 = vsub.s32 1, %v312
      %v314 = vrot.slane %v305, %v313
      %v315 = vlaneseq
      %v316 = vshrl.u32 %v315, 7
      %v317 = vsub.s32 2, %v316
      %v318 = vrot.slane %v305, %v317
      %322 = vmatprep.subr.mxu0 %v303
      %323 = vmatpush1.msra.mxu0 %v302
      %324 = vmatprep.subr.mxu0 %v300
      %325 = vmatpush1.msra.mxu0 %v299
      %326 = vmatprep.subr.mxu0 %v297
      %327 = vmatpush1.msra.mxu0 %v296
      %328 = vmatprep.subr.mxu0 %v294
      %329 = vmatpush1.msra.mxu0 %v293
      %330 = vmatprep.subr.mxu0 %v291
      %331 = vmatpush1.msra.mxu0 %v290
      %332 = vmatprep.subr.mxu0 %v288
      %333 = vmatpush1.msra.mxu0 %v287
      %334 = vmatprep.subr.mxu0 %v285
      %335 = vmatpush1.msra.mxu0 %v284
      %336 = vmatprep.subr.mxu0 %v282
      %337 = vmatpush1.msra.mxu0 %v281
      %338 = vmatprep.subr.mxu0 %v279
      %339 = vmatpush1.msra.mxu0 %v278
      %340 = vmatprep.subr.mxu0 %v276
      %341 = vmatpush1.msra.mxu0 %v275
      %342 = vmatprep.subr.mxu0 %v273
      %343 = vmatpush1.msra.mxu0 %v272
      %344 = vmatprep.subr.mxu0 %v270
      %345 = vmatpush1.msra.mxu0 %v269
      %346 = vmatprep.subr.mxu0 %v267
      %347 = vmatpush1.msra.mxu0 %v266
      %348 = vmatprep.subr.mxu0 %v264
      %349 = vmatpush1.msra.mxu0 %v263
      %350 = vmatprep.subr.mxu0 %v261
      %351 = vmatpush1.msra.mxu0 %v260
      %352 = vmatprep.subr.mxu0 %v258
      %353 = vmatpush1.msra.mxu0 %v257
      %354 = vmatprep.subr.mxu0 0.0
      %355 = vmatpush2.msra.mxu0 0.0
      %356 = vmatprep.subr.mxu0 0.0
      %357 = vmatpush2.msra.mxu0 0.0
      %358 = vmatprep.subr.mxu0 0.0
      %359 = vmatpush2.msra.mxu0 0.0
      %360 = vmatprep.subr.mxu0 0.0
      %361 = vmatpush2.msra.mxu0 0.0
      %362 = vmatprep.subr.mxu0 0.0
      %363 = vmatpush2.msra.mxu0 0.0
      %364 = vmatprep.subr.mxu0 0.0
      %365 = vmatpush2.msra.mxu0 0.0
      %366 = vmatprep.subr.mxu0 0.0
      %367 = vmatpush2.msra.mxu0 0.0
      %368 = vmatprep.subr.mxu0 0.0
      %369 = vmatpush2.msra.mxu0 0.0
      %370 = vmatprep.subr.mxu0 0.0
      %371 = vmatpush2.msra.mxu0 0.0
      %372 = vmatprep.subr.mxu0 0.0
      %373 = vmatpush2.msra.mxu0 0.0
      %374 = vmatprep.subr.mxu0 0.0
      %375 = vmatpush2.msra.mxu0 0.0
      %376 = vmatprep.subr.mxu0 0.0
      %377 = vmatpush2.msra.mxu0 0.0
      %378 = vmatprep.subr.mxu0 0.0
      %379 = vmatpush2.msra.mxu0 0.0
      %380 = vmatprep.subr.mxu0 0.0
      %381 = vmatpush2.msra.mxu0 0.0
      %382 = vmatprep.subr.mxu0 0.0
      %383 = vmatpush2.msra.mxu0 0.0
      %384 = vmatprep.subr.mxu0 0.0
      %385 = vmatpush2.msra.mxu0 0.0
      %386 = vmatprep.mubr.f32.mxu0 0.0
      %387 = vmatmul.mubr.f32.gmra.mxu0 %v254
      %v388 = vpop.f32.mrf.mxu0
      %v389 = vadd.f32 %v310, %v388
      %v390 = vpop.f32.mrf.mxu0
      %v391 = vadd.f32 %v314, %v390
      %392 = vdwg.mxu0
      %393 = vmatprep.subr.mxu0 0.0
      %394 = vmatpush1.msra.mxu0 %v304
      %395 = vmatprep.subr.mxu0 0.0
      %396 = vmatpush1.msra.mxu0 %v301
      %397 = vmatprep.subr.mxu0 0.0
      %398 = vmatpush1.msra.mxu0 %v298
      %399 = vmatprep.subr.mxu0 0.0
      %400 = vmatpush1.msra.mxu0 %v295
      %401 = vmatprep.subr.mxu0 0.0
      %402 = vmatpush1.msra.mxu0 %v292
      %403 = vmatprep.subr.mxu0 0.0
      %404 = vmatpush1.msra.mxu0 %v289
      %405 = vmatprep.subr.mxu0 0.0
      %406 = vmatpush1.msra.mxu0 %v286
      %407 = vmatprep.subr.mxu0 0.0
      %408 = vmatpush1.msra.mxu0 %v283
      %409 = vmatprep.subr.mxu0 0.0
      %410 = vmatpush1.msra.mxu0 %v280
      %411 = vmatprep.subr.mxu0 0.0
      %412 = vmatpush1.msra.mxu0 %v277
      %413 = vmatprep.subr.mxu0 0.0
      %414 = vmatpush1.msra.mxu0 %v274
      %415 = vmatprep.subr.mxu0 0.0
      %416 = vmatpush1.msra.mxu0 %v271
      %417 = vmatprep.subr.mxu0 0.0
      %418 = vmatpush1.msra.mxu0 %v268
      %419 = vmatprep.subr.mxu0 0.0
      %420 = vmatpush1.msra.mxu0 %v265
      %421 = vmatprep.subr.mxu0 0.0
      %422 = vmatpush1.msra.mxu0 %v262
      %423 = vmatprep.subr.mxu0 0.0
      %424 = vmatpush1.msra.mxu0 %v259
      %425 = vmatprep.subr.mxu0 0.0
      %426 = vmatpush2.msra.mxu0 0.0
      %427 = vmatprep.subr.mxu0 0.0
      %428 = vmatpush2.msra.mxu0 0.0
      %429 = vmatprep.subr.mxu0 0.0
      %430 = vmatpush2.msra.mxu0 0.0
      %431 = vmatprep.subr.mxu0 0.0
      %432 = vmatpush2.msra.mxu0 0.0
      %433 = vmatprep.subr.mxu0 0.0
      %434 = vmatpush2.msra.mxu0 0.0
      %435 = vmatprep.subr.mxu0 0.0
      %436 = vmatpush2.msra.mxu0 0.0
      %437 = vmatprep.subr.mxu0 0.0
      %438 = vmatpush2.msra.mxu0 0.0
      %439 = vmatprep.subr.mxu0 0.0
      %440 = vmatpush2.msra.mxu0 0.0
      %441 = vmatprep.subr.mxu0 0.0
      %442 = vmatpush2.msra.mxu0 0.0
      %443 = vmatprep.subr.mxu0 0.0
      %444 = vmatpush2.msra.mxu0 0.0
      %445 = vmatprep.subr.mxu0 0.0
      %446 = vmatpush2.msra.mxu0 0.0
      %447 = vmatprep.subr.mxu0 0.0
      %448 = vmatpush2.msra.mxu0 0.0
      %449 = vmatprep.subr.mxu0 0.0
      %450 = vmatpush2.msra.mxu0 0.0
      %451 = vmatprep.subr.mxu0 0.0
      %452 = vmatpush2.msra.mxu0 0.0
      %453 = vmatprep.subr.mxu0 0.0
      %454 = vmatpush2.msra.mxu0 0.0
      %455 = vmatprep.subr.mxu0 0.0
      %456 = vmatpush2.msra.mxu0 0.0
      %457 = vmatprep.mubr.f32.mxu0 0.0
      %458 = vmatmul.mubr.f32.gmra.mxu0 %v254
      %v459 = vpop.f32.mrf.mxu0
      %v460 = vadd.f32 %v318, %v459
      %v461 = vpop.f32.mrf.mxu0
      %462 = vdwg.mxu0
      %v463 = vadd.f32 %v255, %v389
      %v464 = vxor.u32 %v463, 2147483648
      %v465 = vmul.f32 %v464, 1.442695
      %v466 = vpow.pop %v465
      %v467 = vadd.f32 %v466, 1.0
      %v468 = vrcp.pop %v467
      %v469 = vmul.f32 1.0, %v468
      %v471 = vrot.slane %v255, 4
      %v473 = vadd.f32 %v471, %v391
      %v474 = vxor.u32 %v473, 2147483648
      %v475 = vmul.f32 %v474, 1.442695
      %v476 = vpow.pop %v475
      %v477 = vadd.f32 %v476, 1.0
      %v478 = vrcp.pop %v477
      %v479 = vmul.f32 1.0, %v478
      %v480 = vmul.f32 %v469, %v460
      %v481 = vadd.f32 %v256, %v480
      %v482 = vtanh.pop %v481
      %v483 = vsub.f32 1.0, %v479
      %v484 = vmul.f32 %v483, %v482
      %v485 = vmul.f32 %v479, %v254
      %v486 = vadd.f32 %v484, %v485
      %v487 = vld [vmem:[%s2] sm:$0xf]
      %v488 = vstv %s18
      %vm489 = vcmp.gt.s32.totalorder %v487, %v488
      %v490 = vsel %vm489, 1, 0
      %v491 = vcvt.s32.f32 %v490
      %493 = vset.pattern.permute.xlu0 0
      %494 = vperm.xlu0 %493, %v491
      %v495 = vpop.permute.xlu0 %494
      %v497 = vmul.f32 %v495, %v486
      %v498 = vsub.f32 1.0, %v491
      %500 = vset.pattern.permute.xlu0 0
      %501 = vperm.xlu0 %500, %v498
      %v502 = vpop.permute.xlu0 %501
      %v504 = vmul.f32 %v502, %v254
      %v505 = vadd.f32 %v497, %v504
      %506 = vst [vmem:[#allocation2] sm:$0xf] %v505
      %507 = vst [vmem:[%s247] sm:$0xf] %v497
      %508 = vst [vmem:[%s6] sm:$0xf] %v505
      %p509 = scmp.lt.s32.totalorder %s18, 15
      %s510 = scalar_select %p509, %s18, 15
      %s511 = smul.addr %s510, 4
      %s512 = scalar_lea.vmem %s5, %s511
      // Predicated region
      $region45: #{_forward.11} parent=39 // pred_check
        %p513 = pneg %p146
      $region46: #{_forward.11} parent=39 // pred_check_branch
        %515 = sbr.rel (%p513) target = $region48
      $region47: #{_forward.11} parent=39 // pred_region
        _
      $region48: #{_forward.11} parent=39 // pred_fallthru
        _
      // Predicated region
      $region49: #{_forward.11} parent=39 // pred_check
        %p516 = pneg %p167
      $region50: #{_forward.11} parent=39 // pred_check_branch
        %518 = sbr.rel (%p516) target = $region52
      $region51: #{_forward.11} parent=39 // pred_region
        _
      $region52: #{_forward.11} parent=39 // pred_fallthru
        _
      // Predicated region
      $region53: #{_forward.11} parent=39 // pred_check
        %p519 = pneg %p167
      $region54: #{_forward.11} parent=39 // pred_check_branch
        %521 = sbr.rel (%p519) target = $region56
      $region55: #{_forward.11} parent=39 // pred_region
        _
      $region56: #{_forward.11} parent=39 // pred_fallthru
        _
    $region40: #{_forward.11} parent=5 // pred_fallthru
      _
    %p522 = scmp.le.s32.totalorder 2, %s13
    // Predicated region
    $region57: #{_forward.11} parent=5 // pred_check
      %p523 = pneg %p522
    $region58: #{_forward.11} parent=5 // pred_check_branch
      %525 = sbr.rel (%p523) target = $region60
    $region59: #{_forward.11} parent=5 // pred_region
      %s526 = ssub.s32 %s13, 2
      // Predicated region
      $region61: #{_forward.11} parent=59 // pred_check
        %p527 = pneg %p152
      $region62: #{_forward.11} parent=59 // pred_check_branch
        %529 = sbr.rel (%p527) target = $region64
      $region63: #{_forward.11} parent=59 // pred_region
        %p530 = scmp.lt.s32.totalorder %s19, 15
        %s531 = scalar_select %p530, %s19, 15
        %s532 = smul.addr %s531, 4
        %s533 = scalar_lea.vmem %s5, %s532
      $region64: #{_forward.11} parent=59 // pred_fallthru
        _
    $region60: #{_forward.11} parent=5 // pred_fallthru
      _
  $region6: #{_forward.11} parent=0 // loop_footer
    %s17 = sadd.s32 1, %s13
  $region7: #{_forward.11} parent=0 // loop_footer_branch
    %12 = sbr.rel target = $region3
  $region8: #{_forward.11} parent=0 // loop_exit
    _

// kernel: _forward.12
$region0: #{_forward.12}
  #allocation0 [shape = 'u32[]', space=smem, size = 0x4, offset = 0x4, fixed_abs, tag = 'smem constant byte address 0x4 - core index']
  #allocation1 [shape = 'u32[144,128]{1,0:T(1,128)}', space=vmem, size = 0x12000, scoped, tag = 'internal scratch']
  %s0 = inlined_call_operand.vmem [shape: f32[4,256], index: 0, kind: input, shape index: {}]
  %s1 = inlined_call_operand.vmem [shape: f32[256,64], index: 1, kind: input, shape index: {}]
  %s2 = inlined_call_operand.vmem [shape: f32[256,128], index: 2, kind: input, shape index: {}]
  %s3 = inlined_call_operand.vmem [shape: f32[1,128], index: 3, kind: input, shape index: {}]
  %s4 = inlined_call_operand.vmem [shape: f32[4,64], index: 4, kind: output, shape index: {0}]
  %s5 = inlined_call_operand.vmem [shape: f32[4,128], index: 5, kind: output, shape index: {1}]
  %6 = xla_tuple %s4, %s5
  %s7 = sld [smem:[#allocation0]]
  $region34: #{_forward.12} parent=0
    _
  %s9 = ssub.s32 1, %s7
  %s10 = scalar_select 0, %s9, %s7
  // Predicated region
  $region2: #{_forward.12} parent=0 // pred_check
    _
  $region3: #{_forward.12} parent=0 // pred_check_branch
    %12 = sbr.rel (0) target = $region5
  $region4: #{_forward.12} parent=0 // pred_region
    _
  $region5: #{_forward.12} parent=0 // pred_fallthru
    _
  // Predicated region
  $region6: #{_forward.12} parent=0 // pred_check
    _
  $region7: #{_forward.12} parent=0 // pred_check_branch
    %14 = sbr.rel (0) target = $region9
  $region8: #{_forward.12} parent=0 // pred_region
    _
  $region9: #{_forward.12} parent=0 // pred_fallthru
    _
  // Predicated region
  $region10: #{_forward.12} parent=0 // pred_check
    _
  $region11: #{_forward.12} parent=0 // pred_check_branch
    %16 = sbr.rel (0) target = $region13
  $region12: #{_forward.12} parent=0 // pred_region
    _
  $region13: #{_forward.12} parent=0 // pred_fallthru
    _
  // Predicated region
  $region14: #{_forward.12} parent=0 // pred_check
    _
  $region15: #{_forward.12} parent=0 // pred_check_branch
    %18 = sbr.rel (0) target = $region17
  $region16: #{_forward.12} parent=0 // pred_region
    _
  $region17: #{_forward.12} parent=0 // pred_fallthru
    _
  %v20 = vld [vmem:[%s0] sm:$0xff]
  %v22 = vcombine.high %v20, %v20
  %v24 = vpack.c.bf16 %v20, %v20
  %v25 = vpack.c.bf16 %v22, %v22
  %v26 = vld [vmem:[%s1] sm:$0xff]
  %v27 = vld [vmem:[%s1 + $0x8] sm:$0xff]
  %v28 = vld [vmem:[%s1 + $0x10] sm:$0xff]
  %v29 = vld [vmem:[%s1 + $0x18] sm:$0xff]
  %v30 = vld [vmem:[%s1 + $0x20] sm:$0xff]
  %v31 = vld [vmem:[%s1 + $0x28] sm:$0xff]
  %v32 = vld [vmem:[%s1 + $0x30] sm:$0xff]
  %v33 = vld [vmem:[%s1 + $0x38] sm:$0xff]
  %v34 = vld [vmem:[%s1 + $0x40] sm:$0xff]
  %v35 = vld [vmem:[%s1 + $0x48] sm:$0xff]
  %v36 = vld [vmem:[%s1 + $0x50] sm:$0xff]
  %v37 = vld [vmem:[%s1 + $0x58] sm:$0xff]
  %v38 = vld [vmem:[%s1 + $0x60] sm:$0xff]
  %v39 = vld [vmem:[%s1 + $0x68] sm:$0xff]
  %v40 = vld [vmem:[%s1 + $0x70] sm:$0xff]
  %v41 = vld [vmem:[%s1 + $0x78] sm:$0xff]
  %v42 = vld [vmem:[%s1 + $0x80] sm:$0xff]
  %v43 = vld [vmem:[%s1 + $0x88] sm:$0xff]
  %v44 = vld [vmem:[%s1 + $0x90] sm:$0xff]
  %v45 = vld [vmem:[%s1 + $0x98] sm:$0xff]
  %v46 = vld [vmem:[%s1 + $0xa0] sm:$0xff]
  %v47 = vld [vmem:[%s1 + $0xa8] sm:$0xff]
  %v48 = vld [vmem:[%s1 + $0xb0] sm:$0xff]
  %v49 = vld [vmem:[%s1 + $0xb8] sm:$0xff]
  %v50 = vld [vmem:[%s1 + $0xc0] sm:$0xff]
  %v51 = vld [vmem:[%s1 + $0xc8] sm:$0xff]
  %v52 = vld [vmem:[%s1 + $0xd0] sm:$0xff]
  %v53 = vld [vmem:[%s1 + $0xd8] sm:$0xff]
  %v54 = vld [vmem:[%s1 + $0xe0] sm:$0xff]
  %v55 = vld [vmem:[%s1 + $0xe8] sm:$0xff]
  %v56 = vld [vmem:[%s1 + $0xf0] sm:$0xff]
  %v57 = vld [vmem:[%s1 + $0xf8] sm:$0xff]
  %v58 = vpack.c.bf16 %v27, %v26
  %v59 = vpack.c.bf16 %v29, %v28
  %v60 = vpack.c.bf16 %v31, %v30
  %v61 = vpack.c.bf16 %v33, %v32
  %v62 = vpack.c.bf16 %v35, %v34
  %v63 = vpack.c.bf16 %v37, %v36
  %v64 = vpack.c.bf16 %v39, %v38
  %v65 = vpack.c.bf16 %v41, %v40
  %v66 = vpack.c.bf16 %v43, %v42
  %v67 = vpack.c.bf16 %v45, %v44
  %v68 = vpack.c.bf16 %v47, %v46
  %v69 = vpack.c.bf16 %v49, %v48
  %v70 = vpack.c.bf16 %v51, %v50
  %v71 = vpack.c.bf16 %v53, %v52
  %v72 = vpack.c.bf16 %v55, %v54
  %v73 = vpack.c.bf16 %v57, %v56
  %74 = vmatprep.subr.bf16.mxu0 0
  %75 = vmatpush1.bf16.msra.mxu0 %v65
  %76 = vmatprep.subr.bf16.mxu0 0
  %77 = vmatpush1.bf16.msra.mxu0 %v64
  %78 = vmatprep.subr.bf16.mxu0 0
  %79 = vmatpush1.bf16.msra.mxu0 %v63
  %80 = vmatprep.subr.bf16.mxu0 0
  %81 = vmatpush1.bf16.msra.mxu0 %v62
  %82 = vmatprep.subr.bf16.mxu0 0
  %83 = vmatpush1.bf16.msra.mxu0 %v61
  %84 = vmatprep.subr.bf16.mxu0 0
  %85 = vmatpush1.bf16.msra.mxu0 %v60
  %86 = vmatprep.subr.bf16.mxu0 0
  %87 = vmatpush1.bf16.msra.mxu0 %v59
  %88 = vmatprep.subr.bf16.mxu0 0
  %89 = vmatpush1.bf16.msra.mxu0 %v58
  %90 = vmatprep.subr.bf16.mxu0 0
  %91 = vmatpush2.bf16.msra.mxu0 %v73
  %92 = vmatprep.subr.bf16.mxu0 0
  %93 = vmatpush2.bf16.msra.mxu0 %v72
  %94 = vmatprep.subr.bf16.mxu0 0
  %95 = vmatpush2.bf16.msra.mxu0 %v71
  %96 = vmatprep.subr.bf16.mxu0 0
  %97 = vmatpush2.bf16.msra.mxu0 %v70
  %98 = vmatprep.subr.bf16.mxu0 0
  %99 = vmatpush2.bf16.msra.mxu0 %v69
  %100 = vmatprep.subr.bf16.mxu0 0
  %101 = vmatpush2.bf16.msra.mxu0 %v68
  %102 = vmatprep.subr.bf16.mxu0 0
  %103 = vmatpush2.bf16.msra.mxu0 %v67
  %104 = vmatprep.subr.bf16.mxu0 0
  %105 = vmatpush2.bf16.msra.mxu0 %v66
  %106 = vmatprep.mubr.bf16.mxu0 %v25
  %107 = vmatmul.mubr.bf16.gmra.mxu0 %v24
  %v108 = vpop.f32.mrf.mxu0
  %v109 = vadd.f32 0.0, %v108
  %v110 = vpop.f32.mrf.mxu0
  %v111 = vpop.f32.mrf.mxu0
  %v112 = vpop.f32.mrf.mxu0
  %113 = vdwg.mxu0
  %vm114 = vcmask 519168
  %115 = vst.msk [vmem:[%s4] sm:$0xf] %vm114, %v109
  %v116 = vld [vmem:[%s2] sm:$0xff]
  %v117 = vld [vmem:[%s2 + $0x8] sm:$0xff]
  %v118 = vld [vmem:[%s2 + $0x10] sm:$0xff]
  %v119 = vld [vmem:[%s2 + $0x18] sm:$0xff]
  %v120 = vld [vmem:[%s2 + $0x20] sm:$0xff]
  %v121 = vld [vmem:[%s2 + $0x28] sm:$0xff]
  %v122 = vld [vmem:[%s2 + $0x30] sm:$0xff]
  %v123 = vld [vmem:[%s2 + $0x38] sm:$0xff]
  %v124 = vld [vmem:[%s2 + $0x40] sm:$0xff]
  %v125 = vld [vmem:[%s2 + $0x48] sm:$0xff]
  %v126 = vld [vmem:[%s2 + $0x50] sm:$0xff]
  %v127 = vld [vmem:[%s2 + $0x58] sm:$0xff]
  %v128 = vld [vmem:[%s2 + $0x60] sm:$0xff]
  %v129 = vld [vmem:[%s2 + $0x68] sm:$0xff]
  %v130 = vld [vmem:[%s2 + $0x70] sm:$0xff]
  %v131 = vld [vmem:[%s2 + $0x78] sm:$0xff]
  %v132 = vld [vmem:[%s2 + $0x80] sm:$0xff]
  %v133 = vld [vmem:[%s2 + $0x88] sm:$0xff]
  %v134 = vld [vmem:[%s2 + $0x90] sm:$0xff]
  %v135 = vld [vmem:[%s2 + $0x98] sm:$0xff]
  %v136 = vld [vmem:[%s2 + $0xa0] sm:$0xff]
  %v137 = vld [vmem:[%s2 + $0xa8] sm:$0xff]
  %v138 = vld [vmem:[%s2 + $0xb0] sm:$0xff]
  %v139 = vld [vmem:[%s2 + $0xb8] sm:$0xff]
  %v140 = vld [vmem:[%s2 + $0xc0] sm:$0xff]
  %v141 = vld [vmem:[%s2 + $0xc8] sm:$0xff]
  %v142 = vld [vmem:[%s2 + $0xd0] sm:$0xff]
  %v143 = vld [vmem:[%s2 + $0xd8] sm:$0xff]
  %v144 = vld [vmem:[%s2 + $0xe0] sm:$0xff]
  %v145 = vld [vmem:[%s2 + $0xe8] sm:$0xff]
  %v146 = vld [vmem:[%s2 + $0xf0] sm:$0xff]
  %v147 = vld [vmem:[%s2 + $0xf8] sm:$0xff]
  %v148 = vpack.c.bf16 %v117, %v116
  %v149 = vpack.c.bf16 %v119, %v118
  %v150 = vpack.c.bf16 %v121, %v120
  %v151 = vpack.c.bf16 %v123, %v122
  %v152 = vpack.c.bf16 %v125, %v124
  %v153 = vpack.c.bf16 %v127, %v126
  %v154 = vpack.c.bf16 %v129, %v128
  %v155 = vpack.c.bf16 %v131, %v130
  %v156 = vpack.c.bf16 %v133, %v132
  %v157 = vpack.c.bf16 %v135, %v134
  %v158 = vpack.c.bf16 %v137, %v136
  %v159 = vpack.c.bf16 %v139, %v138
  %v160 = vpack.c.bf16 %v141, %v140
  %v161 = vpack.c.bf16 %v143, %v142
  %v162 = vpack.c.bf16 %v145, %v144
  %v163 = vpack.c.bf16 %v147, %v146
  %v164 = vld [vmem:[%s3] sm:$0x1]
  %v166 = vlaneseq
  %v167 = vshrl.u32 %v166, 7
  %v168 = vsub.s32 0, %v167
  %v169 = vrot.slane %v164, %v168
  %171 = vmatprep.subr.bf16.mxu0 0
  %172 = vmatpush1.bf16.msra.mxu0 %v155
  %173 = vmatprep.subr.bf16.mxu0 0
  %174 = vmatpush1.bf16.msra.mxu0 %v154
  %175 = vmatprep.subr.bf16.mxu0 0
  %176 = vmatpush1.bf16.msra.mxu0 %v153
  %177 = vmatprep.subr.bf16.mxu0 0
  %178 = vmatpush1.bf16.msra.mxu0 %v152
  %179 = vmatprep.subr.bf16.mxu0 0
  %180 = vmatpush1.bf16.msra.mxu0 %v151
  %181 = vmatprep.subr.bf16.mxu0 0
  %182 = vmatpush1.bf16.msra.mxu0 %v150
  %183 = vmatprep.subr.bf16.mxu0 0
  %184 = vmatpush1.bf16.msra.mxu0 %v149
  %185 = vmatprep.subr.bf16.mxu0 0
  %186 = vmatpush1.bf16.msra.mxu0 %v148
  %187 = vmatprep.subr.bf16.mxu0 0
  %188 = vmatpush2.bf16.msra.mxu0 %v163
  %189 = vmatprep.subr.bf16.mxu0 0
  %190 = vmatpush2.bf16.msra.mxu0 %v162
  %191 = vmatprep.subr.bf16.mxu0 0
  %192 = vmatpush2.bf16.msra.mxu0 %v161
  %193 = vmatprep.subr.bf16.mxu0 0
  %194 = vmatpush2.bf16.msra.mxu0 %v160
  %195 = vmatprep.subr.bf16.mxu0 0
  %196 = vmatpush2.bf16.msra.mxu0 %v159
  %197 = vmatprep.subr.bf16.mxu0 0
  %198 = vmatpush2.bf16.msra.mxu0 %v158
  %199 = vmatprep.subr.bf16.mxu0 0
  %200 = vmatpush2.bf16.msra.mxu0 %v157
  %201 = vmatprep.subr.bf16.mxu0 0
  %202 = vmatpush2.bf16.msra.mxu0 %v156
  %203 = vmatprep.mubr.bf16.mxu0 %v25
  %204 = vmatmul.mubr.bf16.gmra.mxu0 %v24
  %v205 = vpop.f32.mrf.mxu0
  %v206 = vadd.f32 %v169, %v205
  %v207 = vpop.f32.mrf.mxu0
  %v208 = vpop.f32.mrf.mxu0
  %v209 = vpop.f32.mrf.mxu0
  %210 = vdwg.mxu0
  %v211 = vtanh.pop %v206
  %212 = vst [vmem:[%s5] sm:$0xf] %v211
  // Predicated region
  $region18: #{_forward.12} parent=0 // pred_check
    _
  $region19: #{_forward.12} parent=0 // pred_check_branch
    %214 = sbr.rel (0) target = $region21
  $region20: #{_forward.12} parent=0 // pred_region
    _
  $region21: #{_forward.12} parent=0 // pred_fallthru
    _
  // Predicated region
  $region22: #{_forward.12} parent=0 // pred_check
    _
  $region23: #{_forward.12} parent=0 // pred_check_branch
    %216 = sbr.rel (0) target = $region25
  $region24: #{_forward.12} parent=0 // pred_region
    _
  $region25: #{_forward.12} parent=0 // pred_fallthru
    _
  // Predicated region
  $region26: #{_forward.12} parent=0 // pred_check
    _
  $region27: #{_forward.12} parent=0 // pred_check_branch
    %218 = sbr.rel (0) target = $region29
  $region28: #{_forward.12} parent=0 // pred_region
    _
  $region29: #{_forward.12} parent=0 // pred_fallthru
    _
  // Predicated region
  $region30: #{_forward.12} parent=0 // pred_check
    _
  $region31: #{_forward.12} parent=0 // pred_check_branch
    %220 = sbr.rel (0) target = $region33
  $region32: #{_forward.12} parent=0 // pred_region
    _
  $region33: #{_forward.12} parent=0 // pred_fallthru
    _

// kernel: _forward.14
$region0: #{_forward.14}
  #allocation0 [shape = 'u32[]', space=smem, size = 0x4, offset = 0x4, fixed_abs, tag = 'smem constant byte address 0x4 - core index']
  #allocation1 [shape = 'u32[144,128]{1,0:T(1,128)}', space=vmem, size = 0x12000, scoped, tag = 'internal scratch']
  #allocation2 [shape = 'f32[4,128]{1,0:T(4,128)}', space=vmem, size = 0x800, scoped, tag = 'scratch operand']
  %s0 = inlined_call_operand.vmem [shape: f32[11,4,384], index: 0, kind: input, shape index: {}]
  %s1 = inlined_call_operand.vmem [shape: f32[4,128], index: 1, kind: input, shape index: {}]
  %s2 = inlined_call_operand.vmem [shape: s32[4,1], index: 2, kind: input, shape index: {}]
  %s3 = inlined_call_operand.vmem [shape: f32[128,384], index: 3, kind: input, shape index: {}]
  %s4 = inlined_call_operand.vmem [shape: f32[1,384], index: 4, kind: input, shape index: {}]
  %s5 = inlined_call_operand.vmem [shape: f32[11,4,128], index: 5, kind: output, shape index: {0}]
  %s6 = inlined_call_operand.vmem [shape: f32[4,128], index: 6, kind: output, shape index: {1}]
  %7 = xla_tuple %s5, %s6
  %s8 = sld [smem:[#allocation0]]
  $region65: #{_forward.14} parent=0
    _
  %s10 = ssub.s32 1, %s8
  %s11 = scalar_select 0, %s10, %s8
  loop: start=0, step=1, limit=13
  $region2: #{_forward.14} parent=0 // loop_pre_header
    _
  $region3: #{_forward.14} parent=0 // loop_header
    %s13 = sphi 0, %s17
    %p14 = scmp.ge.s32.totalorder %s13, 13
    %s23 = sphi 0, %s25
    %s26 = sphi 0, %s23
    %s27 = sphi 0, %s26
    %s43 = sphi 0, %s27
    %s47 = sphi 0, %s47
    %s49 = sphi 0, %s47
    %s50 = sphi 0, %s49
    %s64 = sphi 0, %s50
    %s68 = sphi 0, %s68
    %s70 = sphi 0, %s68
    %s71 = sphi 0, %s70
    %s85 = sphi 0, %s71
    %s89 = sphi 0, %s89
    %s91 = sphi 0, %s89
    %s92 = sphi 0, %s91
    %s106 = sphi 0, %s92
    %s110 = sphi 0, %s110
    %s112 = sphi 0, %s110
    %s113 = sphi 0, %s112
    %s127 = sphi 0, %s113
    %s133 = sphi 0, %s135
    %s136 = sphi 0, %s133
    %s137 = sphi 0, %s136
    %s153 = sphi 0, %s137
    %s157 = sphi 0, %s157
    %s159 = sphi 0, %s157
    %s160 = sphi 0, %s159
    %s174 = sphi 0, %s160
  $region4: #{_forward.14} parent=0 // loop_header_branch
    %16 = sbr.rel (%p14) target = $region8
  $region5: #{_forward.14} parent=0 // loop_body
    %s18 = ssub.s32 %s13, 1
    %s19 = ssub.s32 %s13, 2
    %s20 = sadd.s32 %s13, 1
    %s21 = ssub.s32 %s13, %s20
    %p22 = scmp.eq.s32.totalorder %s21, 0
    %s24 = sadd.s32 %s23, 1
    %s25 = scalar_select %p22, %s23, %s24
    %p28 = pneg %p22
    %p29 = scmp.eq.s32.totalorder %s13, 10
    %p30 = por %p28, %p29
    %p31 = scmp.ne.s32.totalorder %s23, %s26
    %p32 = scmp.eq.s32.totalorder %s13, 0
    %p33 = por %p31, %p32
    %p34 = scmp.ne.s32.totalorder %s23, %s26
    %p35 = scmp.eq.s32.totalorder %s18, 10
    %p36 = por %p34, %p35
    %p37 = scmp.ne.s32.totalorder %s26, %s27
    %p38 = scmp.eq.s32.totalorder %s18, 0
    %p39 = por %p37, %p38
    %p40 = scmp.ne.s32.totalorder %s26, %s27
    %p41 = scmp.eq.s32.totalorder %s19, 10
    %p42 = por %p40, %p41
    %p44 = scmp.ne.s32.totalorder %s27, %s43
    %p45 = scmp.eq.s32.totalorder %s19, 0
    %p46 = por %p44, %p45
    %s48 = sadd.s32 %s47, 1
    %p51 = scmp.eq.s32.totalorder %s13, 10
    %p52 = scmp.ne.s32.totalorder %s47, %s49
    %p53 = scmp.eq.s32.totalorder %s13, 0
    %p54 = por %p52, %p53
    %p55 = scmp.ne.s32.totalorder %s47, %s49
    %p56 = scmp.eq.s32.totalorder %s18, 10
    %p57 = por %p55, %p56
    %p58 = scmp.ne.s32.totalorder %s49, %s50
    %p59 = scmp.eq.s32.totalorder %s18, 0
    %p60 = por %p58, %p59
    %p61 = scmp.ne.s32.totalorder %s49, %s50
    %p62 = scmp.eq.s32.totalorder %s19, 10
    %p63 = por %p61, %p62
    %p65 = scmp.ne.s32.totalorder %s50, %s64
    %p66 = scmp.eq.s32.totalorder %s19, 0
    %p67 = por %p65, %p66
    %s69 = sadd.s32 %s68, 1
    %p72 = scmp.eq.s32.totalorder %s13, 10
    %p73 = scmp.ne.s32.totalorder %s68, %s70
    %p74 = scmp.eq.s32.totalorder %s13, 0
    %p75 = por %p73, %p74
    %p76 = scmp.ne.s32.totalorder %s68, %s70
    %p77 = scmp.eq.s32.totalorder %s18, 10
    %p78 = por %p76, %p77
    %p79 = scmp.ne.s32.totalorder %s70, %s71
    %p80 = scmp.eq.s32.totalorder %s18, 0
    %p81 = por %p79, %p80
    %p82 = scmp.ne.s32.totalorder %s70, %s71
    %p83 = scmp.eq.s32.totalorder %s19, 10
    %p84 = por %p82, %p83
    %p86 = scmp.ne.s32.totalorder %s71, %s85
    %p87 = scmp.eq.s32.totalorder %s19, 0
    %p88 = por %p86, %p87
    %s90 = sadd.s32 %s89, 1
    %p93 = scmp.eq.s32.totalorder %s13, 10
    %p94 = scmp.ne.s32.totalorder %s89, %s91
    %p95 = scmp.eq.s32.totalorder %s13, 0
    %p96 = por %p94, %p95
    %p97 = scmp.ne.s32.totalorder %s89, %s91
    %p98 = scmp.eq.s32.totalorder %s18, 10
    %p99 = por %p97, %p98
    %p100 = scmp.ne.s32.totalorder %s91, %s92
    %p101 = scmp.eq.s32.totalorder %s18, 0
    %p102 = por %p100, %p101
    %p103 = scmp.ne.s32.totalorder %s91, %s92
    %p104 = scmp.eq.s32.totalorder %s19, 10
    %p105 = por %p103, %p104
    %p107 = scmp.ne.s32.totalorder %s92, %s106
    %p108 = scmp.eq.s32.totalorder %s19, 0
    %p109 = por %p107, %p108
    %s111 = sadd.s32 %s110, 1
    %p114 = scmp.eq.s32.totalorder %s13, 10
    %p115 = scmp.ne.s32.totalorder %s110, %s112
    %p116 = scmp.eq.s32.totalorder %s13, 0
    %p117 = por %p115, %p116
    %p118 = scmp.ne.s32.totalorder %s110, %s112
    %p119 = scmp.eq.s32.totalorder %s18, 10
    %p120 = por %p118, %p119
    %p121 = scmp.ne.s32.totalorder %s112, %s113
    %p122 = scmp.eq.s32.totalorder %s18, 0
    %p123 = por %p121, %p122
    %p124 = scmp.ne.s32.totalorder %s112, %s113
    %p125 = scmp.eq.s32.totalorder %s19, 10
    %p126 = por %p124, %p125
    %p128 = scmp.ne.s32.totalorder %s113, %s127
    %p129 = scmp.eq.s32.totalorder %s19, 0
    %p130 = por %p128, %p129
    %s131 = ssub.s32 %s13, %s20
    %p132 = scmp.eq.s32.totalorder %s131, 0
    %s134 = sadd.s32 %s133, 1
    %s135 = scalar_select %p132, %s133, %s134
    %p138 = pneg %p132
    %p139 = scmp.eq.s32.totalorder %s13, 10
    %p140 = por %p138, %p139
    %p141 = scmp.ne.s32.totalorder %s133, %s136
    %p142 = scmp.eq.s32.totalorder %s13, 0
    %p143 = por %p141, %p142
    %p144 = scmp.ne.s32.totalorder %s133, %s136
    %p145 = scmp.eq.s32.totalorder %s18, 10
    %p146 = por %p144, %p145
    %p147 = scmp.ne.s32.totalorder %s136, %s137
    %p148 = scmp.eq.s32.totalorder %s18, 0
    %p149 = por %p147, %p148
    %p150 = scmp.ne.s32.totalorder %s136, %s137
    %p151 = scmp.eq.s32.totalorder %s19, 10
    %p152 = por %p150, %p151
    %p154 = scmp.ne.s32.totalorder %s137, %s153
    %p155 = scmp.eq.s32.totalorder %s19, 0
    %p156 = por %p154, %p155
    %s158 = sadd.s32 %s157, 1
    %p161 = scmp.eq.s32.totalorder %s13, 10
    %p162 = scmp.ne.s32.totalorder %s157, %s159
    %p163 = scmp.eq.s32.totalorder %s13, 0
    %p164 = por %p162, %p163
    %p165 = scmp.ne.s32.totalorder %s157, %s159
    %p166 = scmp.eq.s32.totalorder %s18, 10
    %p167 = por %p165, %p166
    %p168 = scmp.ne.s32.totalorder %s159, %s160
    %p169 = scmp.eq.s32.totalorder %s18, 0
    %p170 = por %p168, %p169
    %p171 = scmp.ne.s32.totalorder %s159, %s160
    %p172 = scmp.eq.s32.totalorder %s19, 10
    %p173 = por %p171, %p172
    %p175 = scmp.ne.s32.totalorder %s160, %s174
    %p176 = scmp.eq.s32.totalorder %s19, 0
    %p177 = por %p175, %p176
    %p178 = scmp.le.s32.totalorder 1, %s13
    %p179 = scmp.lt.s32.totalorder %s13, 12
    %p180 = pnand %p178, %p179
    %p181 = pneg %p180
    // Predicated region
    $region9: #{_forward.14} parent=5 // pred_check
      _
    $region10: #{_forward.14} parent=5 // pred_check_branch
      %183 = sbr.rel (%p180) target = $region12
    $region11: #{_forward.14} parent=5 // pred_region
      %s184 = ssub.s32 %s13, 1
      // Predicated region
      $region13: #{_forward.14} parent=11 // pred_check
        %p185 = pneg %p60
      $region14: #{_forward.14} parent=11 // pred_check_branch
        %187 = sbr.rel (%p185) target = $region16
      $region15: #{_forward.14} parent=11 // pred_region
        _
      $region16: #{_forward.14} parent=11 // pred_fallthru
        _
      // Predicated region
      $region17: #{_forward.14} parent=11 // pred_check
        %p188 = pneg %p81
      $region18: #{_forward.14} parent=11 // pred_check_branch
        %190 = sbr.rel (%p188) target = $region20
      $region19: #{_forward.14} parent=11 // pred_region
        _
      $region20: #{_forward.14} parent=11 // pred_fallthru
        _
      // Predicated region
      $region21: #{_forward.14} parent=11 // pred_check
        %p191 = pneg %p102
      $region22: #{_forward.14} parent=11 // pred_check_branch
        %193 = sbr.rel (%p191) target = $region24
      $region23: #{_forward.14} parent=11 // pred_region
        _
      $region24: #{_forward.14} parent=11 // pred_fallthru
        _
      // Predicated region
      $region25: #{_forward.14} parent=11 // pred_check
        %p194 = pneg %p123
      $region26: #{_forward.14} parent=11 // pred_check_branch
        %196 = sbr.rel (%p194) target = $region28
      $region27: #{_forward.14} parent=11 // pred_region
        _
      $region28: #{_forward.14} parent=11 // pred_fallthru
        _
    $region12: #{_forward.14} parent=5 // pred_fallthru
      _
    %p197 = scmp.lt.s32.totalorder %s13, 11
    // Predicated region
    $region29: #{_forward.14} parent=5 // pred_check
      %p198 = pneg %p197
    $region30: #{_forward.14} parent=5 // pred_check_branch
      %200 = sbr.rel (%p198) target = $region32
    $region31: #{_forward.14} parent=5 // pred_region
      // Predicated region
      $region33: #{_forward.14} parent=31 // pred_check
        %p201 = pneg %p33
      $region34: #{_forward.14} parent=31 // pred_check_branch
        %203 = sbr.rel (%p201) target = $region36
      $region35: #{_forward.14} parent=31 // pred_region
        %p204 = scmp.lt.s32.totalorder %s13, 10
        %s205 = scalar_select %p204, %s13, 10
        %s206 = smul.addr %s205, 3
        %s207 = smul.addr %s206, 4
        %s208 = scalar_lea.vmem %s0, %s207
      $region36: #{_forward.14} parent=31 // pred_fallthru
        _
    $region32: #{_forward.14} parent=5 // pred_fallthru
      _
    %p209 = scmp.le.s32.totalorder 1, %s13
    %p210 = scmp.lt.s32.totalorder %s13, 12
    %p211 = pnand %p209, %p210
    %p212 = pneg %p211
    // Predicated region
    $region37: #{_forward.14} parent=5 // pred_check
      _
    $region38: #{_forward.14} parent=5 // pred_check_branch
      %214 = sbr.rel (%p211) target = $region40
    $region39: #{_forward.14} parent=5 // pred_region
      %s215 = ssub.s32 %s13, 1
      %p216 = scmp.lt.s32.totalorder %s18, 10
      %s217 = scalar_select %p216, %s18, 10
      %s218 = smul.addr %s217, 3
      %s219 = smul.addr %s218, 4
      %s220 = scalar_lea.vmem %s0, %s219
      %p221 = pneg %p39
      %p222 = pneg %p36
      %p223 = pneg %p60
      %p224 = pneg %p57
      %p225 = pneg %p81
      %p226 = pneg %p78
      %p227 = pneg %p102
      %p228 = pneg %p99
      %p229 = pneg %p123
      %p230 = pneg %p120
      %p231 = pneg %p149
      %p232 = pneg %p146
      %p233 = scmp.lt.s32.totalorder %s18, 10
      %s234 = scalar_select %p233, %s18, 10
      %s235 = smul.addr %s234, 4
      %s236 = scalar_lea.vmem %s5, %s235
      %p237 = pneg %p170
      %p238 = pneg %p167
      %p239 = scmp.lt.s32.totalorder %s18, 10
      %s240 = scalar_select %p239, %s18, 10
      %s241 = smul.addr %s240, 3
      %s242 = smul.addr %s241, 4
      %s243 = scalar_lea.vmem %s0, %s242
      %p244 = scmp.lt.s32.totalorder %s18, 10
      %s245 = scalar_select %p244, %s18, 10
      %s246 = smul.addr %s245, 4
      %s247 = scalar_lea.vmem %s5, %s246
      %p248 = scmp.eq.s32.totalorder %s18, 0
      // Predicated region
      $region41: #{_forward.14} parent=39 // pred_check
        %p249 = pneg %p248
      $region42: #{_forward.14} parent=39 // pred_check_branch
        %251 = sbr.rel (%p249) target = $region44
      $region43: #{_forward.14} parent=39 // pred_region
        %v252 = vld [vmem:[%s1] sm:$0xf]
        %253 = vst [vmem:[#allocation2] sm:$0xf] %v252
      $region44: #{_forward.14} parent=39 // pred_fallthru
        _
      %v254 = vld [vmem:[#allocation2] sm:$0xf]
      %v255 = vld [vmem:[%s243] sm:$0xff]
      %v256 = vld [vmem:[%s243 + $0x8] sm:$0xf]
      %v257 = vld [vmem:[%s3] sm:$0xff]
      %v258 = vld [vmem:[%s3 + $0x8] sm:$0xff]
      %v259 = vld [vmem:[%s3 + $0x10] sm:$0xff]
      %v260 = vld [vmem:[%s3 + $0x18] sm:$0xff]
      %v261 = vld [vmem:[%s3 + $0x20] sm:$0xff]
      %v262 = vld [vmem:[%s3 + $0x28] sm:$0xff]
      %v263 = vld [vmem:[%s3 + $0x30] sm:$0xff]
      %v264 = vld [vmem:[%s3 + $0x38] sm:$0xff]
      %v265 = vld [vmem:[%s3 + $0x40] sm:$0xff]
      %v266 = vld [vmem:[%s3 + $0x48] sm:$0xff]
      %v267 = vld [vmem:[%s3 + $0x50] sm:$0xff]
      %v268 = vld [vmem:[%s3 + $0x58] sm:$0xff]
      %v269 = vld [vmem:[%s3 + $0x60] sm:$0xff]
      %v270 = vld [vmem:[%s3 + $0x68] sm:$0xff]
      %v271 = vld [vmem:[%s3 + $0x70] sm:$0xff]
      %v272 = vld [vmem:[%s3 + $0x78] sm:$0xff]
      %v273 = vld [vmem:[%s3 + $0x80] sm:$0xff]
      %v274 = vld [vmem:[%s3 + $0x88] sm:$0xff]
      %v275 = vld [vmem:[%s3 + $0x90] sm:$0xff]
      %v276 = vld [vmem:[%s3 + $0x98] sm:$0xff]
      %v277 = vld [vmem:[%s3 + $0xa0] sm:$0xff]
      %v278 = vld [vmem:[%s3 + $0xa8] sm:$0xff]
      %v279 = vld [vmem:[%s3 + $0xb0] sm:$0xff]
      %v280 = vld [vmem:[%s3 + $0xb8] sm:$0xff]
      %v281 = vld [vmem:[%s3 + $0xc0] sm:$0xff]
      %v282 = vld [vmem:[%s3 + $0xc8] sm:$0xff]
      %v283 = vld [vmem:[%s3 + $0xd0] sm:$0xff]
      %v284 = vld [vmem:[%s3 + $0xd8] sm:$0xff]
      %v285 = vld [vmem:[%s3 + $0xe0] sm:$0xff]
      %v286 = vld [vmem:[%s3 + $0xe8] sm:$0xff]
      %v287 = vld [vmem:[%s3 + $0xf0] sm:$0xff]
      %v288 = vld [vmem:[%s3 + $0xf8] sm:$0xff]
      %v289 = vld [vmem:[%s3 + $0x100] sm:$0xff]
      %v290 = vld [vmem:[%s3 + $0x108] sm:$0xff]
      %v291 = vld [vmem:[%s3 + $0x110] sm:$0xff]
      %v292 = vld [vmem:[%s3 + $0x118] sm:$0xff]
      %v293 = vld [vmem:[%s3 + $0x120] sm:$0xff]
      %v294 = vld [vmem:[%s3 + $0x128] sm:$0xff]
      %v295 = vld [vmem:[%s3 + $0x130] sm:$0xff]
      %v296 = vld [vmem:[%s3 + $0x138] sm:$0xff]
      %v297 = vld [vmem:[%s3 + $0x140] sm:$0xff]
      %v298 = vld [vmem:[%s3 + $0x148] sm:$0xff]
      %v299 = vld [vmem:[%s3 + $0x150] sm:$0xff]
      %v300 = vld [vmem:[%s3 + $0x158] sm:$0xff]
      %v301 = vld [vmem:[%s3 + $0x160] sm:$0xff]
      %v302 = vld [vmem:[%s3 + $0x168] sm:$0xff]
      %v303 = vld [vmem:[%s3 + $0x170] sm:$0xff]
      %v304 = vld [vmem:[%s3 + $0x178] sm:$0xff]
      %v305 = vld [vmem:[%s4] sm:$0x7]
      %v307 = vlaneseq
      %v308 = vshrl.u32 %v307, 7
      %v309 = vsub.s32 0, %v308
      %v310 = vrot.slane %v305, %v309
      %v311 = vlaneseq
      %v312 = vshrl.u32 %v311, 7
      %v313 = vsub.s32 1, %v312
      %v314 = vrot.slane %v305, %v313
      %v315 = vlaneseq
      %v316 = vshrl.u32 %v315, 7
      %v317 = vsub.s32 2, %v316
      %v318 = vrot.slane %v305, %v317
      %322 = vmatprep.subr.mxu0 %v303
      %323 = vmatpush1.msra.mxu0 %v302
      %324 = vmatprep.subr.mxu0 %v300
      %325 = vmatpush1.msra.mxu0 %v299
      %326 = vmatprep.subr.mxu0 %v297
      %327 = vmatpush1.msra.mxu0 %v296
      %328 = vmatprep.subr.mxu0 %v294
      %329 = vmatpush1.msra.mxu0 %v293
      %330 = vmatprep.subr.mxu0 %v291
      %331 = vmatpush1.msra.mxu0 %v290
      %332 = vmatprep.subr.mxu0 %v288
      %333 = vmatpush1.msra.mxu0 %v287
      %334 = vmatprep.subr.mxu0 %v285
      %335 = vmatpush1.msra.mxu0 %v284
      %336 = vmatprep.subr.mxu0 %v282
      %337 = vmatpush1.msra.mxu0 %v281
      %338 = vmatprep.subr.mxu0 %v279
      %339 = vmatpush1.msra.mxu0 %v278
      %340 = vmatprep.subr.mxu0 %v276
      %341 = vmatpush1.msra.mxu0 %v275
      %342 = vmatprep.subr.mxu0 %v273
      %343 = vmatpush1.msra.mxu0 %v272
      %344 = vmatprep.subr.mxu0 %v270
      %345 = vmatpush1.msra.mxu0 %v269
      %346 = vmatprep.subr.mxu0 %v267
      %347 = vmatpush1.msra.mxu0 %v266
      %348 = vmatprep.subr.mxu0 %v264
      %349 = vmatpush1.msra.mxu0 %v263
      %350 = vmatprep.subr.mxu0 %v261
      %351 = vmatpush1.msra.mxu0 %v260
      %352 = vmatprep.subr.mxu0 %v258
      %353 = vmatpush1.msra.mxu0 %v257
      %354 = vmatprep.subr.mxu0 0.0
      %355 = vmatpush2.msra.mxu0 0.0
      %356 = vmatprep.subr.mxu0 0.0
      %357 = vmatpush2.msra.mxu0 0.0
      %358 = vmatprep.subr.mxu0 0.0
      %359 = vmatpush2.msra.mxu0 0.0
      %360 = vmatprep.subr.mxu0 0.0
      %361 = vmatpush2.msra.mxu0 0.0
      %362 = vmatprep.subr.mxu0 0.0
      %363 = vmatpush2.msra.mxu0 0.0
      %364 = vmatprep.subr.mxu0 0.0
      %365 = vmatpush2.msra.mxu0 0.0
      %366 = vmatprep.subr.mxu0 0.0
      %367 = vmatpush2.msra.mxu0 0.0
      %368 = vmatprep.subr.mxu0 0.0
      %369 = vmatpush2.msra.mxu0 0.0
      %370 = vmatprep.subr.mxu0 0.0
      %371 = vmatpush2.msra.mxu0 0.0
      %372 = vmatprep.subr.mxu0 0.0
      %373 = vmatpush2.msra.mxu0 0.0
      %374 = vmatprep.subr.mxu0 0.0
      %375 = vmatpush2.msra.mxu0 0.0
      %376 = vmatprep.subr.mxu0 0.0
      %377 = vmatpush2.msra.mxu0 0.0
      %378 = vmatprep.subr.mxu0 0.0
      %379 = vmatpush2.msra.mxu0 0.0
      %380 = vmatprep.subr.mxu0 0.0
      %381 = vmatpush2.msra.mxu0 0.0
      %382 = vmatprep.subr.mxu0 0.0
      %383 = vmatpush2.msra.mxu0 0.0
      %384 = vmatprep.subr.mxu0 0.0
      %385 = vmatpush2.msra.mxu0 0.0
      %386 = vmatprep.mubr.f32.mxu0 0.0
      %387 = vmatmul.mubr.f32.gmra.mxu0 %v254
      %v388 = vpop.f32.mrf.mxu0
      %v389 = vadd.f32 %v310, %v388
      %v390 = vpop.f32.mrf.mxu0
      %v391 = vadd.f32 %v314, %v390
      %392 = vdwg.mxu0
      %393 = vmatprep.subr.mxu0 0.0
      %394 = vmatpush1.msra.mxu0 %v304
      %395 = vmatprep.subr.mxu0 0.0
      %396 = vmatpush1.msra.mxu0 %v301
      %397 = vmatprep.subr.mxu0 0.0
      %398 = vmatpush1.msra.mxu0 %v298
      %399 = vmatprep.subr.mxu0 0.0
      %400 = vmatpush1.msra.mxu0 %v295
      %401 = vmatprep.subr.mxu0 0.0
      %402 = vmatpush1.msra.mxu0 %v292
      %403 = vmatprep.subr.mxu0 0.0
      %404 = vmatpush1.msra.mxu0 %v289
      %405 = vmatprep.subr.mxu0 0.0
      %406 = vmatpush1.msra.mxu0 %v286
      %407 = vmatprep.subr.mxu0 0.0
      %408 = vmatpush1.msra.mxu0 %v283
      %409 = vmatprep.subr.mxu0 0.0
      %410 = vmatpush1.msra.mxu0 %v280
      %411 = vmatprep.subr.mxu0 0.0
      %412 = vmatpush1.msra.mxu0 %v277
      %413 = vmatprep.subr.mxu0 0.0
      %414 = vmatpush1.msra.mxu0 %v274
      %415 = vmatprep.subr.mxu0 0.0
      %416 = vmatpush1.msra.mxu0 %v271
      %417 = vmatprep.subr.mxu0 0.0
      %418 = vmatpush1.msra.mxu0 %v268
      %419 = vmatprep.subr.mxu0 0.0
      %420 = vmatpush1.msra.mxu0 %v265
      %421 = vmatprep.subr.mxu0 0.0
      %422 = vmatpush1.msra.mxu0 %v262
      %423 = vmatprep.subr.mxu0 0.0
      %424 = vmatpush1.msra.mxu0 %v259
      %425 = vmatprep.subr.mxu0 0.0
      %426 = vmatpush2.msra.mxu0 0.0
      %427 = vmatprep.subr.mxu0 0.0
      %428 = vmatpush2.msra.mxu0 0.0
      %429 = vmatprep.subr.mxu0 0.0
      %430 = vmatpush2.msra.mxu0 0.0
      %431 = vmatprep.subr.mxu0 0.0
      %432 = vmatpush2.msra.mxu0 0.0
      %433 = vmatprep.subr.mxu0 0.0
      %434 = vmatpush2.msra.mxu0 0.0
      %435 = vmatprep.subr.mxu0 0.0
      %436 = vmatpush2.msra.mxu0 0.0
      %437 = vmatprep.subr.mxu0 0.0
      %438 = vmatpush2.msra.mxu0 0.0
      %439 = vmatprep.subr.mxu0 0.0
      %440 = vmatpush2.msra.mxu0 0.0
      %441 = vmatprep.subr.mxu0 0.0
      %442 = vmatpush2.msra.mxu0 0.0
      %443 = vmatprep.subr.mxu0 0.0
      %444 = vmatpush2.msra.mxu0 0.0
      %445 = vmatprep.subr.mxu0 0.0
      %446 = vmatpush2.msra.mxu0 0.0
      %447 = vmatprep.subr.mxu0 0.0
      %448 = vmatpush2.msra.mxu0 0.0
      %449 = vmatprep.subr.mxu0 0.0
      %450 = vmatpush2.msra.mxu0 0.0
      %451 = vmatprep.subr.mxu0 0.0
      %452 = vmatpush2.msra.mxu0 0.0
      %453 = vmatprep.subr.mxu0 0.0
      %454 = vmatpush2.msra.mxu0 0.0
      %455 = vmatprep.subr.mxu0 0.0
      %456 = vmatpush2.msra.mxu0 0.0
      %457 = vmatprep.mubr.f32.mxu0 0.0
      %458 = vmatmul.mubr.f32.gmra.mxu0 %v254
      %v459 = vpop.f32.mrf.mxu0
      %v460 = vadd.f32 %v318, %v459
      %v461 = vpop.f32.mrf.mxu0
      %462 = vdwg.mxu0
      %v463 = vadd.f32 %v255, %v389
      %v464 = vxor.u32 %v463, 2147483648
      %v465 = vmul.f32 %v464, 1.442695
      %v466 = vpow.pop %v465
      %v467 = vadd.f32 %v466, 1.0
      %v468 = vrcp.pop %v467
      %v469 = vmul.f32 1.0, %v468
      %v471 = vrot.slane %v255, 4
      %v473 = vadd.f32 %v471, %v391
      %v474 = vxor.u32 %v473, 2147483648
      %v475 = vmul.f32 %v474, 1.442695
      %v476 = vpow.pop %v475
      %v477 = vadd.f32 %v476, 1.0
      %v478 = vrcp.pop %v477
      %v479 = vmul.f32 1.0, %v478
      %v480 = vmul.f32 %v469, %v460
      %v481 = vadd.f32 %v256, %v480
      %v482 = vtanh.pop %v481
      %v483 = vsub.f32 1.0, %v479
      %v484 = vmul.f32 %v483, %v482
      %v485 = vmul.f32 %v479, %v254
      %v486 = vadd.f32 %v484, %v485
      %v487 = vld [vmem:[%s2] sm:$0xf]
      %v488 = vstv %s18
      %vm489 = vcmp.gt.s32.totalorder %v487, %v488
      %v490 = vsel %vm489, 1, 0
      %v491 = vcvt.s32.f32 %v490
      %493 = vset.pattern.permute.xlu0 0
      %494 = vperm.xlu0 %493, %v491
      %v495 = vpop.permute.xlu0 %494
      %v497 = vmul.f32 %v495, %v486
      %v498 = vsub.f32 1.0, %v491
      %500 = vset.pattern.permute.xlu0 0
      %501 = vperm.xlu0 %500, %v498
      %v502 = vpop.permute.xlu0 %501
      %v504 = vmul.f32 %v502, %v254
      %v505 = vadd.f32 %v497, %v504
      %506 = vst [vmem:[#allocation2] sm:$0xf] %v505
      %507 = vst [vmem:[%s247] sm:$0xf] %v497
      %508 = vst [vmem:[%s6] sm:$0xf] %v505
      %p509 = scmp.lt.s32.totalorder %s18, 10
      %s510 = scalar_select %p509, %s18, 10
      %s511 = smul.addr %s510, 4
      %s512 = scalar_lea.vmem %s5, %s511
      // Predicated region
      $region45: #{_forward.14} parent=39 // pred_check
        %p513 = pneg %p146
      $region46: #{_forward.14} parent=39 // pred_check_branch
        %515 = sbr.rel (%p513) target = $region48
      $region47: #{_forward.14} parent=39 // pred_region
        _
      $region48: #{_forward.14} parent=39 // pred_fallthru
        _
      // Predicated region
      $region49: #{_forward.14} parent=39 // pred_check
        %p516 = pneg %p167
      $region50: #{_forward.14} parent=39 // pred_check_branch
        %518 = sbr.rel (%p516) target = $region52
      $region51: #{_forward.14} parent=39 // pred_region
        _
      $region52: #{_forward.14} parent=39 // pred_fallthru
        _
      // Predicated region
      $region53: #{_forward.14} parent=39 // pred_check
        %p519 = pneg %p167
      $region54: #{_forward.14} parent=39 // pred_check_branch
        %521 = sbr.rel (%p519) target = $region56
      $region55: #{_forward.14} parent=39 // pred_region
        _
      $region56: #{_forward.14} parent=39 // pred_fallthru
        _
    $region40: #{_forward.14} parent=5 // pred_fallthru
      _
    %p522 = scmp.le.s32.totalorder 2, %s13
    // Predicated region
    $region57: #{_forward.14} parent=5 // pred_check
      %p523 = pneg %p522
    $region58: #{_forward.14} parent=5 // pred_check_branch
      %525 = sbr.rel (%p523) target = $region60
    $region59: #{_forward.14} parent=5 // pred_region
      %s526 = ssub.s32 %s13, 2
      // Predicated region
      $region61: #{_forward.14} parent=59 // pred_check
        %p527 = pneg %p152
      $region62: #{_forward.14} parent=59 // pred_check_branch
        %529 = sbr.rel (%p527) target = $region64
      $region63: #{_forward.14} parent=59 // pred_region
        %p530 = scmp.lt.s32.totalorder %s19, 10
        %s531 = scalar_select %p530, %s19, 10
        %s532 = smul.addr %s531, 4
        %s533 = scalar_lea.vmem %s5, %s532
      $region64: #{_forward.14} parent=59 // pred_fallthru
        _
    $region60: #{_forward.14} parent=5 // pred_fallthru
      _
  $region6: #{_forward.14} parent=0 // loop_footer
    %s17 = sadd.s32 1, %s13
  $region7: #{_forward.14} parent=0 // loop_footer_branch
    %12 = sbr.rel target = $region3
  $region8: #{_forward.14} parent=0 // loop_exit
    _

// kernel: _forward.13
$region0: #{_forward.13}
  #allocation0 [shape = 'u32[]', space=smem, size = 0x4, offset = 0x4, fixed_abs, tag = 'smem constant byte address 0x4 - core index']
  #allocation1 [shape = 'u32[144,128]{1,0:T(1,128)}', space=vmem, size = 0x12000, scoped, tag = 'internal scratch']
  %s0 = inlined_call_operand.vmem [shape: f32[44,64], index: 0, kind: input, shape index: {}]
  %s1 = inlined_call_operand.vmem [shape: f32[64,384], index: 1, kind: input, shape index: {}]
  %s2 = inlined_call_operand.vmem [shape: f32[1,384], index: 2, kind: input, shape index: {}]
  %s3 = inlined_call_operand.vmem [shape: f32[44,384], index: 3, kind: output, shape index: {}]
  %s4 = sld [smem:[#allocation0]]
  $region22: #{_forward.13} parent=0
    _
  %s6 = ssub.s32 1, %s4
  %s7 = scalar_select 0, %s6, %s4
  // Predicated region
  $region2: #{_forward.13} parent=0 // pred_check
    _
  $region3: #{_forward.13} parent=0 // pred_check_branch
    %9 = sbr.rel (0) target = $region5
  $region4: #{_forward.13} parent=0 // pred_region
    _
  $region5: #{_forward.13} parent=0 // pred_fallthru
    _
  // Predicated region
  $region6: #{_forward.13} parent=0 // pred_check
    _
  $region7: #{_forward.13} parent=0 // pred_check_branch
    %11 = sbr.rel (0) target = $region9
  $region8: #{_forward.13} parent=0 // pred_region
    _
  $region9: #{_forward.13} parent=0 // pred_fallthru
    _
  // Predicated region
  $region10: #{_forward.13} parent=0 // pred_check
    _
  $region11: #{_forward.13} parent=0 // pred_check_branch
    %13 = sbr.rel (0) target = $region13
  $region12: #{_forward.13} parent=0 // pred_region
    _
  $region13: #{_forward.13} parent=0 // pred_fallthru
    _
  %v15 = vld [vmem:[%s0] sm:$0xff]
  %v16 = vld [vmem:[%s0 + $0x8] sm:$0xff]
  %v17 = vld [vmem:[%s0 + $0x10] sm:$0xff]
  %v18 = vld [vmem:[%s0 + $0x18] sm:$0xff]
  %v19 = vld [vmem:[%s0 + $0x20] sm:$0xff]
  %v20 = vld [vmem:[%s0 + $0x28] sm:$0xf]
  %v21 = vpack.c.bf16 %v16, %v15
  %v22 = vpack.c.bf16 %v18, %v17
  %v23 = vpack.c.bf16 %v20, %v19
  %v24 = vld [vmem:[%s1] sm:$0xff]
  %v25 = vld [vmem:[%s1 + $0x8] sm:$0xff]
  %v26 = vld [vmem:[%s1 + $0x10] sm:$0xff]
  %v27 = vld [vmem:[%s1 + $0x18] sm:$0xff]
  %v28 = vld [vmem:[%s1 + $0x20] sm:$0xff]
  %v29 = vld [vmem:[%s1 + $0x28] sm:$0xff]
  %v30 = vld [vmem:[%s1 + $0x30] sm:$0xff]
  %v31 = vld [vmem:[%s1 + $0x38] sm:$0xff]
  %v32 = vld [vmem:[%s1 + $0x40] sm:$0xff]
  %v33 = vld [vmem:[%s1 + $0x48] sm:$0xff]
  %v34 = vld [vmem:[%s1 + $0x50] sm:$0xff]
  %v35 = vld [vmem:[%s1 + $0x58] sm:$0xff]
  %v36 = vld [vmem:[%s1 + $0x60] sm:$0xff]
  %v37 = vld [vmem:[%s1 + $0x68] sm:$0xff]
  %v38 = vld [vmem:[%s1 + $0x70] sm:$0xff]
  %v39 = vld [vmem:[%s1 + $0x78] sm:$0xff]
  %v40 = vld [vmem:[%s1 + $0x80] sm:$0xff]
  %v41 = vld [vmem:[%s1 + $0x88] sm:$0xff]
  %v42 = vld [vmem:[%s1 + $0x90] sm:$0xff]
  %v43 = vld [vmem:[%s1 + $0x98] sm:$0xff]
  %v44 = vld [vmem:[%s1 + $0xa0] sm:$0xff]
  %v45 = vld [vmem:[%s1 + $0xa8] sm:$0xff]
  %v46 = vld [vmem:[%s1 + $0xb0] sm:$0xff]
  %v47 = vld [vmem:[%s1 + $0xb8] sm:$0xff]
  %v48 = vpack.c.bf16 %v27, %v24
  %v49 = vpack.c.bf16 %v28, %v25
  %v50 = vpack.c.bf16 %v29, %v26
  %v51 = vpack.c.bf16 %v33, %v30
  %v52 = vpack.c.bf16 %v34, %v31
  %v53 = vpack.c.bf16 %v35, %v32
  %v54 = vpack.c.bf16 %v39, %v36
  %v55 = vpack.c.bf16 %v40, %v37
  %v56 = vpack.c.bf16 %v41, %v38
  %v57 = vpack.c.bf16 %v45, %v42
  %v58 = vpack.c.bf16 %v46, %v43
  %v59 = vpack.c.bf16 %v47, %v44
  %v60 = vld [vmem:[%s2] sm:$0x7]
  %v62 = vlaneseq
  %v63 = vshrl.u32 %v62, 7
  %v64 = vsub.s32 0, %v63
  %v65 = vrot.slane %v60, %v64
  %v66 = vlaneseq
  %v67 = vshrl.u32 %v66, 7
  %v68 = vsub.s32 1, %v67
  %v69 = vrot.slane %v60, %v68
  %v70 = vlaneseq
  %v71 = vshrl.u32 %v70, 7
  %v72 = vsub.s32 2, %v71
  %v73 = vrot.slane %v60, %v72
  %vm77 = vcmask 523264
  %v79 = vsel %vm77, %v21, 0
  %v82 = vsel %vm77, %v22, 0
  %v85 = vsel %vm77, %v23, 0
  %87 = vmatprep.subr.bf16.mxu0 0
  %88 = vmatpush1.bf16.msra.mxu0 0
  %89 = vmatprep.subr.bf16.mxu0 0
  %90 = vmatpush1.bf16.msra.mxu0 0
  %91 = vmatprep.subr.bf16.mxu0 0
  %92 = vmatpush1.bf16.msra.mxu0 0
  %93 = vmatprep.subr.bf16.mxu0 0
  %94 = vmatpush1.bf16.msra.mxu0 0
  %95 = vmatprep.subr.bf16.mxu0 %v58
  %96 = vmatpush1.bf16.msra.mxu0 %v57
  %97 = vmatprep.subr.bf16.mxu0 %v55
  %98 = vmatpush1.bf16.msra.mxu0 %v54
  %99 = vmatprep.subr.bf16.mxu0 %v52
  %100 = vmatpush1.bf16.msra.mxu0 %v51
  %101 = vmatprep.subr.bf16.mxu0 %v49
  %102 = vmatpush1.bf16.msra.mxu0 %v48
  %103 = vmatprep.subr.bf16.mxu0 0
  %104 = vmatpush2.bf16.msra.mxu0 0
  %105 = vmatprep.subr.bf16.mxu0 0
  %106 = vmatpush2.bf16.msra.mxu0 0
  %107 = vmatprep.subr.bf16.mxu0 0
  %108 = vmatpush2.bf16.msra.mxu0 0
  %109 = vmatprep.subr.bf16.mxu0 0
  %110 = vmatpush2.bf16.msra.mxu0 0
  %111 = vmatprep.subr.bf16.mxu0 0
  %112 = vmatpush2.bf16.msra.mxu0 0
  %113 = vmatprep.subr.bf16.mxu0 0
  %114 = vmatpush2.bf16.msra.mxu0 0
  %115 = vmatprep.subr.bf16.mxu0 0
  %116 = vmatpush2.bf16.msra.mxu0 0
  %117 = vmatprep.subr.bf16.mxu0 0
  %118 = vmatpush2.bf16.msra.mxu0 0
  %119 = vmatprep.mubr.bf16.mxu0 0
  %120 = vmatmul.mubr.bf16.gmra.mxu0 %v79
  %v121 = vpop.f32.mrf.mxu0
  %v122 = vadd.f32 %v65, %v121
  %v123 = vpop.f32.mrf.mxu0
  %v124 = vadd.f32 %v69, %v123
  %v125 = vpop.f32.mrf.mxu0
  %v126 = vadd.f32 %v65, %v125
  %v127 = vpop.f32.mrf.mxu0
  %v128 = vadd.f32 %v69, %v127
  %129 = vmatprep.mubr.bf16.mxu0 0
  %130 = vmatmul.mubr.bf16.gmra.mxu0 %v82
  %v131 = vpop.f32.mrf.mxu0
  %v132 = vadd.f32 %v65, %v131
  %v133 = vpop.f32.mrf.mxu0
  %v134 = vadd.f32 %v69, %v133
  %v135 = vpop.f32.mrf.mxu0
  %v136 = vadd.f32 %v65, %v135
  %v137 = vpop.f32.mrf.mxu0
  %v138 = vadd.f32 %v69, %v137
  %139 = vmatprep.mubr.bf16.mxu0 0
  %140 = vmatmul.mubr.bf16.gmra.mxu0 %v85
  %v141 = vpop.f32.mrf.mxu0
  %v142 = vadd.f32 %v65, %v141
  %v143 = vpop.f32.mrf.mxu0
  %v144 = vadd.f32 %v69, %v143
  %v145 = vpop.f32.mrf.mxu0
  %v146 = vadd.f32 %v65, %v145
  %v147 = vpop.f32.mrf.mxu0
  %v148 = vadd.f32 %v69, %v147
  %149 = vdwg.mxu0
  %150 = vmatprep.subr.bf16.mxu0 0
  %151 = vmatpush1.bf16.msra.mxu0 0
  %152 = vmatprep.subr.bf16.mxu0 0
  %153 = vmatpush1.bf16.msra.mxu0 0
  %154 = vmatprep.subr.bf16.mxu0 0
  %155 = vmatpush1.bf16.msra.mxu0 0
  %156 = vmatprep.subr.bf16.mxu0 0
  %157 = vmatpush1.bf16.msra.mxu0 0
  %158 = vmatprep.subr.bf16.mxu0 0
  %159 = vmatpush1.bf16.msra.mxu0 %v59
  %160 = vmatprep.subr.bf16.mxu0 0
  %161 = vmatpush1.bf16.msra.mxu0 %v56
  %162 = vmatprep.subr.bf16.mxu0 0
  %163 = vmatpush1.bf16.msra.mxu0 %v53
  %164 = vmatprep.subr.bf16.mxu0 0
  %165 = vmatpush1.bf16.msra.mxu0 %v50
  %166 = vmatprep.subr.bf16.mxu0 0
  %167 = vmatpush2.bf16.msra.mxu0 0
  %168 = vmatprep.subr.bf16.mxu0 0
  %169 = vmatpush2.bf16.msra.mxu0 0
  %170 = vmatprep.subr.bf16.mxu0 0
  %171 = vmatpush2.bf16.msra.mxu0 0
  %172 = vmatprep.subr.bf16.mxu0 0
  %173 = vmatpush2.bf16.msra.mxu0 0
  %174 = vmatprep.subr.bf16.mxu0 0
  %175 = vmatpush2.bf16.msra.mxu0 0
  %176 = vmatprep.subr.bf16.mxu0 0
  %177 = vmatpush2.bf16.msra.mxu0 0
  %178 = vmatprep.subr.bf16.mxu0 0
  %179 = vmatpush2.bf16.msra.mxu0 0
  %180 = vmatprep.subr.bf16.mxu0 0
  %181 = vmatpush2.bf16.msra.mxu0 0
  %182 = vmatprep.mubr.bf16.mxu0 0
  %183 = vmatmul.mubr.bf16.gmra.mxu0 %v79
  %v184 = vpop.f32.mrf.mxu0
  %v185 = vadd.f32 %v73, %v184
  %v186 = vpop.f32.mrf.mxu0
  %v187 = vpop.f32.mrf.mxu0
  %v188 = vadd.f32 %v73, %v187
  %v189 = vpop.f32.mrf.mxu0
  %190 = vmatprep.mubr.bf16.mxu0 0
  %191 = vmatmul.mubr.bf16.gmra.mxu0 %v82
  %v192 = vpop.f32.mrf.mxu0
  %v193 = vadd.f32 %v73, %v192
  %v194 = vpop.f32.mrf.mxu0
  %v195 = vpop.f32.mrf.mxu0
  %v196 = vadd.f32 %v73, %v195
  %v197 = vpop.f32.mrf.mxu0
  %198 = vmatprep.mubr.bf16.mxu0 0
  %199 = vmatmul.mubr.bf16.gmra.mxu0 %v85
  %v200 = vpop.f32.mrf.mxu0
  %v201 = vadd.f32 %v73, %v200
  %v202 = vpop.f32.mrf.mxu0
  %v203 = vpop.f32.mrf.mxu0
  %v204 = vadd.f32 %v73, %v203
  %v205 = vpop.f32.mrf.mxu0
  %206 = vdwg.mxu0
  %207 = vst [vmem:[%s3] sm:$0xff] %v122
  %208 = vst [vmem:[%s3 + $0x8] sm:$0xff] %v124
  %209 = vst [vmem:[%s3 + $0x10] sm:$0xff] %v185
  %210 = vst [vmem:[%s3 + $0x18] sm:$0xff] %v126
  %211 = vst [vmem:[%s3 + $0x20] sm:$0xff] %v128
  %212 = vst [vmem:[%s3 + $0x28] sm:$0xff] %v188
  %213 = vst [vmem:[%s3 + $0x30] sm:$0xff] %v132
  %214 = vst [vmem:[%s3 + $0x38] sm:$0xff] %v134
  %215 = vst [vmem:[%s3 + $0x40] sm:$0xff] %v193
  %216 = vst [vmem:[%s3 + $0x48] sm:$0xff] %v136
  %217 = vst [vmem:[%s3 + $0x50] sm:$0xff] %v138
  %218 = vst [vmem:[%s3 + $0x58] sm:$0xff] %v196
  %219 = vst [vmem:[%s3 + $0x60] sm:$0xff] %v142
  %220 = vst [vmem:[%s3 + $0x68] sm:$0xff] %v144
  %221 = vst [vmem:[%s3 + $0x70] sm:$0xff] %v201
  %222 = vst [vmem:[%s3 + $0x78] sm:$0xf] %v146
  %223 = vst [vmem:[%s3 + $0x80] sm:$0xf] %v148
  %224 = vst [vmem:[%s3 + $0x88] sm:$0xf] %v204
  // Predicated region
  $region14: #{_forward.13} parent=0 // pred_check
    _
  $region15: #{_forward.13} parent=0 // pred_check_branch
    %226 = sbr.rel (0) target = $region17
  $region16: #{_forward.13} parent=0 // pred_region
    _
  $region17: #{_forward.13} parent=0 // pred_fallthru
    _
  // Predicated region
  $region18: #{_forward.13} parent=0 // pred_check
    _
  $region19: #{_forward.13} parent=0 // pred_check_branch
    %228 = sbr.rel (0) target = $region21
  $region20: #{_forward.13} parent=0 // pred_region
    _
  $region21: #{_forward.13} parent=0 // pred_fallthru
    _

// kernel: _forward.15
$region0: #{_forward.15}
  #allocation0 [shape = 'u32[]', space=smem, size = 0x4, offset = 0x4, fixed_abs, tag = 'smem constant byte address 0x4 - core index']
  #allocation1 [shape = 'u32[144,128]{1,0:T(1,128)}', space=vmem, size = 0x12000, scoped, tag = 'internal scratch']
  #allocation2 [shape = 'f32[1,1]{1,0:T(1,128)S(1)}', space=vmem, size = 0x200, scoped, tag = 'scoped memory for _forward.15']
  %s0 = inlined_call_operand.vmem [shape: f32[4,11,128], index: 0, kind: input, shape index: {}]
  %s1 = inlined_call_operand.vmem [shape: f32[4,16,256], index: 1, kind: input, shape index: {}]
  %s2 = inlined_call_operand.vmem [shape: f32[4,5,64], index: 2, kind: input, shape index: {}]
  %s3 = inlined_call_operand.vmem [shape: f32[4,1,128], index: 3, kind: input, shape index: {}]
  %s4 = inlined_call_operand.vmem [shape: s32[4,4,1], index: 4, kind: input, shape index: {}]
  %s5 = inlined_call_operand.vmem [shape: f32[256,128], index: 5, kind: input, shape index: {}]
  %s6 = inlined_call_operand.vmem [shape: f32[384,128], index: 6, kind: input, shape index: {}]
  %s7 = inlined_call_operand.vmem [shape: f32[1,128], index: 7, kind: input, shape index: {}]
  %s8 = inlined_call_operand.vmem [shape: f32[64,128], index: 8, kind: input, shape index: {}]
  %s9 = inlined_call_operand.vmem [shape: f32[192,128], index: 9, kind: input, shape index: {}]
  %s10 = inlined_call_operand.vmem [shape: f32[1,128], index: 10, kind: input, shape index: {}]
  %s11 = inlined_call_operand.vmem [shape: f32[128,256], index: 11, kind: input, shape index: {}]
  %s12 = inlined_call_operand.vmem [shape: f32[1,256], index: 12, kind: input, shape index: {}]
  %s13 = inlined_call_operand.vmem [shape: f32[128,4], index: 13, kind: input, shape index: {}]
  %s14 = inlined_call_operand.vmem [shape: f32[1,4], index: 14, kind: input, shape index: {}]
  %s15 = inlined_call_operand.vmem [shape: f32[128,1], index: 15, kind: input, shape index: {}]
  %s16 = inlined_call_operand.<no memory space> [shape: f32[1,1], index: 16, kind: input, shape index: {}]
  %s17 = inlined_call_operand.vmem [shape: f32[1,256], index: 17, kind: input, shape index: {}]
  %s18 = inlined_call_operand.vmem [shape: f32[1,11,1], index: 18, kind: input, shape index: {}]
  %s19 = inlined_call_operand.vmem [shape: f32[4,11,256], index: 19, kind: output, shape index: {0}]
  %s20 = inlined_call_operand.vmem [shape: f32[4,11,16], index: 20, kind: output, shape index: {1}]
  %21 = xla_tuple %s19, %s20
  %s22 = sld [smem:[#allocation0]]
  $region117: #{_forward.15} parent=0
    _
  %s24 = ssub.s32 1, %s22
  %s25 = scalar_select 0, %s24, %s22
  %v26 = vstv %s16
  %27 = vst [vmem:[#allocation2] sm:$0x1] %v26
  loop: start=0, step=1, limit=6
  $region2: #{_forward.15} parent=0 // loop_pre_header
    _
  $region3: #{_forward.15} parent=0 // loop_header
    %s29 = sphi 0, %s33
    %p30 = scmp.ge.s32.totalorder %s29, 6
    %s39 = sphi 0, %s41
    %s42 = sphi 0, %s39
    %s43 = sphi 0, %s42
    %s59 = sphi 0, %s43
    %s65 = sphi 0, %s67
    %s68 = sphi 0, %s65
    %s69 = sphi 0, %s68
    %s85 = sphi 0, %s69
    %s91 = sphi 0, %s93
    %s94 = sphi 0, %s91
    %s95 = sphi 0, %s94
    %s111 = sphi 0, %s95
    %s117 = sphi 0, %s119
    %s120 = sphi 0, %s117
    %s121 = sphi 0, %s120
    %s137 = sphi 0, %s121
    %s143 = sphi 0, %s145
    %s146 = sphi 0, %s143
    %s147 = sphi 0, %s146
    %s163 = sphi 0, %s147
    %s167 = sphi 0, %s167
    %s169 = sphi 0, %s167
    %s170 = sphi 0, %s169
    %s184 = sphi 0, %s170
    %s188 = sphi 0, %s188
    %s190 = sphi 0, %s188
    %s191 = sphi 0, %s190
    %s205 = sphi 0, %s191
    %s209 = sphi 0, %s209
    %s211 = sphi 0, %s209
    %s212 = sphi 0, %s211
    %s226 = sphi 0, %s212
    %s230 = sphi 0, %s230
    %s232 = sphi 0, %s230
    %s233 = sphi 0, %s232
    %s247 = sphi 0, %s233
    %s251 = sphi 0, %s251
    %s253 = sphi 0, %s251
    %s254 = sphi 0, %s253
    %s268 = sphi 0, %s254
    %s272 = sphi 0, %s272
    %s274 = sphi 0, %s272
    %s275 = sphi 0, %s274
    %s289 = sphi 0, %s275
    %s293 = sphi 0, %s293
    %s295 = sphi 0, %s293
    %s296 = sphi 0, %s295
    %s310 = sphi 0, %s296
    %s314 = sphi 0, %s314
    %s316 = sphi 0, %s314
    %s317 = sphi 0, %s316
    %s331 = sphi 0, %s317
    %s335 = sphi 0, %s335
    %s337 = sphi 0, %s335
    %s338 = sphi 0, %s337
    %s352 = sphi 0, %s338
    %s356 = sphi 0, %s356
    %s358 = sphi 0, %s356
    %s359 = sphi 0, %s358
    %s373 = sphi 0, %s359
    %s377 = sphi 0, %s377
    %s379 = sphi 0, %s377
    %s380 = sphi 0, %s379
    %s394 = sphi 0, %s380
    %s398 = sphi 0, %s398
    %s400 = sphi 0, %s398
    %s401 = sphi 0, %s400
    %s415 = sphi 0, %s401
    %s419 = sphi 0, %s419
    %s421 = sphi 0, %s419
    %s422 = sphi 0, %s421
    %s436 = sphi 0, %s422
    %s440 = sphi 0, %s440
    %s442 = sphi 0, %s440
    %s443 = sphi 0, %s442
    %s457 = sphi 0, %s443
    %s463 = sphi 0, %s465
    %s466 = sphi 0, %s463
    %s467 = sphi 0, %s466
    %s483 = sphi 0, %s467
    %s489 = sphi 0, %s491
    %s492 = sphi 0, %s489
    %s493 = sphi 0, %s492
    %s509 = sphi 0, %s493
  $region4: #{_forward.15} parent=0 // loop_header_branch
    %32 = sbr.rel (%p30) target = $region8
  $region5: #{_forward.15} parent=0 // loop_body
    %s34 = ssub.s32 %s29, 1
    %s35 = ssub.s32 %s29, 2
    %s36 = sadd.s32 %s29, 1
    %s37 = ssub.s32 %s29, %s36
    %p38 = scmp.eq.s32.totalorder %s37, 0
    %s40 = sadd.s32 %s39, 1
    %s41 = scalar_select %p38, %s39, %s40
    %p44 = pneg %p38
    %p45 = scmp.eq.s32.totalorder %s29, 3
    %p46 = por %p44, %p45
    %p47 = scmp.ne.s32.totalorder %s39, %s42
    %p48 = scmp.eq.s32.totalorder %s29, 0
    %p49 = por %p47, %p48
    %p50 = scmp.ne.s32.totalorder %s39, %s42
    %p51 = scmp.eq.s32.totalorder %s34, 3
    %p52 = por %p50, %p51
    %p53 = scmp.ne.s32.totalorder %s42, %s43
    %p54 = scmp.eq.s32.totalorder %s34, 0
    %p55 = por %p53, %p54
    %p56 = scmp.ne.s32.totalorder %s42, %s43
    %p57 = scmp.eq.s32.totalorder %s35, 3
    %p58 = por %p56, %p57
    %p60 = scmp.ne.s32.totalorder %s43, %s59
    %p61 = scmp.eq.s32.totalorder %s35, 0
    %p62 = por %p60, %p61
    %s63 = ssub.s32 %s29, %s36
    %p64 = scmp.eq.s32.totalorder %s63, 0
    %s66 = sadd.s32 %s65, 1
    %s67 = scalar_select %p64, %s65, %s66
    %p70 = pneg %p64
    %p71 = scmp.eq.s32.totalorder %s29, 3
    %p72 = por %p70, %p71
    %p73 = scmp.ne.s32.totalorder %s65, %s68
    %p74 = scmp.eq.s32.totalorder %s29, 0
    %p75 = por %p73, %p74
    %p76 = scmp.ne.s32.totalorder %s65, %s68
    %p77 = scmp.eq.s32.totalorder %s34, 3
    %p78 = por %p76, %p77
    %p79 = scmp.ne.s32.totalorder %s68, %s69
    %p80 = scmp.eq.s32.totalorder %s34, 0
    %p81 = por %p79, %p80
    %p82 = scmp.ne.s32.totalorder %s68, %s69
    %p83 = scmp.eq.s32.totalorder %s35, 3
    %p84 = por %p82, %p83
    %p86 = scmp.ne.s32.totalorder %s69, %s85
    %p87 = scmp.eq.s32.totalorder %s35, 0
    %p88 = por %p86, %p87
    %s89 = ssub.s32 %s29, %s36
    %p90 = scmp.eq.s32.totalorder %s89, 0
    %s92 = sadd.s32 %s91, 1
    %s93 = scalar_select %p90, %s91, %s92
    %p96 = pneg %p90
    %p97 = scmp.eq.s32.totalorder %s29, 3
    %p98 = por %p96, %p97
    %p99 = scmp.ne.s32.totalorder %s91, %s94
    %p100 = scmp.eq.s32.totalorder %s29, 0
    %p101 = por %p99, %p100
    %p102 = scmp.ne.s32.totalorder %s91, %s94
    %p103 = scmp.eq.s32.totalorder %s34, 3
    %p104 = por %p102, %p103
    %p105 = scmp.ne.s32.totalorder %s94, %s95
    %p106 = scmp.eq.s32.totalorder %s34, 0
    %p107 = por %p105, %p106
    %p108 = scmp.ne.s32.totalorder %s94, %s95
    %p109 = scmp.eq.s32.totalorder %s35, 3
    %p110 = por %p108, %p109
    %p112 = scmp.ne.s32.totalorder %s95, %s111
    %p113 = scmp.eq.s32.totalorder %s35, 0
    %p114 = por %p112, %p113
    %s115 = ssub.s32 %s29, %s36
    %p116 = scmp.eq.s32.totalorder %s115, 0
    %s118 = sadd.s32 %s117, 1
    %s119 = scalar_select %p116, %s117, %s118
    %p122 = pneg %p116
    %p123 = scmp.eq.s32.totalorder %s29, 3
    %p124 = por %p122, %p123
    %p125 = scmp.ne.s32.totalorder %s117, %s120
    %p126 = scmp.eq.s32.totalorder %s29, 0
    %p127 = por %p125, %p126
    %p128 = scmp.ne.s32.totalorder %s117, %s120
    %p129 = scmp.eq.s32.totalorder %s34, 3
    %p130 = por %p128, %p129
    %p131 = scmp.ne.s32.totalorder %s120, %s121
    %p132 = scmp.eq.s32.totalorder %s34, 0
    %p133 = por %p131, %p132
    %p134 = scmp.ne.s32.totalorder %s120, %s121
    %p135 = scmp.eq.s32.totalorder %s35, 3
    %p136 = por %p134, %p135
    %p138 = scmp.ne.s32.totalorder %s121, %s137
    %p139 = scmp.eq.s32.totalorder %s35, 0
    %p140 = por %p138, %p139
    %s141 = ssub.s32 %s29, %s36
    %p142 = scmp.eq.s32.totalorder %s141, 0
    %s144 = sadd.s32 %s143, 1
    %s145 = scalar_select %p142, %s143, %s144
    %p148 = pneg %p142
    %p149 = scmp.eq.s32.totalorder %s29, 3
    %p150 = por %p148, %p149
    %p151 = scmp.ne.s32.totalorder %s143, %s146
    %p152 = scmp.eq.s32.totalorder %s29, 0
    %p153 = por %p151, %p152
    %p154 = scmp.ne.s32.totalorder %s143, %s146
    %p155 = scmp.eq.s32.totalorder %s34, 3
    %p156 = por %p154, %p155
    %p157 = scmp.ne.s32.totalorder %s146, %s147
    %p158 = scmp.eq.s32.totalorder %s34, 0
    %p159 = por %p157, %p158
    %p160 = scmp.ne.s32.totalorder %s146, %s147
    %p161 = scmp.eq.s32.totalorder %s35, 3
    %p162 = por %p160, %p161
    %p164 = scmp.ne.s32.totalorder %s147, %s163
    %p165 = scmp.eq.s32.totalorder %s35, 0
    %p166 = por %p164, %p165
    %s168 = sadd.s32 %s167, 1
    %p171 = scmp.eq.s32.totalorder %s29, 3
    %p172 = scmp.ne.s32.totalorder %s167, %s169
    %p173 = scmp.eq.s32.totalorder %s29, 0
    %p174 = por %p172, %p173
    %p175 = scmp.ne.s32.totalorder %s167, %s169
    %p176 = scmp.eq.s32.totalorder %s34, 3
    %p177 = por %p175, %p176
    %p178 = scmp.ne.s32.totalorder %s169, %s170
    %p179 = scmp.eq.s32.totalorder %s34, 0
    %p180 = por %p178, %p179
    %p181 = scmp.ne.s32.totalorder %s169, %s170
    %p182 = scmp.eq.s32.totalorder %s35, 3
    %p183 = por %p181, %p182
    %p185 = scmp.ne.s32.totalorder %s170, %s184
    %p186 = scmp.eq.s32.totalorder %s35, 0
    %p187 = por %p185, %p186
    %s189 = sadd.s32 %s188, 1
    %p192 = scmp.eq.s32.totalorder %s29, 3
    %p193 = scmp.ne.s32.totalorder %s188, %s190
    %p194 = scmp.eq.s32.totalorder %s29, 0
    %p195 = por %p193, %p194
    %p196 = scmp.ne.s32.totalorder %s188, %s190
    %p197 = scmp.eq.s32.totalorder %s34, 3
    %p198 = por %p196, %p197
    %p199 = scmp.ne.s32.totalorder %s190, %s191
    %p200 = scmp.eq.s32.totalorder %s34, 0
    %p201 = por %p199, %p200
    %p202 = scmp.ne.s32.totalorder %s190, %s191
    %p203 = scmp.eq.s32.totalorder %s35, 3
    %p204 = por %p202, %p203
    %p206 = scmp.ne.s32.totalorder %s191, %s205
    %p207 = scmp.eq.s32.totalorder %s35, 0
    %p208 = por %p206, %p207
    %s210 = sadd.s32 %s209, 1
    %p213 = scmp.eq.s32.totalorder %s29, 3
    %p214 = scmp.ne.s32.totalorder %s209, %s211
    %p215 = scmp.eq.s32.totalorder %s29, 0
    %p216 = por %p214, %p215
    %p217 = scmp.ne.s32.totalorder %s209, %s211
    %p218 = scmp.eq.s32.totalorder %s34, 3
    %p219 = por %p217, %p218
    %p220 = scmp.ne.s32.totalorder %s211, %s212
    %p221 = scmp.eq.s32.totalorder %s34, 0
    %p222 = por %p220, %p221
    %p223 = scmp.ne.s32.totalorder %s211, %s212
    %p224 = scmp.eq.s32.totalorder %s35, 3
    %p225 = por %p223, %p224
    %p227 = scmp.ne.s32.totalorder %s212, %s226
    %p228 = scmp.eq.s32.totalorder %s35, 0
    %p229 = por %p227, %p228
    %s231 = sadd.s32 %s230, 1
    %p234 = scmp.eq.s32.totalorder %s29, 3
    %p235 = scmp.ne.s32.totalorder %s230, %s232
    %p236 = scmp.eq.s32.totalorder %s29, 0
    %p237 = por %p235, %p236
    %p238 = scmp.ne.s32.totalorder %s230, %s232
    %p239 = scmp.eq.s32.totalorder %s34, 3
    %p240 = por %p238, %p239
    %p241 = scmp.ne.s32.totalorder %s232, %s233
    %p242 = scmp.eq.s32.totalorder %s34, 0
    %p243 = por %p241, %p242
    %p244 = scmp.ne.s32.totalorder %s232, %s233
    %p245 = scmp.eq.s32.totalorder %s35, 3
    %p246 = por %p244, %p245
    %p248 = scmp.ne.s32.totalorder %s233, %s247
    %p249 = scmp.eq.s32.totalorder %s35, 0
    %p250 = por %p248, %p249
    %s252 = sadd.s32 %s251, 1
    %p255 = scmp.eq.s32.totalorder %s29, 3
    %p256 = scmp.ne.s32.totalorder %s251, %s253
    %p257 = scmp.eq.s32.totalorder %s29, 0
    %p258 = por %p256, %p257
    %p259 = scmp.ne.s32.totalorder %s251, %s253
    %p260 = scmp.eq.s32.totalorder %s34, 3
    %p261 = por %p259, %p260
    %p262 = scmp.ne.s32.totalorder %s253, %s254
    %p263 = scmp.eq.s32.totalorder %s34, 0
    %p264 = por %p262, %p263
    %p265 = scmp.ne.s32.totalorder %s253, %s254
    %p266 = scmp.eq.s32.totalorder %s35, 3
    %p267 = por %p265, %p266
    %p269 = scmp.ne.s32.totalorder %s254, %s268
    %p270 = scmp.eq.s32.totalorder %s35, 0
    %p271 = por %p269, %p270
    %s273 = sadd.s32 %s272, 1
    %p276 = scmp.eq.s32.totalorder %s29, 3
    %p277 = scmp.ne.s32.totalorder %s272, %s274
    %p278 = scmp.eq.s32.totalorder %s29, 0
    %p279 = por %p277, %p278
    %p280 = scmp.ne.s32.totalorder %s272, %s274
    %p281 = scmp.eq.s32.totalorder %s34, 3
    %p282 = por %p280, %p281
    %p283 = scmp.ne.s32.totalorder %s274, %s275
    %p284 = scmp.eq.s32.totalorder %s34, 0
    %p285 = por %p283, %p284
    %p286 = scmp.ne.s32.totalorder %s274, %s275
    %p287 = scmp.eq.s32.totalorder %s35, 3
    %p288 = por %p286, %p287
    %p290 = scmp.ne.s32.totalorder %s275, %s289
    %p291 = scmp.eq.s32.totalorder %s35, 0
    %p292 = por %p290, %p291
    %s294 = sadd.s32 %s293, 1
    %p297 = scmp.eq.s32.totalorder %s29, 3
    %p298 = scmp.ne.s32.totalorder %s293, %s295
    %p299 = scmp.eq.s32.totalorder %s29, 0
    %p300 = por %p298, %p299
    %p301 = scmp.ne.s32.totalorder %s293, %s295
    %p302 = scmp.eq.s32.totalorder %s34, 3
    %p303 = por %p301, %p302
    %p304 = scmp.ne.s32.totalorder %s295, %s296
    %p305 = scmp.eq.s32.totalorder %s34, 0
    %p306 = por %p304, %p305
    %p307 = scmp.ne.s32.totalorder %s295, %s296
    %p308 = scmp.eq.s32.totalorder %s35, 3
    %p309 = por %p307, %p308
    %p311 = scmp.ne.s32.totalorder %s296, %s310
    %p312 = scmp.eq.s32.totalorder %s35, 0
    %p313 = por %p311, %p312
    %s315 = sadd.s32 %s314, 1
    %p318 = scmp.eq.s32.totalorder %s29, 3
    %p319 = scmp.ne.s32.totalorder %s314, %s316
    %p320 = scmp.eq.s32.totalorder %s29, 0
    %p321 = por %p319, %p320
    %p322 = scmp.ne.s32.totalorder %s314, %s316
    %p323 = scmp.eq.s32.totalorder %s34, 3
    %p324 = por %p322, %p323
    %p325 = scmp.ne.s32.totalorder %s316, %s317
    %p326 = scmp.eq.s32.totalorder %s34, 0
    %p327 = por %p325, %p326
    %p328 = scmp.ne.s32.totalorder %s316, %s317
    %p329 = scmp.eq.s32.totalorder %s35, 3
    %p330 = por %p328, %p329
    %p332 = scmp.ne.s32.totalorder %s317, %s331
    %p333 = scmp.eq.s32.totalorder %s35, 0
    %p334 = por %p332, %p333
    %s336 = sadd.s32 %s335, 1
    %p339 = scmp.eq.s32.totalorder %s29, 3
    %p340 = scmp.ne.s32.totalorder %s335, %s337
    %p341 = scmp.eq.s32.totalorder %s29, 0
    %p342 = por %p340, %p341
    %p343 = scmp.ne.s32.totalorder %s335, %s337
    %p344 = scmp.eq.s32.totalorder %s34, 3
    %p345 = por %p343, %p344
    %p346 = scmp.ne.s32.totalorder %s337, %s338
    %p347 = scmp.eq.s32.totalorder %s34, 0
    %p348 = por %p346, %p347
    %p349 = scmp.ne.s32.totalorder %s337, %s338
    %p350 = scmp.eq.s32.totalorder %s35, 3
    %p351 = por %p349, %p350
    %p353 = scmp.ne.s32.totalorder %s338, %s352
    %p354 = scmp.eq.s32.totalorder %s35, 0
    %p355 = por %p353, %p354
    %s357 = sadd.s32 %s356, 1
    %p360 = scmp.eq.s32.totalorder %s29, 3
    %p361 = scmp.ne.s32.totalorder %s356, %s358
    %p362 = scmp.eq.s32.totalorder %s29, 0
    %p363 = por %p361, %p362
    %p364 = scmp.ne.s32.totalorder %s356, %s358
    %p365 = scmp.eq.s32.totalorder %s34, 3
    %p366 = por %p364, %p365
    %p367 = scmp.ne.s32.totalorder %s358, %s359
    %p368 = scmp.eq.s32.totalorder %s34, 0
    %p369 = por %p367, %p368
    %p370 = scmp.ne.s32.totalorder %s358, %s359
    %p371 = scmp.eq.s32.totalorder %s35, 3
    %p372 = por %p370, %p371
    %p374 = scmp.ne.s32.totalorder %s359, %s373
    %p375 = scmp.eq.s32.totalorder %s35, 0
    %p376 = por %p374, %p375
    %s378 = sadd.s32 %s377, 1
    %p381 = scmp.eq.s32.totalorder %s29, 3
    %p382 = scmp.ne.s32.totalorder %s377, %s379
    %p383 = scmp.eq.s32.totalorder %s29, 0
    %p384 = por %p382, %p383
    %p385 = scmp.ne.s32.totalorder %s377, %s379
    %p386 = scmp.eq.s32.totalorder %s34, 3
    %p387 = por %p385, %p386
    %p388 = scmp.ne.s32.totalorder %s379, %s380
    %p389 = scmp.eq.s32.totalorder %s34, 0
    %p390 = por %p388, %p389
    %p391 = scmp.ne.s32.totalorder %s379, %s380
    %p392 = scmp.eq.s32.totalorder %s35, 3
    %p393 = por %p391, %p392
    %p395 = scmp.ne.s32.totalorder %s380, %s394
    %p396 = scmp.eq.s32.totalorder %s35, 0
    %p397 = por %p395, %p396
    %s399 = sadd.s32 %s398, 1
    %p402 = scmp.eq.s32.totalorder %s29, 3
    %p403 = scmp.ne.s32.totalorder %s398, %s400
    %p404 = scmp.eq.s32.totalorder %s29, 0
    %p405 = por %p403, %p404
    %p406 = scmp.ne.s32.totalorder %s398, %s400
    %p407 = scmp.eq.s32.totalorder %s34, 3
    %p408 = por %p406, %p407
    %p409 = scmp.ne.s32.totalorder %s400, %s401
    %p410 = scmp.eq.s32.totalorder %s34, 0
    %p411 = por %p409, %p410
    %p412 = scmp.ne.s32.totalorder %s400, %s401
    %p413 = scmp.eq.s32.totalorder %s35, 3
    %p414 = por %p412, %p413
    %p416 = scmp.ne.s32.totalorder %s401, %s415
    %p417 = scmp.eq.s32.totalorder %s35, 0
    %p418 = por %p416, %p417
    %s420 = sadd.s32 %s419, 1
    %p423 = scmp.eq.s32.totalorder %s29, 3
    %p424 = scmp.ne.s32.totalorder %s419, %s421
    %p425 = scmp.eq.s32.totalorder %s29, 0
    %p426 = por %p424, %p425
    %p427 = scmp.ne.s32.totalorder %s419, %s421
    %p428 = scmp.eq.s32.totalorder %s34, 3
    %p429 = por %p427, %p428
    %p430 = scmp.ne.s32.totalorder %s421, %s422
    %p431 = scmp.eq.s32.totalorder %s34, 0
    %p432 = por %p430, %p431
    %p433 = scmp.ne.s32.totalorder %s421, %s422
    %p434 = scmp.eq.s32.totalorder %s35, 3
    %p435 = por %p433, %p434
    %p437 = scmp.ne.s32.totalorder %s422, %s436
    %p438 = scmp.eq.s32.totalorder %s35, 0
    %p439 = por %p437, %p438
    %s441 = sadd.s32 %s440, 1
    %p444 = scmp.eq.s32.totalorder %s29, 3
    %p445 = scmp.ne.s32.totalorder %s440, %s442
    %p446 = scmp.eq.s32.totalorder %s29, 0
    %p447 = por %p445, %p446
    %p448 = scmp.ne.s32.totalorder %s440, %s442
    %p449 = scmp.eq.s32.totalorder %s34, 3
    %p450 = por %p448, %p449
    %p451 = scmp.ne.s32.totalorder %s442, %s443
    %p452 = scmp.eq.s32.totalorder %s34, 0
    %p453 = por %p451, %p452
    %p454 = scmp.ne.s32.totalorder %s442, %s443
    %p455 = scmp.eq.s32.totalorder %s35, 3
    %p456 = por %p454, %p455
    %p458 = scmp.ne.s32.totalorder %s443, %s457
    %p459 = scmp.eq.s32.totalorder %s35, 0
    %p460 = por %p458, %p459
    %s461 = ssub.s32 %s29, %s36
    %p462 = scmp.eq.s32.totalorder %s461, 0
    %s464 = sadd.s32 %s463, 1
    %s465 = scalar_select %p462, %s463, %s464
    %p468 = pneg %p462
    %p469 = scmp.eq.s32.totalorder %s29, 3
    %p470 = por %p468, %p469
    %p471 = scmp.ne.s32.totalorder %s463, %s466
    %p472 = scmp.eq.s32.totalorder %s29, 0
    %p473 = por %p471, %p472
    %p474 = scmp.ne.s32.totalorder %s463, %s466
    %p475 = scmp.eq.s32.totalorder %s34, 3
    %p476 = por %p474, %p475
    %p477 = scmp.ne.s32.totalorder %s466, %s467
    %p478 = scmp.eq.s32.totalorder %s34, 0
    %p479 = por %p477, %p478
    %p480 = scmp.ne.s32.totalorder %s466, %s467
    %p481 = scmp.eq.s32.totalorder %s35, 3
    %p482 = por %p480, %p481
    %p484 = scmp.ne.s32.totalorder %s467, %s483
    %p485 = scmp.eq.s32.totalorder %s35, 0
    %p486 = por %p484, %p485
    %s487 = ssub.s32 %s29, %s36
    %p488 = scmp.eq.s32.totalorder %s487, 0
    %s490 = sadd.s32 %s489, 1
    %s491 = scalar_select %p488, %s489, %s490
    %p494 = pneg %p488
    %p495 = scmp.eq.s32.totalorder %s29, 3
    %p496 = por %p494, %p495
    %p497 = scmp.ne.s32.totalorder %s489, %s492
    %p498 = scmp.eq.s32.totalorder %s29, 0
    %p499 = por %p497, %p498
    %p500 = scmp.ne.s32.totalorder %s489, %s492
    %p501 = scmp.eq.s32.totalorder %s34, 3
    %p502 = por %p500, %p501
    %p503 = scmp.ne.s32.totalorder %s492, %s493
    %p504 = scmp.eq.s32.totalorder %s34, 0
    %p505 = por %p503, %p504
    %p506 = scmp.ne.s32.totalorder %s492, %s493
    %p507 = scmp.eq.s32.totalorder %s35, 3
    %p508 = por %p506, %p507
    %p510 = scmp.ne.s32.totalorder %s493, %s509
    %p511 = scmp.eq.s32.totalorder %s35, 0
    %p512 = por %p510, %p511
    %p513 = scmp.le.s32.totalorder 1, %s29
    %p514 = scmp.lt.s32.totalorder %s29, 5
    %p515 = pnand %p513, %p514
    %p516 = pneg %p515
    // Predicated region
    $region9: #{_forward.15} parent=5 // pred_check
      _
    $region10: #{_forward.15} parent=5 // pred_check_branch
      %518 = sbr.rel (%p515) target = $region12
    $region11: #{_forward.15} parent=5 // pred_region
      %s519 = ssub.s32 %s29, 1
      // Predicated region
      $region13: #{_forward.15} parent=11 // pred_check
        %p520 = pneg %p180
      $region14: #{_forward.15} parent=11 // pred_check_branch
        %522 = sbr.rel (%p520) target = $region16
      $region15: #{_forward.15} parent=11 // pred_region
        _
      $region16: #{_forward.15} parent=11 // pred_fallthru
        _
      // Predicated region
      $region17: #{_forward.15} parent=11 // pred_check
        %p523 = pneg %p201
      $region18: #{_forward.15} parent=11 // pred_check_branch
        %525 = sbr.rel (%p523) target = $region20
      $region19: #{_forward.15} parent=11 // pred_region
        _
      $region20: #{_forward.15} parent=11 // pred_fallthru
        _
      // Predicated region
      $region21: #{_forward.15} parent=11 // pred_check
        %p526 = pneg %p222
      $region22: #{_forward.15} parent=11 // pred_check_branch
        %528 = sbr.rel (%p526) target = $region24
      $region23: #{_forward.15} parent=11 // pred_region
        _
      $region24: #{_forward.15} parent=11 // pred_fallthru
        _
      // Predicated region
      $region25: #{_forward.15} parent=11 // pred_check
        %p529 = pneg %p243
      $region26: #{_forward.15} parent=11 // pred_check_branch
        %531 = sbr.rel (%p529) target = $region28
      $region27: #{_forward.15} parent=11 // pred_region
        _
      $region28: #{_forward.15} parent=11 // pred_fallthru
        _
      // Predicated region
      $region29: #{_forward.15} parent=11 // pred_check
        %p532 = pneg %p264
      $region30: #{_forward.15} parent=11 // pred_check_branch
        %534 = sbr.rel (%p532) target = $region32
      $region31: #{_forward.15} parent=11 // pred_region
        _
      $region32: #{_forward.15} parent=11 // pred_fallthru
        _
      // Predicated region
      $region33: #{_forward.15} parent=11 // pred_check
        %p535 = pneg %p285
      $region34: #{_forward.15} parent=11 // pred_check_branch
        %537 = sbr.rel (%p535) target = $region36
      $region35: #{_forward.15} parent=11 // pred_region
        _
      $region36: #{_forward.15} parent=11 // pred_fallthru
        _
      // Predicated region
      $region37: #{_forward.15} parent=11 // pred_check
        %p538 = pneg %p306
      $region38: #{_forward.15} parent=11 // pred_check_branch
        %540 = sbr.rel (%p538) target = $region40
      $region39: #{_forward.15} parent=11 // pred_region
        _
      $region40: #{_forward.15} parent=11 // pred_fallthru
        _
      // Predicated region
      $region41: #{_forward.15} parent=11 // pred_check
        %p541 = pneg %p327
      $region42: #{_forward.15} parent=11 // pred_check_branch
        %543 = sbr.rel (%p541) target = $region44
      $region43: #{_forward.15} parent=11 // pred_region
        _
      $region44: #{_forward.15} parent=11 // pred_fallthru
        _
      // Predicated region
      $region45: #{_forward.15} parent=11 // pred_check
        %p544 = pneg %p348
      $region46: #{_forward.15} parent=11 // pred_check_branch
        %546 = sbr.rel (%p544) target = $region48
      $region47: #{_forward.15} parent=11 // pred_region
        _
      $region48: #{_forward.15} parent=11 // pred_fallthru
        _
      // Predicated region
      $region49: #{_forward.15} parent=11 // pred_check
        %p547 = pneg %p369
      $region50: #{_forward.15} parent=11 // pred_check_branch
        %549 = sbr.rel (%p547) target = $region52
      $region51: #{_forward.15} parent=11 // pred_region
        _
      $region52: #{_forward.15} parent=11 // pred_fallthru
        _
      // Predicated region
      $region53: #{_forward.15} parent=11 // pred_check
        %p550 = pneg %p390
      $region54: #{_forward.15} parent=11 // pred_check_branch
        %552 = sbr.rel (%p550) target = $region56
      $region55: #{_forward.15} parent=11 // pred_region
        _
      $region56: #{_forward.15} parent=11 // pred_fallthru
        _
      // Predicated region
      $region57: #{_forward.15} parent=11 // pred_check
        %p553 = pneg %p411
      $region58: #{_forward.15} parent=11 // pred_check_branch
        %555 = sbr.rel (%p553) target = $region60
      $region59: #{_forward.15} parent=11 // pred_region
        _
      $region60: #{_forward.15} parent=11 // pred_fallthru
        _
      // Predicated region
      $region61: #{_forward.15} parent=11 // pred_check
        %p556 = pneg %p432
      $region62: #{_forward.15} parent=11 // pred_check_branch
        %558 = sbr.rel (%p556) target = $region64
      $region63: #{_forward.15} parent=11 // pred_region
        _
      $region64: #{_forward.15} parent=11 // pred_fallthru
        _
      // Predicated region
      $region65: #{_forward.15} parent=11 // pred_check
        %p559 = pneg %p453
      $region66: #{_forward.15} parent=11 // pred_check_branch
        %561 = sbr.rel (%p559) target = $region68
      $region67: #{_forward.15} parent=11 // pred_region
        _
      $region68: #{_forward.15} parent=11 // pred_fallthru
        _
    $region12: #{_forward.15} parent=5 // pred_fallthru
      _
    %p562 = scmp.lt.s32.totalorder %s29, 4
    // Predicated region
    $region69: #{_forward.15} parent=5 // pred_check
      %p563 = pneg %p562
    $region70: #{_forward.15} parent=5 // pred_check_branch
      %565 = sbr.rel (%p563) target = $region72
    $region71: #{_forward.15} parent=5 // pred_region
      // Predicated region
      $region73: #{_forward.15} parent=71 // pred_check
        %p566 = pneg %p49
      $region74: #{_forward.15} parent=71 // pred_check_branch
        %568 = sbr.rel (%p566) target = $region76
      $region75: #{_forward.15} parent=71 // pred_region
        %p569 = scmp.lt.s32.totalorder %s29, 3
        %s570 = scalar_select %p569, %s29, 3
        %s571 = smul.addr %s570, 2
        %s572 = smul.addr %s571, 8
        %s573 = scalar_lea.vmem %s0, %s572
      $region76: #{_forward.15} parent=71 // pred_fallthru
        _
      // Predicated region
      $region77: #{_forward.15} parent=71 // pred_check
        %p574 = pneg %p75
      $region78: #{_forward.15} parent=71 // pred_check_branch
        %576 = sbr.rel (%p574) target = $region80
      $region79: #{_forward.15} parent=71 // pred_region
        %p577 = scmp.lt.s32.totalorder %s29, 3
        %s578 = scalar_select %p577, %s29, 3
        %s579 = smul.addr %s578, 4
        %s580 = smul.addr %s579, 8
        %s581 = scalar_lea.vmem %s1, %s580
      $region80: #{_forward.15} parent=71 // pred_fallthru
        _
      // Predicated region
      $region81: #{_forward.15} parent=71 // pred_check
        %p582 = pneg %p101
      $region82: #{_forward.15} parent=71 // pred_check_branch
        %584 = sbr.rel (%p582) target = $region84
      $region83: #{_forward.15} parent=71 // pred_region
        %p585 = scmp.lt.s32.totalorder %s29, 3
        %s586 = scalar_select %p585, %s29, 3
        %s587 = smul.addr %s586, 8
        %s588 = scalar_lea.vmem %s2, %s587
      $region84: #{_forward.15} parent=71 // pred_fallthru
        _
      // Predicated region
      $region85: #{_forward.15} parent=71 // pred_check
        %p589 = pneg %p127
      $region86: #{_forward.15} parent=71 // pred_check_branch
        %591 = sbr.rel (%p589) target = $region88
      $region87: #{_forward.15} parent=71 // pred_region
        %p592 = scmp.lt.s32.totalorder %s29, 3
        %s593 = scalar_select %p592, %s29, 3
        %s594 = scalar_lea.vmem %s3, %s593
      $region88: #{_forward.15} parent=71 // pred_fallthru
        _
      // Predicated region
      $region89: #{_forward.15} parent=71 // pred_check
        %p595 = pneg %p153
      $region90: #{_forward.15} parent=71 // pred_check_branch
        %597 = sbr.rel (%p595) target = $region92
      $region91: #{_forward.15} parent=71 // pred_region
        %p598 = scmp.lt.s32.totalorder %s29, 3
        %s599 = scalar_select %p598, %s29, 3
        %s600 = smul.addr %s599, 4
        %s601 = scalar_lea.vmem %s4, %s600
      $region92: #{_forward.15} parent=71 // pred_fallthru
        _
    $region72: #{_forward.15} parent=5 // pred_fallthru
      _
    %p602 = scmp.le.s32.totalorder 1, %s29
    %p603 = scmp.lt.s32.totalorder %s29, 5
    %p604 = pnand %p602, %p603
    %p605 = pneg %p604
    // Predicated region
    $region93: #{_forward.15} parent=5 // pred_check
      _
    $region94: #{_forward.15} parent=5 // pred_check_branch
      %607 = sbr.rel (%p604) target = $region96
    $region95: #{_forward.15} parent=5 // pred_region
      %s608 = ssub.s32 %s29, 1
      %p609 = scmp.lt.s32.totalorder %s34, 3
      %s610 = scalar_select %p609, %s34, 3
      %s611 = smul.addr %s610, 2
      %s612 = smul.addr %s611, 8
      %s613 = scalar_lea.vmem %s0, %s612
      %p614 = pneg %p55
      %p615 = pneg %p52
      %p616 = scmp.lt.s32.totalorder %s34, 3
      %s617 = scalar_select %p616, %s34, 3
      %s618 = smul.addr %s617, 4
      %s619 = smul.addr %s618, 8
      %s620 = scalar_lea.vmem %s1, %s619
      %p621 = pneg %p81
      %p622 = pneg %p78
      %p623 = scmp.lt.s32.totalorder %s34, 3
      %s624 = scalar_select %p623, %s34, 3
      %s625 = smul.addr %s624, 8
      %s626 = scalar_lea.vmem %s2, %s625
      %p627 = pneg %p107
      %p628 = pneg %p104
      %p629 = scmp.lt.s32.totalorder %s34, 3
      %s630 = scalar_select %p629, %s34, 3
      %s631 = scalar_lea.vmem %s3, %s630
      %p632 = pneg %p133
      %p633 = pneg %p130
      %p634 = scmp.lt.s32.totalorder %s34, 3
      %s635 = scalar_select %p634, %s34, 3
      %s636 = smul.addr %s635, 4
      %s637 = scalar_lea.vmem %s4, %s636
      %p638 = pneg %p159
      %p639 = pneg %p156
      %p640 = pneg %p180
      %p641 = pneg %p177
      %p642 = pneg %p201
      %p643 = pneg %p198
      %p644 = pneg %p222
      %p645 = pneg %p219
      %p646 = pneg %p243
      %p647 = pneg %p240
      %p648 = pneg %p264
      %p649 = pneg %p261
      %p650 = pneg %p285
      %p651 = pneg %p282
      %p652 = pneg %p306
      %p653 = pneg %p303
      %p654 = pneg %p327
      %p655 = pneg %p324
      %p656 = pneg %p348
      %p657 = pneg %p345
      %p658 = pneg %p369
      %p659 = pneg %p366
      %p660 = pneg %p390
      %p661 = pneg %p387
      %p662 = pneg %p411
      %p663 = pneg %p408
      %p664 = pneg %p432
      %p665 = pneg %p429
      %p666 = pneg %p453
      %p667 = pneg %p450
      %p668 = pneg %p479
      %p669 = pneg %p476
      %p670 = scmp.lt.s32.totalorder %s34, 3
      %s671 = scalar_select %p670, %s34, 3
      %s672 = smul.addr %s671, 4
      %s673 = smul.addr %s672, 8
      %s674 = scalar_lea.vmem %s19, %s673
      %p675 = pneg %p505
      %p676 = pneg %p502
      %p677 = scmp.lt.s32.totalorder %s34, 3
      %s678 = scalar_select %p677, %s34, 3
      %s679 = smul.addr %s678, 2
      %s680 = smul.addr %s679, 8
      %s681 = scalar_lea.vmem %s20, %s680
      %p682 = scmp.lt.s32.totalorder %s34, 3
      %s683 = scalar_select %p682, %s34, 3
      %s684 = smul.addr %s683, 2
      %s685 = smul.addr %s684, 8
      %s686 = scalar_lea.vmem %s0, %s685
      %p687 = scmp.lt.s32.totalorder %s34, 3
      %s688 = scalar_select %p687, %s34, 3
      %s689 = smul.addr %s688, 4
      %s690 = smul.addr %s689, 8
      %s691 = scalar_lea.vmem %s1, %s690
      %p692 = scmp.lt.s32.totalorder %s34, 3
      %s693 = scalar_select %p692, %s34, 3
      %s694 = smul.addr %s693, 8
      %s695 = scalar_lea.vmem %s2, %s694
      %p696 = scmp.lt.s32.totalorder %s34, 3
      %s697 = scalar_select %p696, %s34, 3
      %s698 = scalar_lea.vmem %s3, %s697
      %p699 = scmp.lt.s32.totalorder %s34, 3
      %s700 = scalar_select %p699, %s34, 3
      %s701 = smul.addr %s700, 4
      %s702 = scalar_lea.vmem %s4, %s701
      %p703 = scmp.lt.s32.totalorder %s34, 3
      %s704 = scalar_select %p703, %s34, 3
      %s705 = smul.addr %s704, 4
      %s706 = smul.addr %s705, 8
      %s707 = scalar_lea.vmem %s19, %s706
      %p708 = scmp.lt.s32.totalorder %s34, 3
      %s709 = scalar_select %p708, %s34, 3
      %s710 = smul.addr %s709, 2
      %s711 = smul.addr %s710, 8
      %s712 = scalar_lea.vmem %s20, %s711
      %v714 = vld [vmem:[%s686] sm:$0xff]
      %v715 = vld [vmem:[%s686 + $0x8] sm:$0x7]
      %v716 = vpack.c.bf16 %v715, %v714
      %v717 = vld [vmem:[%s691] sm:$0xff]
      %v718 = vld [vmem:[%s691 + $0x8] sm:$0xff]
      %v719 = vld [vmem:[%s691 + $0x10] sm:$0xff]
      %v720 = vld [vmem:[%s691 + $0x18] sm:$0xff]
      %v721 = vpack.c.bf16 %v719, %v717
      %v722 = vpack.c.bf16 %v720, %v718
      %v723 = vld [vmem:[%s5] sm:$0xff]
      %v724 = vld [vmem:[%s5 + $0x8] sm:$0xff]
      %v725 = vld [vmem:[%s5 + $0x10] sm:$0xff]
      %v726 = vld [vmem:[%s5 + $0x18] sm:$0xff]
      %v727 = vld [vmem:[%s5 + $0x20] sm:$0xff]
      %v728 = vld [vmem:[%s5 + $0x28] sm:$0xff]
      %v729 = vld [vmem:[%s5 + $0x30] sm:$0xff]
      %v730 = vld [vmem:[%s5 + $0x38] sm:$0xff]
      %v731 = vld [vmem:[%s5 + $0x40] sm:$0xff]
      %v732 = vld [vmem:[%s5 + $0x48] sm:$0xff]
      %v733 = vld [vmem:[%s5 + $0x50] sm:$0xff]
      %v734 = vld [vmem:[%s5 + $0x58] sm:$0xff]
      %v735 = vld [vmem:[%s5 + $0x60] sm:$0xff]
      %v736 = vld [vmem:[%s5 + $0x68] sm:$0xff]
      %v737 = vld [vmem:[%s5 + $0x70] sm:$0xff]
      %v738 = vld [vmem:[%s5 + $0x78] sm:$0xff]
      %v739 = vld [vmem:[%s5 + $0x80] sm:$0xff]
      %v740 = vld [vmem:[%s5 + $0x88] sm:$0xff]
      %v741 = vld [vmem:[%s5 + $0x90] sm:$0xff]
      %v742 = vld [vmem:[%s5 + $0x98] sm:$0xff]
      %v743 = vld [vmem:[%s5 + $0xa0] sm:$0xff]
      %v744 = vld [vmem:[%s5 + $0xa8] sm:$0xff]
      %v745 = vld [vmem:[%s5 + $0xb0] sm:$0xff]
      %v746 = vld [vmem:[%s5 + $0xb8] sm:$0xff]
      %v747 = vld [vmem:[%s5 + $0xc0] sm:$0xff]
      %v748 = vld [vmem:[%s5 + $0xc8] sm:$0xff]
      %v749 = vld [vmem:[%s5 + $0xd0] sm:$0xff]
      %v750 = vld [vmem:[%s5 + $0xd8] sm:$0xff]
      %v751 = vld [vmem:[%s5 + $0xe0] sm:$0xff]
      %v752 = vld [vmem:[%s5 + $0xe8] sm:$0xff]
      %v753 = vld [vmem:[%s5 + $0xf0] sm:$0xff]
      %v754 = vld [vmem:[%s5 + $0xf8] sm:$0xff]
      %v755 = vpack.c.bf16 %v724, %v723
      %v756 = vpack.c.bf16 %v726, %v725
      %v757 = vpack.c.bf16 %v728, %v727
      %v758 = vpack.c.bf16 %v730, %v729
      %v759 = vpack.c.bf16 %v732, %v731
      %v760 = vpack.c.bf16 %v734, %v733
      %v761 = vpack.c.bf16 %v736, %v735
      %v762 = vpack.c.bf16 %v738, %v737
      %v763 = vpack.c.bf16 %v740, %v739
      %v764 = vpack.c.bf16 %v742, %v741
      %v765 = vpack.c.bf16 %v744, %v743
      %v766 = vpack.c.bf16 %v746, %v745
      %v767 = vpack.c.bf16 %v748, %v747
      %v768 = vpack.c.bf16 %v750, %v749
      %v769 = vpack.c.bf16 %v752, %v751
      %v770 = vpack.c.bf16 %v754, %v753
      %771 = vmatprep.subr.bf16.mxu0 0
      %772 = vmatpush1.bf16.msra.mxu0 %v762
      %773 = vmatprep.subr.bf16.mxu0 0
      %774 = vmatpush1.bf16.msra.mxu0 %v761
      %775 = vmatprep.subr.bf16.mxu0 0
      %776 = vmatpush1.bf16.msra.mxu0 %v760
      %777 = vmatprep.subr.bf16.mxu0 0
      %778 = vmatpush1.bf16.msra.mxu0 %v759
      %779 = vmatprep.subr.bf16.mxu0 0
      %780 = vmatpush1.bf16.msra.mxu0 %v758
      %781 = vmatprep.subr.bf16.mxu0 0
      %782 = vmatpush1.bf16.msra.mxu0 %v757
      %783 = vmatprep.subr.bf16.mxu0 0
      %784 = vmatpush1.bf16.msra.mxu0 %v756
      %785 = vmatprep.subr.bf16.mxu0 0
      %786 = vmatpush1.bf16.msra.mxu0 %v755
      %787 = vmatprep.subr.bf16.mxu0 0
      %788 = vmatpush2.bf16.msra.mxu0 %v770
      %789 = vmatprep.subr.bf16.mxu0 0
      %790 = vmatpush2.bf16.msra.mxu0 %v769
      %791 = vmatprep.subr.bf16.mxu0 0
      %792 = vmatpush2.bf16.msra.mxu0 %v768
      %793 = vmatprep.subr.bf16.mxu0 0
      %794 = vmatpush2.bf16.msra.mxu0 %v767
      %795 = vmatprep.subr.bf16.mxu0 0
      %796 = vmatpush2.bf16.msra.mxu0 %v766
      %797 = vmatprep.subr.bf16.mxu0 0
      %798 = vmatpush2.bf16.msra.mxu0 %v765
      %799 = vmatprep.subr.bf16.mxu0 0
      %800 = vmatpush2.bf16.msra.mxu0 %v764
      %801 = vmatprep.subr.bf16.mxu0 0
      %802 = vmatpush2.bf16.msra.mxu0 %v763
      %803 = vmatprep.mubr.bf16.mxu0 %v722
      %804 = vmatmul.mubr.bf16.gmra.mxu0 %v721
      %v805 = vpop.f32.mrf.mxu0
      %v806 = vadd.f32 0.0, %v805
      %v807 = vpop.f32.mrf.mxu0
      %v808 = vpop.f32.mrf.mxu0
      %v809 = vadd.f32 0.0, %v808
      %v810 = vpop.f32.mrf.mxu0
      %811 = vdwg.mxu0
      %v812 = vpack.c.bf16 %v809, %v806
      %813 = vmatprep.subr.bf16.mxu0 0
      %814 = vmatpush1.bf16.xpose.msra.mxu0 0
      %815 = vmatprep.subr.bf16.mxu0 0
      %816 = vmatpush1.bf16.xpose.msra.mxu0 0
      %817 = vmatprep.subr.bf16.mxu0 0
      %818 = vmatpush1.bf16.xpose.msra.mxu0 0
      %819 = vmatprep.subr.bf16.mxu0 0
      %820 = vmatpush1.bf16.xpose.msra.mxu0 0
      %821 = vmatprep.subr.bf16.mxu0 0
      %822 = vmatpush1.bf16.xpose.msra.mxu0 0
      %823 = vmatprep.subr.bf16.mxu0 0
      %824 = vmatpush1.bf16.xpose.msra.mxu0 0
      %825 = vmatprep.subr.bf16.mxu0 0
      %826 = vmatpush1.bf16.xpose.msra.mxu0 0
      %827 = vmatprep.subr.bf16.mxu0 0
      %828 = vmatpush1.bf16.xpose.msra.mxu0 %v812
      %829 = vmatprep.subr.bf16.mxu0 0
      %830 = vmatpush2.bf16.xpose.msra.mxu0 0
      %831 = vmatprep.subr.bf16.mxu0 0
      %832 = vmatpush2.bf16.xpose.msra.mxu0 0
      %833 = vmatprep.subr.bf16.mxu0 0
      %834 = vmatpush2.bf16.xpose.msra.mxu0 0
      %835 = vmatprep.subr.bf16.mxu0 0
      %836 = vmatpush2.bf16.xpose.msra.mxu0 0
      %837 = vmatprep.subr.bf16.mxu0 0
      %838 = vmatpush2.bf16.xpose.msra.mxu0 0
      %839 = vmatprep.subr.bf16.mxu0 0
      %840 = vmatpush2.bf16.xpose.msra.mxu0 0
      %841 = vmatprep.subr.bf16.mxu0 0
      %842 = vmatpush2.bf16.xpose.msra.mxu0 0
      %843 = vmatprep.subr.bf16.mxu0 0
      %844 = vmatpush2.bf16.xpose.msra.mxu0 0
      %845 = vmatprep.mubr.bf16.mxu0 0
      %846 = vmatmul.mubr.bf16.gmra.mxu0 %v716
      %v847 = vpop.f32.mrf.mxu0
      %v848 = vadd.f32 0.0, %v847
      %v849 = vpop.f32.mrf.mxu0
      %v850 = vpop.f32.mrf.mxu0
      %v851 = vadd.f32 0.0, %v850
      %v852 = vpop.f32.mrf.mxu0
      %853 = vdwg.mxu0
      %vm854 = vcmask 130048
      %v855 = vsel %vm854, %v848, -inf
      %856 = vmax.xlane.f32.xlu0 %v855
      %v857 = vpop.xlane.xlu0 %856
      %vm858 = vcmask 124928
      %v859 = vsel %vm858, %v851, -inf
      %860 = vmax.xlane.f32.xlu0 %v859
      %v861 = vpop.xlane.xlu0 %860
      %v862 = vsub.f32 %v848, %v857
      %v863 = vsub.f32 %v851, %v861
      %v864 = vmul.f32 %v862, 1.442695
      %v865 = vpow.pop %v864
      %v866 = vmul.f32 %v863, 1.442695
      %v867 = vpow.pop %v866
      %v868 = vsel %vm854, %v865, 0.0
      %869 = vadd.xlane.f32.xlu0 %v868
      %v870 = vpop.xlane.xlu0 %869
      %v871 = vsel %vm858, %v867, 0.0
      %872 = vadd.xlane.f32.xlu0 %v871
      %v873 = vpop.xlane.xlu0 %872
      %v874 = vrcp.pop %v870
      %v875 = vrcp.pop %v873
      %v876 = vmul.f32 %v865, %v874
      %v877 = vmul.f32 %v867, %v875
      %v878 = vpack.c.bf16 %v877, %v876
      %v880 = vsel %vm854, %v878, 0
      %882 = vmatprep.subr.bf16.mxu0 0
      %883 = vmatpush1.bf16.msra.mxu0 0
      %884 = vmatprep.subr.bf16.mxu0 0
      %885 = vmatpush1.bf16.msra.mxu0 0
      %886 = vmatprep.subr.bf16.mxu0 0
      %887 = vmatpush1.bf16.msra.mxu0 0
      %888 = vmatprep.subr.bf16.mxu0 0
      %889 = vmatpush1.bf16.msra.mxu0 0
      %890 = vmatprep.subr.bf16.mxu0 0
      %891 = vmatpush1.bf16.msra.mxu0 0
      %892 = vmatprep.subr.bf16.mxu0 0
      %893 = vmatpush1.bf16.msra.mxu0 0
      %894 = vmatprep.subr.bf16.mxu0 0
      %895 = vmatpush1.bf16.msra.mxu0 0
      %896 = vmatprep.subr.bf16.mxu0 %v722
      %897 = vmatpush1.bf16.msra.mxu0 %v721
      %898 = vmatprep.subr.bf16.mxu0 0
      %899 = vmatpush2.bf16.msra.mxu0 0
      %900 = vmatprep.subr.bf16.mxu0 0
      %901 = vmatpush2.bf16.msra.mxu0 0
      %902 = vmatprep.subr.bf16.mxu0 0
      %903 = vmatpush2.bf16.msra.mxu0 0
      %904 = vmatprep.subr.bf16.mxu0 0
      %905 = vmatpush2.bf16.msra.mxu0 0
      %906 = vmatprep.subr.bf16.mxu0 0
      %907 = vmatpush2.bf16.msra.mxu0 0
      %908 = vmatprep.subr.bf16.mxu0 0
      %909 = vmatpush2.bf16.msra.mxu0 0
      %910 = vmatprep.subr.bf16.mxu0 0
      %911 = vmatpush2.bf16.msra.mxu0 0
      %912 = vmatprep.subr.bf16.mxu0 0
      %913 = vmatpush2.bf16.msra.mxu0 0
      %914 = vmatprep.mubr.bf16.mxu0 0
      %915 = vmatmul.mubr.bf16.gmra.mxu0 %v880
      %v916 = vpop.f32.mrf.mxu0
      %v917 = vadd.f32 0.0, %v916
      %v918 = vpop.f32.mrf.mxu0
      %v919 = vadd.f32 0.0, %v918
      %v920 = vpop.f32.mrf.mxu0
      %v921 = vadd.f32 0.0, %v920
      %v922 = vpop.f32.mrf.mxu0
      %v923 = vadd.f32 0.0, %v922
      %924 = vdwg.mxu0
      %v925 = vpack.c.bf16 %v921, %v917
      %v926 = vpack.c.bf16 %v923, %v919
      %v927 = vld [vmem:[%s6] sm:$0xff]
      %v928 = vld [vmem:[%s6 + $0x8] sm:$0xff]
      %v929 = vld [vmem:[%s6 + $0x10] sm:$0xff]
      %v930 = vld [vmem:[%s6 + $0x18] sm:$0xff]
      %v931 = vld [vmem:[%s6 + $0x20] sm:$0xff]
      %v932 = vld [vmem:[%s6 + $0x28] sm:$0xff]
      %v933 = vld [vmem:[%s6 + $0x30] sm:$0xff]
      %v934 = vld [vmem:[%s6 + $0x38] sm:$0xff]
      %v935 = vld [vmem:[%s6 + $0x40] sm:$0xff]
      %v936 = vld [vmem:[%s6 + $0x48] sm:$0xff]
      %v937 = vld [vmem:[%s6 + $0x50] sm:$0xff]
      %v938 = vld [vmem:[%s6 + $0x58] sm:$0xff]
      %v939 = vld [vmem:[%s6 + $0x60] sm:$0xff]
      %v940 = vld [vmem:[%s6 + $0x68] sm:$0xff]
      %v941 = vld [vmem:[%s6 + $0x70] sm:$0xff]
      %v942 = vld [vmem:[%s6 + $0x78] sm:$0xff]
      %v943 = vld [vmem:[%s6 + $0x80] sm:$0xff]
      %v944 = vld [vmem:[%s6 + $0x88] sm:$0xff]
      %v945 = vld [vmem:[%s6 + $0x90] sm:$0xff]
      %v946 = vld [vmem:[%s6 + $0x98] sm:$0xff]
      %v947 = vld [vmem:[%s6 + $0xa0] sm:$0xff]
      %v948 = vld [vmem:[%s6 + $0xa8] sm:$0xff]
      %v949 = vld [vmem:[%s6 + $0xb0] sm:$0xff]
      %v950 = vld [vmem:[%s6 + $0xb8] sm:$0xff]
      %v951 = vld [vmem:[%s6 + $0xc0] sm:$0xff]
      %v952 = vld [vmem:[%s6 + $0xc8] sm:$0xff]
      %v953 = vld [vmem:[%s6 + $0xd0] sm:$0xff]
      %v954 = vld [vmem:[%s6 + $0xd8] sm:$0xff]
      %v955 = vld [vmem:[%s6 + $0xe0] sm:$0xff]
      %v956 = vld [vmem:[%s6 + $0xe8] sm:$0xff]
      %v957 = vld [vmem:[%s6 + $0xf0] sm:$0xff]
      %v958 = vld [vmem:[%s6 + $0xf8] sm:$0xff]
      %v959 = vpack.c.bf16 %v928, %v927
      %v960 = vpack.c.bf16 %v930, %v929
      %v961 = vpack.c.bf16 %v932, %v931
      %v962 = vpack.c.bf16 %v934, %v933
      %v963 = vpack.c.bf16 %v936, %v935
      %v964 = vpack.c.bf16 %v938, %v937
      %v965 = vpack.c.bf16 %v940, %v939
      %v966 = vpack.c.bf16 %v942, %v941
      %v967 = vpack.c.bf16 %v944, %v943
      %v968 = vpack.c.bf16 %v946, %v945
      %v969 = vpack.c.bf16 %v948, %v947
      %v970 = vpack.c.bf16 %v950, %v949
      %v971 = vpack.c.bf16 %v952, %v951
      %v972 = vpack.c.bf16 %v954, %v953
      %v973 = vpack.c.bf16 %v956, %v955
      %v974 = vpack.c.bf16 %v958, %v957
      %v975 = vld [vmem:[%s6 + $0x100] sm:$0xff]
      %v976 = vld [vmem:[%s6 + $0x108] sm:$0xff]
      %v977 = vld [vmem:[%s6 + $0x110] sm:$0xff]
      %v978 = vld [vmem:[%s6 + $0x118] sm:$0xff]
      %v979 = vld [vmem:[%s6 + $0x120] sm:$0xff]
      %v980 = vld [vmem:[%s6 + $0x128] sm:$0xff]
      %v981 = vld [vmem:[%s6 + $0x130] sm:$0xff]
      %v982 = vld [vmem:[%s6 + $0x138] sm:$0xff]
      %v983 = vld [vmem:[%s6 + $0x140] sm:$0xff]
      %v984 = vld [vmem:[%s6 + $0x148] sm:$0xff]
      %v985 = vld [vmem:[%s6 + $0x150] sm:$0xff]
      %v986 = vld [vmem:[%s6 + $0x158] sm:$0xff]
      %v987 = vld [vmem:[%s6 + $0x160] sm:$0xff]
      %v988 = vld [vmem:[%s6 + $0x168] sm:$0xff]
      %v989 = vld [vmem:[%s6 + $0x170] sm:$0xff]
      %v990 = vld [vmem:[%s6 + $0x178] sm:$0xff]
      %v991 = vpack.c.bf16 %v976, %v975
      %v992 = vpack.c.bf16 %v978, %v977
      %v993 = vpack.c.bf16 %v980, %v979
      %v994 = vpack.c.bf16 %v982, %v981
      %v995 = vpack.c.bf16 %v984, %v983
      %v996 = vpack.c.bf16 %v986, %v985
      %v997 = vpack.c.bf16 %v988, %v987
      %v998 = vpack.c.bf16 %v990, %v989
      %999 = vmatprep.subr.bf16.mxu0 0
      %1000 = vmatpush1.bf16.msra.mxu0 %v998
      %1001 = vmatprep.subr.bf16.mxu0 0
      %1002 = vmatpush1.bf16.msra.mxu0 %v997
      %1003 = vmatprep.subr.bf16.mxu0 0
      %1004 = vmatpush1.bf16.msra.mxu0 %v996
      %1005 = vmatprep.subr.bf16.mxu0 0
      %1006 = vmatpush1.bf16.msra.mxu0 %v995
      %1007 = vmatprep.subr.bf16.mxu0 0
      %1008 = vmatpush1.bf16.msra.mxu0 %v994
      %1009 = vmatprep.subr.bf16.mxu0 0
      %1010 = vmatpush1.bf16.msra.mxu0 %v993
      %1011 = vmatprep.subr.bf16.mxu0 0
      %1012 = vmatpush1.bf16.msra.mxu0 %v992
      %1013 = vmatprep.subr.bf16.mxu0 0
      %1014 = vmatpush1.bf16.msra.mxu0 %v991
      %1015 = vmatprep.subr.bf16.mxu0 0
      %1016 = vmatpush2.bf16.msra.mxu0 0
      %1017 = vmatprep.subr.bf16.mxu0 0
      %1018 = vmatpush2.bf16.msra.mxu0 0
      %1019 = vmatprep.subr.bf16.mxu0 0
      %1020 = vmatpush2.bf16.msra.mxu0 0
      %1021 = vmatprep.subr.bf16.mxu0 0
      %1022 = vmatpush2.bf16.msra.mxu0 0
      %1023 = vmatprep.subr.bf16.mxu0 0
      %1024 = vmatpush2.bf16.msra.mxu0 0
      %1025 = vmatprep.subr.bf16.mxu0 0
      %1026 = vmatpush2.bf16.msra.mxu0 0
      %1027 = vmatprep.subr.bf16.mxu0 0
      %1028 = vmatpush2.bf16.msra.mxu0 0
      %1029 = vmatprep.subr.bf16.mxu0 0
      %1030 = vmatpush2.bf16.msra.mxu0 0
      %1031 = vmatprep.mubr.bf16.mxu0 0
      %1032 = vmatmul.mubr.bf16.gmra.mxu0 %v716
      %v1033 = vpop.f32.mrf.mxu0
      %v1034 = vadd.f32 0.0, %v1033
      %v1035 = vpop.f32.mrf.mxu0
      %v1036 = vpop.f32.mrf.mxu0
      %v1037 = vadd.f32 0.0, %v1036
      %v1038 = vpop.f32.mrf.mxu0
      %1039 = vdwg.mxu0
      %1040 = vmatprep.subr.bf16.mxu0 0
      %1041 = vmatpush1.bf16.msra.mxu0 %v966
      %1042 = vmatprep.subr.bf16.mxu0 0
      %1043 = vmatpush1.bf16.msra.mxu0 %v965
      %1044 = vmatprep.subr.bf16.mxu0 0
      %1045 = vmatpush1.bf16.msra.mxu0 %v964
      %1046 = vmatprep.subr.bf16.mxu0 0
      %1047 = vmatpush1.bf16.msra.mxu0 %v963
      %1048 = vmatprep.subr.bf16.mxu0 0
      %1049 = vmatpush1.bf16.msra.mxu0 %v962
      %1050 = vmatprep.subr.bf16.mxu0 0
      %1051 = vmatpush1.bf16.msra.mxu0 %v961
      %1052 = vmatprep.subr.bf16.mxu0 0
      %1053 = vmatpush1.bf16.msra.mxu0 %v960
      %1054 = vmatprep.subr.bf16.mxu0 0
      %1055 = vmatpush1.bf16.msra.mxu0 %v959
      %1056 = vmatprep.subr.bf16.mxu0 0
      %1057 = vmatpush2.bf16.msra.mxu0 %v974
      %1058 = vmatprep.subr.bf16.mxu0 0
      %1059 = vmatpush2.bf16.msra.mxu0 %v973
      %1060 = vmatprep.subr.bf16.mxu0 0
      %1061 = vmatpush2.bf16.msra.mxu0 %v972
      %1062 = vmatprep.subr.bf16.mxu0 0
      %1063 = vmatpush2.bf16.msra.mxu0 %v971
      %1064 = vmatprep.subr.bf16.mxu0 0
      %1065 = vmatpush2.bf16.msra.mxu0 %v970
      %1066 = vmatprep.subr.bf16.mxu0 0
      %1067 = vmatpush2.bf16.msra.mxu0 %v969
      %1068 = vmatprep.subr.bf16.mxu0 0
      %1069 = vmatpush2.bf16.msra.mxu0 %v968
      %1070 = vmatprep.subr.bf16.mxu0 0
      %1071 = vmatpush2.bf16.msra.mxu0 %v967
      %1072 = vmatprep.mubr.bf16.mxu0 %v926
      %1073 = vmatmul.mubr.bf16.gmra.mxu0 %v925
      %v1074 = vpop.f32.mrf.mxu0
      %v1075 = vadd.f32 %v1034, %v1074
      %v1076 = vpop.f32.mrf.mxu0
      %v1077 = vpop.f32.mrf.mxu0
      %v1078 = vadd.f32 %v1037, %v1077
      %v1079 = vpop.f32.mrf.mxu0
      %1080 = vdwg.mxu0
      %v1081 = vld [vmem:[%s7] sm:$0x1]
      %v1083 = vlaneseq
      %v1084 = vshrl.u32 %v1083, 7
      %v1085 = vsub.s32 0, %v1084
      %v1086 = vrot.slane %v1081, %v1085
      %v1088 = vadd.f32 %v1075, %v1086
      %v1089 = vadd.f32 %v1078, %v1086
      %v1090 = vtanh.pop %v1088
      %v1091 = vtanh.pop %v1089
      %v1092 = vld [vmem:[%s695] sm:$0x1f]
      %v1093 = vpack.c.bf16 %v1092, %v1092
      %v1094 = vld [vmem:[%s8] sm:$0xff]
      %v1095 = vld [vmem:[%s8 + $0x8] sm:$0xff]
      %v1096 = vld [vmem:[%s8 + $0x10] sm:$0xff]
      %v1097 = vld [vmem:[%s8 + $0x18] sm:$0xff]
      %v1098 = vld [vmem:[%s8 + $0x20] sm:$0xff]
      %v1099 = vld [vmem:[%s8 + $0x28] sm:$0xff]
      %v1100 = vld [vmem:[%s8 + $0x30] sm:$0xff]
      %v1101 = vld [vmem:[%s8 + $0x38] sm:$0xff]
      %v1102 = vpack.c.bf16 %v1095, %v1094
      %v1103 = vpack.c.bf16 %v1097, %v1096
      %v1104 = vpack.c.bf16 %v1099, %v1098
      %v1105 = vpack.c.bf16 %v1101, %v1100
      %vm1106 = vcmask 523264
      %v1108 = vsel %vm1106, %v1093, 0
      %1110 = vmatprep.subr.bf16.mxu0 0
      %1111 = vmatpush1.bf16.msra.mxu0 0
      %1112 = vmatprep.subr.bf16.mxu0 0
      %1113 = vmatpush1.bf16.msra.mxu0 0
      %1114 = vmatprep.subr.bf16.mxu0 0
      %1115 = vmatpush1.bf16.msra.mxu0 0
      %1116 = vmatprep.subr.bf16.mxu0 0
      %1117 = vmatpush1.bf16.msra.mxu0 0
      %1118 = vmatprep.subr.bf16.mxu0 0
      %1119 = vmatpush1.bf16.msra.mxu0 %v1105
      %1120 = vmatprep.subr.bf16.mxu0 0
      %1121 = vmatpush1.bf16.msra.mxu0 %v1104
      %1122 = vmatprep.subr.bf16.mxu0 0
      %1123 = vmatpush1.bf16.msra.mxu0 %v1103
      %1124 = vmatprep.subr.bf16.mxu0 0
      %1125 = vmatpush1.bf16.msra.mxu0 %v1102
      %1126 = vmatprep.subr.bf16.mxu0 0
      %1127 = vmatpush2.bf16.msra.mxu0 0
      %1128 = vmatprep.subr.bf16.mxu0 0
      %1129 = vmatpush2.bf16.msra.mxu0 0
      %1130 = vmatprep.subr.bf16.mxu0 0
      %1131 = vmatpush2.bf16.msra.mxu0 0
      %1132 = vmatprep.subr.bf16.mxu0 0
      %1133 = vmatpush2.bf16.msra.mxu0 0
      %1134 = vmatprep.subr.bf16.mxu0 0
      %1135 = vmatpush2.bf16.msra.mxu0 0
      %1136 = vmatprep.subr.bf16.mxu0 0
      %1137 = vmatpush2.bf16.msra.mxu0 0
      %1138 = vmatprep.subr.bf16.mxu0 0
      %1139 = vmatpush2.bf16.msra.mxu0 0
      %1140 = vmatprep.subr.bf16.mxu0 0
      %1141 = vmatpush2.bf16.msra.mxu0 0
      %1142 = vmatprep.mubr.bf16.mxu0 0
      %1143 = vmatmul.mubr.bf16.gmra.mxu0 %v1108
      %v1144 = vpop.f32.mrf.mxu0
      %v1145 = vadd.f32 0.0, %v1144
      %v1146 = vpop.f32.mrf.mxu0
      %v1147 = vpop.f32.mrf.mxu0
      %v1148 = vpop.f32.mrf.mxu0
      %1149 = vdwg.mxu0
      %v1150 = vpack.c.bf16 %v1145, %v1145
      %1151 = vmatprep.subr.bf16.mxu0 0
      %1152 = vmatpush1.bf16.xpose.msra.mxu0 0
      %1153 = vmatprep.subr.bf16.mxu0 0
      %1154 = vmatpush1.bf16.xpose.msra.mxu0 0
      %1155 = vmatprep.subr.bf16.mxu0 0
      %1156 = vmatpush1.bf16.xpose.msra.mxu0 0
      %1157 = vmatprep.subr.bf16.mxu0 0
      %1158 = vmatpush1.bf16.xpose.msra.mxu0 0
      %1159 = vmatprep.subr.bf16.mxu0 0
      %1160 = vmatpush1.bf16.xpose.msra.mxu0 0
      %1161 = vmatprep.subr.bf16.mxu0 0
      %1162 = vmatpush1.bf16.xpose.msra.mxu0 0
      %1163 = vmatprep.subr.bf16.mxu0 0
      %1164 = vmatpush1.bf16.xpose.msra.mxu0 0
      %1165 = vmatprep.subr.bf16.mxu0 0
      %1166 = vmatpush1.bf16.xpose.msra.mxu0 %v1150
      %1167 = vmatprep.subr.bf16.mxu0 0
      %1168 = vmatpush2.bf16.xpose.msra.mxu0 0
      %1169 = vmatprep.subr.bf16.mxu0 0
      %1170 = vmatpush2.bf16.xpose.msra.mxu0 0
      %1171 = vmatprep.subr.bf16.mxu0 0
      %1172 = vmatpush2.bf16.xpose.msra.mxu0 0
      %1173 = vmatprep.subr.bf16.mxu0 0
      %1174 = vmatpush2.bf16.xpose.msra.mxu0 0
      %1175 = vmatprep.subr.bf16.mxu0 0
      %1176 = vmatpush2.bf16.xpose.msra.mxu0 0
      %1177 = vmatprep.subr.bf16.mxu0 0
      %1178 = vmatpush2.bf16.xpose.msra.mxu0 0
      %1179 = vmatprep.subr.bf16.mxu0 0
      %1180 = vmatpush2.bf16.xpose.msra.mxu0 0
      %1181 = vmatprep.subr.bf16.mxu0 0
      %1182 = vmatpush2.bf16.xpose.msra.mxu0 0
      %1183 = vmatprep.mubr.bf16.mxu0 0
      %1184 = vmatmul.mubr.bf16.gmra.mxu0 %v716
      %v1185 = vpop.f32.mrf.mxu0
      %v1186 = vadd.f32 0.0, %v1185
      %v1187 = vpop.f32.mrf.mxu0
      %v1188 = vpop.f32.mrf.mxu0
      %v1189 = vadd.f32 0.0, %v1188
      %v1190 = vpop.f32.mrf.mxu0
      %1191 = vdwg.mxu0
      %vm1192 = vcmask 39936
      %v1193 = vsel %vm1192, %v1186, -inf
      %1194 = vmax.xlane.f32.xlu0 %v1193
      %v1195 = vpop.xlane.xlu0 %1194
      %vm1196 = vcmask 34816
      %v1197 = vsel %vm1196, %v1189, -inf
      %1198 = vmax.xlane.f32.xlu0 %v1197
      %v1199 = vpop.xlane.xlu0 %1198
      %v1200 = vsub.f32 %v1186, %v1195
      %v1201 = vsub.f32 %v1189, %v1199
      %v1202 = vmul.f32 %v1200, 1.442695
      %v1203 = vpow.pop %v1202
      %v1204 = vmul.f32 %v1201, 1.442695
      %v1205 = vpow.pop %v1204
      %v1206 = vsel %vm1192, %v1203, 0.0
      %1207 = vadd.xlane.f32.xlu0 %v1206
      %v1208 = vpop.xlane.xlu0 %1207
      %v1209 = vsel %vm1196, %v1205, 0.0
      %1210 = vadd.xlane.f32.xlu0 %v1209
      %v1211 = vpop.xlane.xlu0 %1210
      %v1212 = vrcp.pop %v1208
      %v1213 = vrcp.pop %v1211
      %v1214 = vmul.f32 %v1203, %v1212
      %v1215 = vmul.f32 %v1205, %v1213
      %v1216 = vpack.c.bf16 %v1215, %v1214
      %v1218 = vsel %vm1192, %v1216, 0
      %vm1220 = vcmask 1041408
      %vm1221 = vcmask 1042432
      %v1222 = vsel %vm1220, 4294967295, 65535
      %v1223 = vsel %vm1221, %v1222, 0
      %v1224 = vand.u32 %v1093, %v1223
      %1226 = vmatprep.subr.bf16.mxu0 0
      %1227 = vmatpush1.bf16.msra.mxu0 0
      %1228 = vmatprep.subr.bf16.mxu0 0
      %1229 = vmatpush1.bf16.msra.mxu0 0
      %1230 = vmatprep.subr.bf16.mxu0 0
      %1231 = vmatpush1.bf16.msra.mxu0 0
      %1232 = vmatprep.subr.bf16.mxu0 0
      %1233 = vmatpush1.bf16.msra.mxu0 0
      %1234 = vmatprep.subr.bf16.mxu0 0
      %1235 = vmatpush1.bf16.msra.mxu0 0
      %1236 = vmatprep.subr.bf16.mxu0 0
      %1237 = vmatpush1.bf16.msra.mxu0 0
      %1238 = vmatprep.subr.bf16.mxu0 0
      %1239 = vmatpush1.bf16.msra.mxu0 0
      %1240 = vmatprep.subr.bf16.mxu0 0
      %1241 = vmatpush1.bf16.msra.mxu0 %v1224
      %1242 = vmatprep.subr.bf16.mxu0 0
      %1243 = vmatpush2.bf16.msra.mxu0 0
      %1244 = vmatprep.subr.bf16.mxu0 0
      %1245 = vmatpush2.bf16.msra.mxu0 0
      %1246 = vmatprep.subr.bf16.mxu0 0
      %1247 = vmatpush2.bf16.msra.mxu0 0
      %1248 = vmatprep.subr.bf16.mxu0 0
      %1249 = vmatpush2.bf16.msra.mxu0 0
      %1250 = vmatprep.subr.bf16.mxu0 0
      %1251 = vmatpush2.bf16.msra.mxu0 0
      %1252 = vmatprep.subr.bf16.mxu0 0
      %1253 = vmatpush2.bf16.msra.mxu0 0
      %1254 = vmatprep.subr.bf16.mxu0 0
      %1255 = vmatpush2.bf16.msra.mxu0 0
      %1256 = vmatprep.subr.bf16.mxu0 0
      %1257 = vmatpush2.bf16.msra.mxu0 0
      %1258 = vmatprep.mubr.bf16.mxu0 0
      %1259 = vmatmul.mubr.bf16.gmra.mxu0 %v1218
      %v1260 = vpop.f32.mrf.mxu0
      %v1261 = vadd.f32 0.0, %v1260
      %v1262 = vpop.f32.mrf.mxu0
      %v1263 = vpop.f32.mrf.mxu0
      %v1264 = vadd.f32 0.0, %v1263
      %v1265 = vpop.f32.mrf.mxu0
      %1266 = vdwg.mxu0
      %v1267 = vpack.c.bf16 %v1264, %v1261
      %v1268 = vld [vmem:[%s9] sm:$0xff]
      %v1269 = vld [vmem:[%s9 + $0x8] sm:$0xff]
      %v1270 = vld [vmem:[%s9 + $0x10] sm:$0xff]
      %v1271 = vld [vmem:[%s9 + $0x18] sm:$0xff]
      %v1272 = vld [vmem:[%s9 + $0x20] sm:$0xff]
      %v1273 = vld [vmem:[%s9 + $0x28] sm:$0xff]
      %v1274 = vld [vmem:[%s9 + $0x30] sm:$0xff]
      %v1275 = vld [vmem:[%s9 + $0x38] sm:$0xff]
      %v1276 = vpack.c.bf16 %v1269, %v1268
      %v1277 = vpack.c.bf16 %v1271, %v1270
      %v1278 = vpack.c.bf16 %v1273, %v1272
      %v1279 = vpack.c.bf16 %v1275, %v1274
      %v1280 = vld [vmem:[%s9 + $0x40] sm:$0xff]
      %v1281 = vld [vmem:[%s9 + $0x48] sm:$0xff]
      %v1282 = vld [vmem:[%s9 + $0x50] sm:$0xff]
      %v1283 = vld [vmem:[%s9 + $0x58] sm:$0xff]
      %v1284 = vld [vmem:[%s9 + $0x60] sm:$0xff]
      %v1285 = vld [vmem:[%s9 + $0x68] sm:$0xff]
      %v1286 = vld [vmem:[%s9 + $0x70] sm:$0xff]
      %v1287 = vld [vmem:[%s9 + $0x78] sm:$0xff]
      %v1288 = vld [vmem:[%s9 + $0x80] sm:$0xff]
      %v1289 = vld [vmem:[%s9 + $0x88] sm:$0xff]
      %v1290 = vld [vmem:[%s9 + $0x90] sm:$0xff]
      %v1291 = vld [vmem:[%s9 + $0x98] sm:$0xff]
      %v1292 = vld [vmem:[%s9 + $0xa0] sm:$0xff]
      %v1293 = vld [vmem:[%s9 + $0xa8] sm:$0xff]
      %v1294 = vld [vmem:[%s9 + $0xb0] sm:$0xff]
      %v1295 = vld [vmem:[%s9 + $0xb8] sm:$0xff]
      %v1296 = vpack.c.bf16 %v1281, %v1280
      %v1297 = vpack.c.bf16 %v1283, %v1282
      %v1298 = vpack.c.bf16 %v1285, %v1284
      %v1299 = vpack.c.bf16 %v1287, %v1286
      %v1300 = vpack.c.bf16 %v1289, %v1288
      %v1301 = vpack.c.bf16 %v1291, %v1290
      %v1302 = vpack.c.bf16 %v1293, %v1292
      %v1303 = vpack.c.bf16 %v1295, %v1294
      %1304 = vmatprep.subr.bf16.mxu0 0
      %1305 = vmatpush1.bf16.msra.mxu0 %v1303
      %1306 = vmatprep.subr.bf16.mxu0 0
      %1307 = vmatpush1.bf16.msra.mxu0 %v1302
      %1308 = vmatprep.subr.bf16.mxu0 0
      %1309 = vmatpush1.bf16.msra.mxu0 %v1301
      %1310 = vmatprep.subr.bf16.mxu0 0
      %1311 = vmatpush1.bf16.msra.mxu0 %v1300
      %1312 = vmatprep.subr.bf16.mxu0 0
      %1313 = vmatpush1.bf16.msra.mxu0 %v1299
      %1314 = vmatprep.subr.bf16.mxu0 0
      %1315 = vmatpush1.bf16.msra.mxu0 %v1298
      %1316 = vmatprep.subr.bf16.mxu0 0
      %1317 = vmatpush1.bf16.msra.mxu0 %v1297
      %1318 = vmatprep.subr.bf16.mxu0 0
      %1319 = vmatpush1.bf16.msra.mxu0 %v1296
      %1320 = vmatprep.subr.bf16.mxu0 0
      %1321 = vmatpush2.bf16.msra.mxu0 0
      %1322 = vmatprep.subr.bf16.mxu0 0
      %1323 = vmatpush2.bf16.msra.mxu0 0
      %1324 = vmatprep.subr.bf16.mxu0 0
      %1325 = vmatpush2.bf16.msra.mxu0 0
      %1326 = vmatprep.subr.bf16.mxu0 0
      %1327 = vmatpush2.bf16.msra.mxu0 0
      %1328 = vmatprep.subr.bf16.mxu0 0
      %1329 = vmatpush2.bf16.msra.mxu0 0
      %1330 = vmatprep.subr.bf16.mxu0 0
      %1331 = vmatpush2.bf16.msra.mxu0 0
      %1332 = vmatprep.subr.bf16.mxu0 0
      %1333 = vmatpush2.bf16.msra.mxu0 0
      %1334 = vmatprep.subr.bf16.mxu0 0
      %1335 = vmatpush2.bf16.msra.mxu0 0
      %1336 = vmatprep.mubr.bf16.mxu0 0
      %1337 = vmatmul.mubr.bf16.gmra.mxu0 %v716
      %v1338 = vpop.f32.mrf.mxu0
      %v1339 = vadd.f32 0.0, %v1338
      %v1340 = vpop.f32.mrf.mxu0
      %v1341 = vpop.f32.mrf.mxu0
      %v1342 = vadd.f32 0.0, %v1341
      %v1343 = vpop.f32.mrf.mxu0
      %1344 = vdwg.mxu0
      %v1346 = vsel %vm1106, %v1267, 0
      %1348 = vmatprep.subr.bf16.mxu0 0
      %1349 = vmatpush1.bf16.msra.mxu0 0
      %1350 = vmatprep.subr.bf16.mxu0 0
      %1351 = vmatpush1.bf16.msra.mxu0 0
      %1352 = vmatprep.subr.bf16.mxu0 0
      %1353 = vmatpush1.bf16.msra.mxu0 0
      %1354 = vmatprep.subr.bf16.mxu0 0
      %1355 = vmatpush1.bf16.msra.mxu0 0
      %1356 = vmatprep.subr.bf16.mxu0 0
      %1357 = vmatpush1.bf16.msra.mxu0 %v1279
      %1358 = vmatprep.subr.bf16.mxu0 0
      %1359 = vmatpush1.bf16.msra.mxu0 %v1278
      %1360 = vmatprep.subr.bf16.mxu0 0
      %1361 = vmatpush1.bf16.msra.mxu0 %v1277
      %1362 = vmatprep.subr.bf16.mxu0 0
      %1363 = vmatpush1.bf16.msra.mxu0 %v1276
      %1364 = vmatprep.subr.bf16.mxu0 0
      %1365 = vmatpush2.bf16.msra.mxu0 0
      %1366 = vmatprep.subr.bf16.mxu0 0
      %1367 = vmatpush2.bf16.msra.mxu0 0
      %1368 = vmatprep.subr.bf16.mxu0 0
      %1369 = vmatpush2.bf16.msra.mxu0 0
      %1370 = vmatprep.subr.bf16.mxu0 0
      %1371 = vmatpush2.bf16.msra.mxu0 0
      %1372 = vmatprep.subr.bf16.mxu0 0
      %1373 = vmatpush2.bf16.msra.mxu0 0
      %1374 = vmatprep.subr.bf16.mxu0 0
      %1375 = vmatpush2.bf16.msra.mxu0 0
      %1376 = vmatprep.subr.bf16.mxu0 0
      %1377 = vmatpush2.bf16.msra.mxu0 0
      %1378 = vmatprep.subr.bf16.mxu0 0
      %1379 = vmatpush2.bf16.msra.mxu0 0
      %1380 = vmatprep.mubr.bf16.mxu0 0
      %1381 = vmatmul.mubr.bf16.gmra.mxu0 %v1346
      %v1382 = vpop.f32.mrf.mxu0
      %v1383 = vadd.f32 %v1339, %v1382
      %v1384 = vpop.f32.mrf.mxu0
      %v1385 = vpop.f32.mrf.mxu0
      %v1386 = vadd.f32 %v1342, %v1385
      %v1387 = vpop.f32.mrf.mxu0
      %1388 = vdwg.mxu0
      %v1389 = vld [vmem:[%s10] sm:$0x1]
      %v1391 = vlaneseq
      %v1392 = vshrl.u32 %v1391, 7
      %v1393 = vsub.s32 0, %v1392
      %v1394 = vrot.slane %v1389, %v1393
      %v1396 = vadd.f32 %v1383, %v1394
      %v1397 = vadd.f32 %v1386, %v1394
      %v1398 = vtanh.pop %v1396
      %v1399 = vtanh.pop %v1397
      %v1400 = vpack.c.bf16 %v1091, %v1090
      %v1401 = vld [vmem:[%s11] sm:$0xff]
      %v1402 = vld [vmem:[%s11 + $0x8] sm:$0xff]
      %v1403 = vld [vmem:[%s11 + $0x10] sm:$0xff]
      %v1404 = vld [vmem:[%s11 + $0x18] sm:$0xff]
      %v1405 = vld [vmem:[%s11 + $0x20] sm:$0xff]
      %v1406 = vld [vmem:[%s11 + $0x28] sm:$0xff]
      %v1407 = vld [vmem:[%s11 + $0x30] sm:$0xff]
      %v1408 = vld [vmem:[%s11 + $0x38] sm:$0xff]
      %v1409 = vld [vmem:[%s11 + $0x40] sm:$0xff]
      %v1410 = vld [vmem:[%s11 + $0x48] sm:$0xff]
      %v1411 = vld [vmem:[%s11 + $0x50] sm:$0xff]
      %v1412 = vld [vmem:[%s11 + $0x58] sm:$0xff]
      %v1413 = vld [vmem:[%s11 + $0x60] sm:$0xff]
      %v1414 = vld [vmem:[%s11 + $0x68] sm:$0xff]
      %v1415 = vld [vmem:[%s11 + $0x70] sm:$0xff]
      %v1416 = vld [vmem:[%s11 + $0x78] sm:$0xff]
      %v1417 = vld [vmem:[%s11 + $0x80] sm:$0xff]
      %v1418 = vld [vmem:[%s11 + $0x88] sm:$0xff]
      %v1419 = vld [vmem:[%s11 + $0x90] sm:$0xff]
      %v1420 = vld [vmem:[%s11 + $0x98] sm:$0xff]
      %v1421 = vld [vmem:[%s11 + $0xa0] sm:$0xff]
      %v1422 = vld [vmem:[%s11 + $0xa8] sm:$0xff]
      %v1423 = vld [vmem:[%s11 + $0xb0] sm:$0xff]
      %v1424 = vld [vmem:[%s11 + $0xb8] sm:$0xff]
      %v1425 = vld [vmem:[%s11 + $0xc0] sm:$0xff]
      %v1426 = vld [vmem:[%s11 + $0xc8] sm:$0xff]
      %v1427 = vld [vmem:[%s11 + $0xd0] sm:$0xff]
      %v1428 = vld [vmem:[%s11 + $0xd8] sm:$0xff]
      %v1429 = vld [vmem:[%s11 + $0xe0] sm:$0xff]
      %v1430 = vld [vmem:[%s11 + $0xe8] sm:$0xff]
      %v1431 = vld [vmem:[%s11 + $0xf0] sm:$0xff]
      %v1432 = vld [vmem:[%s11 + $0xf8] sm:$0xff]
      %v1433 = vpack.c.bf16 %v1403, %v1401
      %v1434 = vpack.c.bf16 %v1404, %v1402
      %v1435 = vpack.c.bf16 %v1407, %v1405
      %v1436 = vpack.c.bf16 %v1408, %v1406
      %v1437 = vpack.c.bf16 %v1411, %v1409
      %v1438 = vpack.c.bf16 %v1412, %v1410
      %v1439 = vpack.c.bf16 %v1415, %v1413
      %v1440 = vpack.c.bf16 %v1416, %v1414
      %v1441 = vpack.c.bf16 %v1419, %v1417
      %v1442 = vpack.c.bf16 %v1420, %v1418
      %v1443 = vpack.c.bf16 %v1423, %v1421
      %v1444 = vpack.c.bf16 %v1424, %v1422
      %v1445 = vpack.c.bf16 %v1427, %v1425
      %v1446 = vpack.c.bf16 %v1428, %v1426
      %v1447 = vpack.c.bf16 %v1431, %v1429
      %v1448 = vpack.c.bf16 %v1432, %v1430
      %v1449 = vld [vmem:[%s12] sm:$0x3]
      %v1451 = vlaneseq
      %v1452 = vshrl.u32 %v1451, 7
      %v1453 = vsub.s32 0, %v1452
      %v1454 = vrot.slane %v1449, %v1453
      %v1455 = vlaneseq
      %v1456 = vshrl.u32 %v1455, 7
      %v1457 = vsub.s32 1, %v1456
      %v1458 = vrot.slane %v1449, %v1457
      %1461 = vmatprep.subr.bf16.mxu0 %v1448
      %1462 = vmatpush1.bf16.msra.mxu0 %v1447
      %1463 = vmatprep.subr.bf16.mxu0 %v1446
      %1464 = vmatpush1.bf16.msra.mxu0 %v1445
      %1465 = vmatprep.subr.bf16.mxu0 %v1444
      %1466 = vmatpush1.bf16.msra.mxu0 %v1443
      %1467 = vmatprep.subr.bf16.mxu0 %v1442
      %1468 = vmatpush1.bf16.msra.mxu0 %v1441
      %1469 = vmatprep.subr.bf16.mxu0 %v1440
      %1470 = vmatpush1.bf16.msra.mxu0 %v1439
      %1471 = vmatprep.subr.bf16.mxu0 %v1438
      %1472 = vmatpush1.bf16.msra.mxu0 %v1437
      %1473 = vmatprep.subr.bf16.mxu0 %v1436
      %1474 = vmatpush1.bf16.msra.mxu0 %v1435
      %1475 = vmatprep.subr.bf16.mxu0 %v1434
      %1476 = vmatpush1.bf16.msra.mxu0 %v1433
      %1477 = vmatprep.subr.bf16.mxu0 0
      %1478 = vmatpush2.bf16.msra.mxu0 0
      %1479 = vmatprep.subr.bf16.mxu0 0
      %1480 = vmatpush2.bf16.msra.mxu0 0
      %1481 = vmatprep.subr.bf16.mxu0 0
      %1482 = vmatpush2.bf16.msra.mxu0 0
      %1483 = vmatprep.subr.bf16.mxu0 0
      %1484 = vmatpush2.bf16.msra.mxu0 0
      %1485 = vmatprep.subr.bf16.mxu0 0
      %1486 = vmatpush2.bf16.msra.mxu0 0
      %1487 = vmatprep.subr.bf16.mxu0 0
      %1488 = vmatpush2.bf16.msra.mxu0 0
      %1489 = vmatprep.subr.bf16.mxu0 0
      %1490 = vmatpush2.bf16.msra.mxu0 0
      %1491 = vmatprep.subr.bf16.mxu0 0
      %1492 = vmatpush2.bf16.msra.mxu0 0
      %1493 = vmatprep.mubr.bf16.mxu0 0
      %1494 = vmatmul.mubr.bf16.gmra.mxu0 %v1400
      %v1495 = vpop.f32.mrf.mxu0
      %v1496 = vadd.f32 %v1454, %v1495
      %v1497 = vpop.f32.mrf.mxu0
      %v1498 = vadd.f32 %v1458, %v1497
      %v1499 = vpop.f32.mrf.mxu0
      %v1500 = vadd.f32 %v1454, %v1499
      %v1501 = vpop.f32.mrf.mxu0
      %v1502 = vadd.f32 %v1458, %v1501
      %1503 = vdwg.mxu0
      %v1504 = vpack.c.bf16 %v1399, %v1398
      %v1505 = vld [vmem:[%s13] sm:$0xff]
      %v1506 = vld [vmem:[%s13 + $0x8] sm:$0xff]
      %v1507 = vld [vmem:[%s13 + $0x10] sm:$0xff]
      %v1508 = vld [vmem:[%s13 + $0x18] sm:$0xff]
      %v1509 = vld [vmem:[%s13 + $0x20] sm:$0xff]
      %v1510 = vld [vmem:[%s13 + $0x28] sm:$0xff]
      %v1511 = vld [vmem:[%s13 + $0x30] sm:$0xff]
      %v1512 = vld [vmem:[%s13 + $0x38] sm:$0xff]
      %v1513 = vld [vmem:[%s13 + $0x40] sm:$0xff]
      %v1514 = vld [vmem:[%s13 + $0x48] sm:$0xff]
      %v1515 = vld [vmem:[%s13 + $0x50] sm:$0xff]
      %v1516 = vld [vmem:[%s13 + $0x58] sm:$0xff]
      %v1517 = vld [vmem:[%s13 + $0x60] sm:$0xff]
      %v1518 = vld [vmem:[%s13 + $0x68] sm:$0xff]
      %v1519 = vld [vmem:[%s13 + $0x70] sm:$0xff]
      %v1520 = vld [vmem:[%s13 + $0x78] sm:$0xff]
      %v1521 = vpack.c.bf16 %v1506, %v1505
      %v1522 = vpack.c.bf16 %v1508, %v1507
      %v1523 = vpack.c.bf16 %v1510, %v1509
      %v1524 = vpack.c.bf16 %v1512, %v1511
      %v1525 = vpack.c.bf16 %v1514, %v1513
      %v1526 = vpack.c.bf16 %v1516, %v1515
      %v1527 = vpack.c.bf16 %v1518, %v1517
      %v1528 = vpack.c.bf16 %v1520, %v1519
      %v1529 = vld [vmem:[%s14] sm:$0x1]
      %v1531 = vlaneseq
      %v1532 = vshrl.u32 %v1531, 7
      %v1533 = vsub.s32 0, %v1532
      %v1534 = vrot.slane %v1529, %v1533
      %1536 = vmatprep.subr.bf16.mxu0 0
      %1537 = vmatpush1.bf16.msra.mxu0 %v1528
      %1538 = vmatprep.subr.bf16.mxu0 0
      %1539 = vmatpush1.bf16.msra.mxu0 %v1527
      %1540 = vmatprep.subr.bf16.mxu0 0
      %1541 = vmatpush1.bf16.msra.mxu0 %v1526
      %1542 = vmatprep.subr.bf16.mxu0 0
      %1543 = vmatpush1.bf16.msra.mxu0 %v1525
      %1544 = vmatprep.subr.bf16.mxu0 0
      %1545 = vmatpush1.bf16.msra.mxu0 %v1524
      %1546 = vmatprep.subr.bf16.mxu0 0
      %1547 = vmatpush1.bf16.msra.mxu0 %v1523
      %1548 = vmatprep.subr.bf16.mxu0 0
      %1549 = vmatpush1.bf16.msra.mxu0 %v1522
      %1550 = vmatprep.subr.bf16.mxu0 0
      %1551 = vmatpush1.bf16.msra.mxu0 %v1521
      %1552 = vmatprep.subr.bf16.mxu0 0
      %1553 = vmatpush2.bf16.msra.mxu0 0
      %1554 = vmatprep.subr.bf16.mxu0 0
      %1555 = vmatpush2.bf16.msra.mxu0 0
      %1556 = vmatprep.subr.bf16.mxu0 0
      %1557 = vmatpush2.bf16.msra.mxu0 0
      %1558 = vmatprep.subr.bf16.mxu0 0
      %1559 = vmatpush2.bf16.msra.mxu0 0
      %1560 = vmatprep.subr.bf16.mxu0 0
      %1561 = vmatpush2.bf16.msra.mxu0 0
      %1562 = vmatprep.subr.bf16.mxu0 0
      %1563 = vmatpush2.bf16.msra.mxu0 0
      %1564 = vmatprep.subr.bf16.mxu0 0
      %1565 = vmatpush2.bf16.msra.mxu0 0
      %1566 = vmatprep.subr.bf16.mxu0 0
      %1567 = vmatpush2.bf16.msra.mxu0 0
      %1568 = vmatprep.mubr.bf16.mxu0 0
      %1569 = vmatmul.mubr.bf16.gmra.mxu0 %v1504
      %v1570 = vpop.f32.mrf.mxu0
      %v1571 = vadd.f32 %v1534, %v1570
      %v1572 = vpop.f32.mrf.mxu0
      %v1573 = vpop.f32.mrf.mxu0
      %v1574 = vadd.f32 %v1534, %v1573
      %v1575 = vpop.f32.mrf.mxu0
      %1576 = vdwg.mxu0
      %v1577 = vlaneseq
      %v1578 = vand.u32 %v1577, 127
      %v1579 = vadd.s32 %v1578, 128
      %v1580 = vld [vmem:[%s702] sm:$0xf]
      %1581 = vset.pattern.permute.xlu0 0
      %1582 = vperm.xlu0 %1581, %v1580
      %v1583 = vpop.permute.xlu0 %1582
      %vm1584 = vcmp.eq.s32.totalorder %v1578, %v1583
      %vm1585 = vcmp.eq.s32.totalorder %v1579, %v1583
      %v1586 = vsel %vm1584, 1, 0
      %v1587 = vsel %vm1585, 1, 0
      %v1588 = vcvt.s32.f32 %v1586
      %v1589 = vcvt.s32.f32 %v1587
      %vm1590 = vcmask 31744
      %v1592 = vsel %vm1590, %v1571, 0
      %v1595 = vsel %vm1590, %v1574, 0
      %vm1597 = vcmask 1043456
      %v1599 = vsel %vm1597, %v1588, 0
      %v1602 = vsel %vm1597, %v1589, 0
      %1604 = vmatprep.subr.mxu0 0.0
      %1605 = vmatpush1.msra.mxu0 0.0
      %1606 = vmatprep.subr.mxu0 0.0
      %1607 = vmatpush1.msra.mxu0 0.0
      %1608 = vmatprep.subr.mxu0 0.0
      %1609 = vmatpush1.msra.mxu0 0.0
      %1610 = vmatprep.subr.mxu0 0.0
      %1611 = vmatpush1.msra.mxu0 0.0
      %1612 = vmatprep.subr.mxu0 0.0
      %1613 = vmatpush1.msra.mxu0 0.0
      %1614 = vmatprep.subr.mxu0 0.0
      %1615 = vmatpush1.msra.mxu0 0.0
      %1616 = vmatprep.subr.mxu0 0.0
      %1617 = vmatpush1.msra.mxu0 0.0
      %1618 = vmatprep.subr.mxu0 0.0
      %1619 = vmatpush1.msra.mxu0 0.0
      %1620 = vmatprep.subr.mxu0 0.0
      %1621 = vmatpush1.msra.mxu0 0.0
      %1622 = vmatprep.subr.mxu0 0.0
      %1623 = vmatpush1.msra.mxu0 0.0
      %1624 = vmatprep.subr.mxu0 0.0
      %1625 = vmatpush1.msra.mxu0 0.0
      %1626 = vmatprep.subr.mxu0 0.0
      %1627 = vmatpush1.msra.mxu0 0.0
      %1628 = vmatprep.subr.mxu0 0.0
      %1629 = vmatpush1.msra.mxu0 0.0
      %1630 = vmatprep.subr.mxu0 0.0
      %1631 = vmatpush1.msra.mxu0 0.0
      %1632 = vmatprep.subr.mxu0 0.0
      %1633 = vmatpush1.msra.mxu0 0.0
      %1634 = vmatprep.subr.mxu0 %v1602
      %1635 = vmatpush1.msra.mxu0 %v1599
      %1636 = vmatprep.subr.mxu0 0.0
      %1637 = vmatpush2.msra.mxu0 0.0
      %1638 = vmatprep.subr.mxu0 0.0
      %1639 = vmatpush2.msra.mxu0 0.0
      %1640 = vmatprep.subr.mxu0 0.0
      %1641 = vmatpush2.msra.mxu0 0.0
      %1642 = vmatprep.subr.mxu0 0.0
      %1643 = vmatpush2.msra.mxu0 0.0
      %1644 = vmatprep.subr.mxu0 0.0
      %1645 = vmatpush2.msra.mxu0 0.0
      %1646 = vmatprep.subr.mxu0 0.0
      %1647 = vmatpush2.msra.mxu0 0.0
      %1648 = vmatprep.subr.mxu0 0.0
      %1649 = vmatpush2.msra.mxu0 0.0
      %1650 = vmatprep.subr.mxu0 0.0
      %1651 = vmatpush2.msra.mxu0 0.0
      %1652 = vmatprep.subr.mxu0 0.0
      %1653 = vmatpush2.msra.mxu0 0.0
      %1654 = vmatprep.subr.mxu0 0.0
      %1655 = vmatpush2.msra.mxu0 0.0
      %1656 = vmatprep.subr.mxu0 0.0
      %1657 = vmatpush2.msra.mxu0 0.0
      %1658 = vmatprep.subr.mxu0 0.0
      %1659 = vmatpush2.msra.mxu0 0.0
      %1660 = vmatprep.subr.mxu0 0.0
      %1661 = vmatpush2.msra.mxu0 0.0
      %1662 = vmatprep.subr.mxu0 0.0
      %1663 = vmatpush2.msra.mxu0 0.0
      %1664 = vmatprep.subr.mxu0 0.0
      %1665 = vmatpush2.msra.mxu0 0.0
      %1666 = vmatprep.subr.mxu0 0.0
      %1667 = vmatpush2.msra.mxu0 0.0
      %1668 = vmatprep.mubr.f32.mxu0 0.0
      %1669 = vmatmul.mubr.f32.gmra.mxu0 %v1592
      %v1670 = vpop.f32.mrf.mxu0
      %v1671 = vadd.f32 0.0, %v1670
      %v1672 = vpop.f32.mrf.mxu0
      %v1673 = vadd.f32 0.0, %v1672
      %1674 = vmatprep.mubr.f32.mxu0 0.0
      %1675 = vmatmul.mubr.f32.gmra.mxu0 %v1595
      %v1676 = vpop.f32.mrf.mxu0
      %v1677 = vadd.f32 0.0, %v1676
      %v1678 = vpop.f32.mrf.mxu0
      %v1679 = vadd.f32 0.0, %v1678
      %1680 = vdwg.mxu0
      %v1681 = vadd.f32 %v1496, %v1671
      %v1682 = vadd.f32 %v1498, %v1673
      %v1683 = vadd.f32 %v1500, %v1677
      %v1684 = vadd.f32 %v1502, %v1679
      %v1685 = vld [vmem:[%s698] sm:$0x1]
      %v1686 = vpack.c.bf16 %v1685, %v1685
      %v1687 = vld [vmem:[%s15] sm:$0xff]
      %v1688 = vld [vmem:[%s15 + $0x8] sm:$0xff]
      %v1689 = vld [vmem:[%s15 + $0x10] sm:$0xff]
      %v1690 = vld [vmem:[%s15 + $0x18] sm:$0xff]
      %v1691 = vld [vmem:[%s15 + $0x20] sm:$0xff]
      %v1692 = vld [vmem:[%s15 + $0x28] sm:$0xff]
      %v1693 = vld [vmem:[%s15 + $0x30] sm:$0xff]
      %v1694 = vld [vmem:[%s15 + $0x38] sm:$0xff]
      %v1695 = vld [vmem:[%s15 + $0x40] sm:$0xff]
      %v1696 = vld [vmem:[%s15 + $0x48] sm:$0xff]
      %v1697 = vld [vmem:[%s15 + $0x50] sm:$0xff]
      %v1698 = vld [vmem:[%s15 + $0x58] sm:$0xff]
      %v1699 = vld [vmem:[%s15 + $0x60] sm:$0xff]
      %v1700 = vld [vmem:[%s15 + $0x68] sm:$0xff]
      %v1701 = vld [vmem:[%s15 + $0x70] sm:$0xff]
      %v1702 = vld [vmem:[%s15 + $0x78] sm:$0xff]
      %v1703 = vpack.c.bf16 %v1688, %v1687
      %v1704 = vpack.c.bf16 %v1690, %v1689
      %v1705 = vpack.c.bf16 %v1692, %v1691
      %v1706 = vpack.c.bf16 %v1694, %v1693
      %v1707 = vpack.c.bf16 %v1696, %v1695
      %v1708 = vpack.c.bf16 %v1698, %v1697
      %v1709 = vpack.c.bf16 %v1700, %v1699
      %v1710 = vpack.c.bf16 %v1702, %v1701
      %v1711 = vld [vmem:[#allocation2] sm:$0x1]
      %1712 = vmatprep.subr.bf16.mxu0 0
      %1713 = vmatpush1.bf16.msra.mxu0 %v1710
      %1714 = vmatprep.subr.bf16.mxu0 0
      %1715 = vmatpush1.bf16.msra.mxu0 %v1709
      %1716 = vmatprep.subr.bf16.mxu0 0
      %1717 = vmatpush1.bf16.msra.mxu0 %v1708
      %1718 = vmatprep.subr.bf16.mxu0 0
      %1719 = vmatpush1.bf16.msra.mxu0 %v1707
      %1720 = vmatprep.subr.bf16.mxu0 0
      %1721 = vmatpush1.bf16.msra.mxu0 %v1706
      %1722 = vmatprep.subr.bf16.mxu0 0
      %1723 = vmatpush1.bf16.msra.mxu0 %v1705
      %1724 = vmatprep.subr.bf16.mxu0 0
      %1725 = vmatpush1.bf16.msra.mxu0 %v1704
      %1726 = vmatprep.subr.bf16.mxu0 0
      %1727 = vmatpush1.bf16.msra.mxu0 %v1703
      %1728 = vmatprep.subr.bf16.mxu0 0
      %1729 = vmatpush2.bf16.msra.mxu0 0
      %1730 = vmatprep.subr.bf16.mxu0 0
      %1731 = vmatpush2.bf16.msra.mxu0 0
      %1732 = vmatprep.subr.bf16.mxu0 0
      %1733 = vmatpush2.bf16.msra.mxu0 0
      %1734 = vmatprep.subr.bf16.mxu0 0
      %1735 = vmatpush2.bf16.msra.mxu0 0
      %1736 = vmatprep.subr.bf16.mxu0 0
      %1737 = vmatpush2.bf16.msra.mxu0 0
      %1738 = vmatprep.subr.bf16.mxu0 0
      %1739 = vmatpush2.bf16.msra.mxu0 0
      %1740 = vmatprep.subr.bf16.mxu0 0
      %1741 = vmatpush2.bf16.msra.mxu0 0
      %1742 = vmatprep.subr.bf16.mxu0 0
      %1743 = vmatpush2.bf16.msra.mxu0 0
      %1744 = vmatprep.mubr.bf16.mxu0 0
      %1745 = vmatmul.mubr.bf16.gmra.mxu0 %v1686
      %v1746 = vpop.f32.mrf.mxu0
      %v1747 = vadd.f32 %v1711, %v1746
      %v1748 = vpop.f32.mrf.mxu0
      %v1749 = vpop.f32.mrf.mxu0
      %v1750 = vpop.f32.mrf.mxu0
      %1751 = vdwg.mxu0
      %v1752 = vxor.u32 %v1747, 2147483648
      %v1753 = vmul.f32 %v1752, 1.442695
      %v1754 = vpow.pop %v1753
      %v1755 = vadd.f32 %v1754, 1.0
      %v1756 = vrcp.pop %v1755
      %v1757 = vmul.f32 1.0, %v1756
      %v1758 = vld [vmem:[%s17] sm:$0x3]
      %v1760 = vlaneseq
      %v1761 = vshrl.u32 %v1760, 7
      %v1762 = vsub.s32 0, %v1761
      %v1763 = vrot.slane %v1758, %v1762
      %v1764 = vlaneseq
      %v1765 = vshrl.u32 %v1764, 7
      %v1766 = vsub.s32 1, %v1765
      %v1767 = vrot.slane %v1758, %v1766
      %v1770 = vmul.f32 %v1681, %v1763
      %v1771 = vmul.f32 %v1682, %v1767
      %v1772 = vmul.f32 %v1683, %v1763
      %v1773 = vmul.f32 %v1684, %v1767
      %s1775 = vtos %v1757
      %v1776 = vstv %s1775
      %v1778 = vmul.f32 %v1776, %v1770
      %v1779 = vmul.f32 %v1776, %v1771
      %v1780 = vmul.f32 %v1776, %v1772
      %v1781 = vmul.f32 %v1776, %v1773
      %v1782 = vsub.f32 1.0, %v1758
      %v1784 = vlaneseq
      %v1785 = vshrl.u32 %v1784, 7
      %v1786 = vsub.s32 0, %v1785
      %v1787 = vrot.slane %v1782, %v1786
      %v1788 = vlaneseq
      %v1789 = vshrl.u32 %v1788, 7
      %v1790 = vsub.s32 1, %v1789
      %v1791 = vrot.slane %v1782, %v1790
      %v1794 = vmul.f32 %v1681, %v1787
      %v1795 = vmul.f32 %v1682, %v1791
      %v1796 = vmul.f32 %v1683, %v1787
      %v1797 = vmul.f32 %v1684, %v1791
      %v1798 = vadd.f32 %v1778, %v1794
      %v1799 = vadd.f32 %v1779, %v1795
      %v1800 = vadd.f32 %v1780, %v1796
      %v1801 = vadd.f32 %v1781, %v1797
      %v1802 = vmax.f32 %v1798, %v1799
      %1803 = vmax.xlane.f32.xlu0 %v1802
      %v1804 = vpop.xlane.xlu0 %1803
      %v1805 = vsel %vm1221, %v1800, -inf
      %v1806 = vsel %vm1221, %v1801, -inf
      %v1807 = vmax.f32 %v1805, %v1806
      %1808 = vmax.xlane.f32.xlu0 %v1807
      %v1809 = vpop.xlane.xlu0 %1808
      %v1810 = vsub.f32 %v1798, %v1804
      %v1811 = vsub.f32 %v1799, %v1804
      %v1812 = vsub.f32 %v1800, %v1809
      %v1813 = vsub.f32 %v1801, %v1809
      %v1814 = vmul.f32 %v1810, 1.442695
      %v1815 = vpow.pop %v1814
      %v1816 = vmul.f32 %v1811, 1.442695
      %v1817 = vpow.pop %v1816
      %v1818 = vmul.f32 %v1812, 1.442695
      %v1819 = vpow.pop %v1818
      %v1820 = vmul.f32 %v1813, 1.442695
      %v1821 = vpow.pop %v1820
      %v1822 = vadd.f32 %v1815, %v1817
      %1823 = vadd.xlane.f32.xlu0 %v1822
      %v1824 = vpop.xlane.xlu0 %1823
      %v1825 = vsel %vm1221, %v1819, 0.0
      %v1826 = vsel %vm1221, %v1821, 0.0
      %v1827 = vadd.f32 %v1825, %v1826
      %1828 = vadd.xlane.f32.xlu0 %v1827
      %v1829 = vpop.xlane.xlu0 %1828
      %v1830 = vlog2.pop %v1824
      %v1831 = vmul.f32 %v1830, 0.6931472
      %v1832 = vlog2.pop %v1829
      %v1833 = vmul.f32 %v1832, 0.6931472
      %v1834 = vsub.f32 %v1810, %v1831
      %v1835 = vsub.f32 %v1811, %v1831
      %v1836 = vsub.f32 %v1812, %v1833
      %v1837 = vsub.f32 %v1813, %v1833
      %v1838 = vld [vmem:[%s18] sm:$0xff]
      %v1839 = vld [vmem:[%s18 + $0x8] sm:$0x7]
      %1841 = vset.pattern.permute.xlu0 0
      %1842 = vperm.xlu0 %1841, %v1838
      %v1843 = vpop.permute.xlu0 %1842
      %1846 = vset.pattern.permute.xlu0 0
      %1847 = vperm.xlu0 %1846, %v1839
      %v1848 = vpop.permute.xlu0 %1847
      %v1850 = vmul.f32 %v1834, %v1843
      %v1851 = vmul.f32 %v1835, %v1843
      %v1852 = vmul.f32 %v1836, %v1848
      %v1853 = vmul.f32 %v1837, %v1848
      %1854 = vst [vmem:[%s707] sm:$0xff] %v1850
      %1855 = vst [vmem:[%s707 + $0x8] sm:$0xff] %v1851
      %1856 = vst [vmem:[%s707 + $0x10] sm:$0x7] %v1852
      %1857 = vst [vmem:[%s707 + $0x18] sm:$0x7] %v1853
      %1858 = vst.msk [vmem:[%s712] sm:$0xff] %vm854, %v876
      %1859 = vst.msk [vmem:[%s712 + $0x8] sm:$0x7] %vm858, %v877
      %p1860 = scmp.lt.s32.totalorder %s34, 3
      %s1861 = scalar_select %p1860, %s34, 3
      %s1862 = smul.addr %s1861, 4
      %s1863 = smul.addr %s1862, 8
      %s1864 = scalar_lea.vmem %s19, %s1863
      %p1865 = scmp.lt.s32.totalorder %s34, 3
      %s1866 = scalar_select %p1865, %s34, 3
      %s1867 = smul.addr %s1866, 2
      %s1868 = smul.addr %s1867, 8
      %s1869 = scalar_lea.vmem %s20, %s1868
      // Predicated region
      $region97: #{_forward.15} parent=95 // pred_check
        %p1870 = pneg %p476
      $region98: #{_forward.15} parent=95 // pred_check_branch
        %1872 = sbr.rel (%p1870) target = $region100
      $region99: #{_forward.15} parent=95 // pred_region
        _
      $region100: #{_forward.15} parent=95 // pred_fallthru
        _
      // Predicated region
      $region101: #{_forward.15} parent=95 // pred_check
        %p1873 = pneg %p502
      $region102: #{_forward.15} parent=95 // pred_check_branch
        %1875 = sbr.rel (%p1873) target = $region104
      $region103: #{_forward.15} parent=95 // pred_region
        _
      $region104: #{_forward.15} parent=95 // pred_fallthru
        _
    $region96: #{_forward.15} parent=5 // pred_fallthru
      _
    %p1876 = scmp.le.s32.totalorder 2, %s29
    // Predicated region
    $region105: #{_forward.15} parent=5 // pred_check
      %p1877 = pneg %p1876
    $region106: #{_forward.15} parent=5 // pred_check_branch
      %1879 = sbr.rel (%p1877) target = $region108
    $region107: #{_forward.15} parent=5 // pred_region
      %s1880 = ssub.s32 %s29, 2
      // Predicated region
      $region109: #{_forward.15} parent=107 // pred_check
        %p1881 = pneg %p482
      $region110: #{_forward.15} parent=107 // pred_check_branch
        %1883 = sbr.rel (%p1881) target = $region112
      $region111: #{_forward.15} parent=107 // pred_region
        %p1884 = scmp.lt.s32.totalorder %s35, 3
        %s1885 = scalar_select %p1884, %s35, 3
        %s1886 = smul.addr %s1885, 4
        %s1887 = smul.addr %s1886, 8
        %s1888 = scalar_lea.vmem %s19, %s1887
      $region112: #{_forward.15} parent=107 // pred_fallthru
        _
      // Predicated region
      $region113: #{_forward.15} parent=107 // pred_check
        %p1889 = pneg %p508
      $region114: #{_forward.15} parent=107 // pred_check_branch
        %1891 = sbr.rel (%p1889) target = $region116
      $region115: #{_forward.15} parent=107 // pred_region
        %p1892 = scmp.lt.s32.totalorder %s35, 3
        %s1893 = scalar_select %p1892, %s35, 3
        %s1894 = smul.addr %s1893, 2
        %s1895 = smul.addr %s1894, 8
        %s1896 = scalar_lea.vmem %s20, %s1895
      $region116: #{_forward.15} parent=107 // pred_fallthru
        _
    $region108: #{_forward.15} parent=5 // pred_fallthru
      _
  $region6: #{_forward.15} parent=0 // loop_footer
    %s33 = sadd.s32 1, %s29
  $region7: #{_forward.15} parent=0 // loop_footer_branch
    %28 = sbr.rel target = $region3
  $region8: #{_forward.15} parent=0 // loop_exit
    _

</llo_original>
